<compile_context>
chip_gen: v6e
topology: v6e:2x2x1
jax: 0.10.0
libtpu: 0.0.40
codegen_flags: <defaults>
</compile_context>

<pallas_src>
import functools
import math

import jax
import jax.numpy as jnp
from jax.experimental import pallas as pl
from jax.experimental.pallas import tpu as pltpu


def _round_up(x, m):
    return (x + m - 1) // m * m


def _layer_norm(x, g, b, eps=1e-5):
    mu = jnp.mean(x, axis=-1, keepdims=True)
    xc = x - mu
    var = jnp.mean(xc * xc, axis=-1, keepdims=True)
    return xc * jax.lax.rsqrt(var + eps) * g + b


# --------------------------------------------------------------------------- #
# Kernel 1: all transformer layers.  grid = (L,), layer axis "arbitrary".
# --------------------------------------------------------------------------- #
def backbone_layers_kernel(x_ref, mask_ref,
                           ln1_g_ref, ln1_b_ref, wqkv_t_ref, bqkv_ref,
                           wo_t_ref, bo_ref,
                           ln2_g_ref, ln2_b_ref,
                           w1_t_ref, b1_ref, w2_t_ref, b2_ref,
                           lnf_g_ref, lnf_b_ref,
                           hidden_ref,
                           x_acc_ref,
                           *, batch, seq, num_heads):
    l = pl.program_id(0)
    M, E = x_ref.shape
    B, S, H = batch, seq, num_heads
    Dh = E // H
    scale = 1.0 / math.sqrt(Dh)

    # ---- residual-stream carry (VMEM scratch, persists across the L axis) ---
    # NOTE: relies on grid == (L,) with the layer axis sequential ("arbitrary").
    @pl.when(l == 0)
    def _():
        x_acc_ref[...] = x_ref[...]

    x = x_acc_ref[...]                                           # (M, E) f32

    # ---- attention sub-block (per-head lane-aligned slices, no swapaxes) ----
    xn = _layer_norm(x, ln1_g_ref[...], ln1_b_ref[...])
    qkv = jnp.dot(xn.astype(jnp.bfloat16), wqkv_t_ref[...],
                  preferred_element_type=jnp.float32) + bqkv_ref[...]  # (M,3E)
    qkv3 = qkv.reshape(B, S, 3 * E)        # splits leading dim only (S % 8==0)
    mask = mask_ref[...]                   # (S, S) additive causal mask, f32

    heads = []
    for h in range(H):                     # static unroll over heads
        lo = h * Dh
        q_h = qkv3[:, :, lo:lo + Dh].astype(jnp.bfloat16)             # (B,S,Dh)
        k_h = qkv3[:, :, E + lo:E + lo + Dh].astype(jnp.bfloat16)
        v_h = qkv3[:, :, 2 * E + lo:2 * E + lo + Dh].astype(jnp.bfloat16)
        s = jnp.einsum('bqd,bkd->bqk', q_h, k_h,
                       preferred_element_type=jnp.float32)            # (B,S,S)
        s = s * scale + mask[None, :, :]
        s = s - jnp.max(s, axis=-1, keepdims=True)
        p = jnp.exp(s)
        denom = jnp.sum(p, axis=-1, keepdims=True)                    # (B,S,1)
        o_h = jnp.einsum('bqk,bkd->bqd', p.astype(jnp.bfloat16), v_h,
                         preferred_element_type=jnp.float32)          # (B,S,Dh)
        # normalize the small (B,S,Dh) output, not the (B,S,S) probs; EUP vrcp
        heads.append(o_h * pl.reciprocal(denom, approx=True))
    # TODO(synk): flash-style KV-block tiling here for long S (v7x VMEM).
    o = jnp.concatenate(heads, axis=-1).reshape(M, E)                 # (M, E)

    attn_out = jnp.dot(o.astype(jnp.bfloat16), wo_t_ref[...],
                       preferred_element_type=jnp.float32) + bo_ref[...]
    x = x + attn_out                        # dropout == identity (eval mode)

    # ---- feed-forward sub-block ----------------------------------------------
    xn = _layer_norm(x, ln2_g_ref[...], ln2_b_ref[...])
    h1 = jnp.dot(xn.astype(jnp.bfloat16), w1_t_ref[...],
                 preferred_element_type=jnp.float32) + b1_ref[...]
    h1 = jnp.maximum(h1, 0.0)
    ff = jnp.dot(h1.astype(jnp.bfloat16), w2_t_ref[...],
                 preferred_element_type=jnp.float32) + b2_ref[...]
    x = x + ff

    x_acc_ref[...] = x

    # ---- finalize: final LayerNorm -> hidden_states --------------------------
    @pl.when(l == pl.num_programs(0) - 1)
    def _():
        hidden_ref[...] = _layer_norm(x, lnf_g_ref[...], lnf_b_ref[...])


# --------------------------------------------------------------------------- #
# Kernel 2: weight-tied LM head.  grid = (n_vocab_tiles, n_m_tiles); the vocab
# (weight) tile index is on the OUTER axis so each (E, TV) weight tile stays
# resident in VMEM across the inner M iterations and is streamed exactly once.
# --------------------------------------------------------------------------- #
def lm_head_kernel(hidden_ref, w_lm_ref, b_lm_ref, logits_ref):
    logits_ref[...] = (jnp.dot(hidden_ref[...], w_lm_ref[...],
                               preferred_element_type=jnp.float32)
                       + b_lm_ref[...])


def _lm_head_vocab_tiling(vocab_size):
    tv = 1024 if vocab_size >= 1024 else _round_up(vocab_size, 128)
    v_pad = _round_up(vocab_size, tv)
    return tv, v_pad


def prepare_params(params):
    """One-time weight prep: PyTorch (out,in) -> (in,out) transpose + bf16 cast,
    plus the tied / vocab-padded lm-head matrix.  Done OUTSIDE the per-call
    forward so XLA does not re-materialize transposed weight copies each call."""
    V, _E = params['tok_emb'].shape
    _tv, v_pad = _lm_head_vocab_tiling(V)

    def t_bf16(w):
        return jnp.swapaxes(w, -1, -2).astype(jnp.bfloat16)

    w_lm_t = params['tok_emb'].T.astype(jnp.bfloat16)     # weight tying
    b_lm = params['b_lm']
    if v_pad != V:
        w_lm_t = jnp.pad(w_lm_t, ((0, 0), (0, v_pad - V)))
        b_lm = jnp.pad(b_lm, ((0, 0), (0, v_pad - V)))

    return {
        'tok_emb_f32': params['tok_emb'],
        'pos_emb': params['pos_emb'],
        'wqkv_t': t_bf16(params['wqkv']), 'bqkv': params['bqkv'],
        'wo_t': t_bf16(params['wo']), 'bo': params['bo'],
        'w1_t': t_bf16(params['w1']), 'b1': params['b1'],
        'w2_t': t_bf16(params['w2']), 'b2': params['b2'],
        'ln1_g': params['ln1_g'], 'ln1_b': params['ln1_b'],
        'ln2_g': params['ln2_g'], 'ln2_b': params['ln2_b'],
        'lnf_g': params['lnf_g'], 'lnf_b': params['lnf_b'],
        'w_lm_t': w_lm_t, 'b_lm_pad': b_lm,
    }


@functools.partial(jax.jit, static_argnames=("num_heads",))
def pretrained_backbone_forward(idx, prep, *, num_heads):
    B, S = idx.shape
    V, E = prep['tok_emb_f32'].shape
    L = prep['wqkv_t'].shape[0]
    assert E % num_heads == 0
    # (B*S, E) <-> (B, S, E) reshapes inside the kernel stay layout-preserving
    # when S is a sublane multiple.
    assert S % 8 == 0
    M = B * S

    # --- glue: embedding gather + positional add, batch folded into M --------
    x = (prep['tok_emb_f32'][idx] + prep['pos_emb'][:S][None, :, :])
    x = x.astype(jnp.float32).reshape(M, E)

    # --- glue: additive causal mask, computed once (hoisted out of kernel) ---
    row = jax.lax.broadcasted_iota(jnp.int32, (S, S), 0)
    col = jax.lax.broadcasted_iota(jnp.int32, (S, S), 1)
    neg_mask = jnp.where(col > row, jnp.float32(-1e30), jnp.float32(0.0))

    layer_args = [prep['ln1_g'], prep['ln1_b'], prep['wqkv_t'], prep['bqkv'],
                  prep['wo_t'], prep['bo'], prep['ln2_g'], prep['ln2_b'],
                  prep['w1_t'], prep['b1'], prep['w2_t'], prep['b2']]
    final_args = [prep['lnf_g'], prep['lnf_b']]

    def per_layer_spec(arr):
        # Stream one layer's slice per grid step along the (arbitrary) L axis.
        return pl.BlockSpec((None,) + arr.shape[1:],
                            lambda l: (l,) + (0,) * (arr.ndim - 1))

    def shared_spec(arr):
        return pl.BlockSpec(arr.shape, lambda l: (0,) * arr.ndim)

    in_specs = ([pl.BlockSpec((M, E), lambda l: (0, 0)),
                 pl.BlockSpec((S, S), lambda l: (0, 0))]
                + [per_layer_spec(a) for a in layer_args]
                + [shared_spec(a) for a in final_args])

    hidden_flat = pl.pallas_call(
        functools.partial(backbone_layers_kernel,
                          batch=B, seq=S, num_heads=num_heads),
        grid=(L,),                                    # layer (carry) axis only
        in_specs=in_specs,
        out_specs=pl.BlockSpec((M, E), lambda l: (0, 0)),
        out_shape=jax.ShapeDtypeStruct((M, E), jnp.float32),
        scratch_shapes=[pltpu.VMEM((M, E), jnp.float32)],     # residual carry
        compiler_params=pltpu.CompilerParams(
            dimension_semantics=("arbitrary",),
            vmem_limit_bytes=40 * 1024 * 1024),        # fits v7x 64 MiB budget
    )(x, neg_mask, *layer_args, *final_args)

    # --- weight-tied lm head: vocab tile OUTER, hidden (M) tile inner --------
    TV, V_pad = _lm_head_vocab_tiling(V)
    if M <= 512:
        TM, M_pad = M, M
    else:
        TM = 256
        M_pad = _round_up(M, TM)
    n_vt, n_mt = V_pad // TV, M_pad // TM

    h_in = hidden_flat.astype(jnp.bfloat16)      # halves hidden re-streaming
    if M_pad != M:
        h_in = jnp.pad(h_in, ((0, M_pad - M), (0, 0)))

    # TODO(synk): on v7x, use pltpu.CORE_PARALLEL (or an explicit core_map TC
    # mesh) on the vocab-tile axis for real 2-TensorCore execution.
    logits_pad = pl.pallas_call(
        lm_head_kernel,
        grid=(n_vt, n_mt),
        in_specs=[pl.BlockSpec((TM, E), lambda v, m: (m, 0)),
                  pl.BlockSpec((E, TV), lambda v, m: (0, v)),   # resident/inner
                  pl.BlockSpec((1, TV), lambda v, m: (0, v))],
        out_specs=pl.BlockSpec((TM, TV), lambda v, m: (m, v)),
        out_shape=jax.ShapeDtypeStruct((M_pad, V_pad), jnp.float32),
        compiler_params=pltpu.CompilerParams(
            dimension_semantics=("parallel", "parallel"),
            vmem_limit_bytes=40 * 1024 * 1024),
    )(h_in, prep['w_lm_t'], prep['b_lm_pad'])

    logits = logits_pad[:M, :V].reshape(B, S, V)
    hidden = hidden_flat.reshape(B, S, E)
    return logits, hidden


def init_params(key, vocab_size, embed_dim, num_heads, num_layers, block_size):
    """Deterministic init mirroring PretrainedBackbone._init_weights."""
    E, L = embed_dim, num_layers

    def xavier(k, shape):
        fan_out, fan_in = shape[-2], shape[-1]
        limit = math.sqrt(6.0 / (fan_in + fan_out))
        return jax.random.uniform(k, shape, jnp.float32, -limit, limit)

    ks = jax.random.split(key, 2 + num_layers)
    k_tok, k_pos = jax.random.split(ks[0])
    p = {
        # embeddings: normal(0, 0.02); tok_emb is also the (tied) lm_head weight
        'tok_emb': 0.02 * jax.random.normal(k_tok, (vocab_size, E), jnp.float32),
        'pos_emb': 0.02 * jax.random.normal(k_pos, (block_size, E), jnp.float32),
    }

    wqkv, wo, w1, w2 = [], [], [], []
    for l in range(L):
        k1, k2, k3, k4 = jax.random.split(ks[1 + l], 4)
        wqkv.append(xavier(k1, (3 * E, E)))      # attn.in_proj_weight
        wo.append(xavier(k2, (E, E)))            # attn.out_proj.weight
        w1.append(xavier(k3, (4 * E, E)))        # ffn[0].weight
        w2.append(xavier(k4, (E, 4 * E)))        # ffn[2].weight
    p['wqkv'] = jnp.stack(wqkv)
    p['wo'] = jnp.stack(wo)
    p['w1'] = jnp.stack(w1)
    p['w2'] = jnp.stack(w2)

    # biases -> zeros, LayerNorm weights keep default ones / zeros
    p['bqkv'] = jnp.zeros((L, 1, 3 * E), jnp.float32)
    p['bo'] = jnp.zeros((L, 1, E), jnp.float32)
    p['b1'] = jnp.zeros((L, 1, 4 * E), jnp.float32)
    p['b2'] = jnp.zeros((L, 1, E), jnp.float32)
    p['ln1_g'] = jnp.ones((L, 1, E), jnp.float32)
    p['ln1_b'] = jnp.zeros((L, 1, E), jnp.float32)
    p['ln2_g'] = jnp.ones((L, 1, E), jnp.float32)
    p['ln2_b'] = jnp.zeros((L, 1, E), jnp.float32)
    p['lnf_g'] = jnp.ones((1, E), jnp.float32)
    p['lnf_b'] = jnp.zeros((1, E), jnp.float32)
    p['b_lm'] = jnp.zeros((1, vocab_size), jnp.float32)
    return p


def reference_forward(idx, params, *, num_heads):
    """Plain-JAX f32 reference with identical semantics (for a sanity check)."""
    W_emb, W_pos = params['tok_emb'], params['pos_emb']
    V, E = W_emb.shape
    L = params['wqkv'].shape[0]
    B, S = idx.shape
    H = num_heads
    Dh = E // H

    def ln(z, g, b, eps=1e-5):
        mu = jnp.mean(z, -1, keepdims=True)
        var = jnp.mean((z - mu) ** 2, -1, keepdims=True)
        return (z - mu) * jax.lax.rsqrt(var + eps) * g + b

    x = W_emb[idx] + W_pos[:S][None]
    mask = jnp.triu(jnp.ones((S, S), bool), 1)
    for l in range(L):
        xn = ln(x, params['ln1_g'][l], params['ln1_b'][l])
        qkv = xn @ params['wqkv'][l].T + params['bqkv'][l]
        q, k, v = qkv[..., :E], qkv[..., E:2 * E], qkv[..., 2 * E:]

        def split(t):
            return t.reshape(B, S, H, Dh).transpose(0, 2, 1, 3)

        q, k, v = split(q) / math.sqrt(Dh), split(k), split(v)
        s = jnp.einsum('bhqd,bhkd->bhqk', q, k)
        s = jnp.where(mask, -jnp.inf, s)
        p = jax.nn.softmax(s, axis=-1)
        o = jnp.einsum('bhqk,bhkd->bhqd', p, v)
        o = o.transpose(0, 2, 1, 3).reshape(B, S, E)
        x = x + o @ params['wo'][l].T + params['bo'][l]
        xn = ln(x, params['ln2_g'][l], params['ln2_b'][l])
        h1 = jax.nn.relu(xn @ params['w1'][l].T + params['b1'][l])
        x = x + h1 @ params['w2'][l].T + params['b2'][l]
    hidden = ln(x, params['lnf_g'], params['lnf_b'])
    logits = hidden @ W_emb.T + params['b_lm']
    return logits, hidden


if __name__ == "__main__":
    # Small but (8,128)-friendly shapes: E, Dh, V multiples of 128, S multiple of 8.
    vocab_size, embed_dim, num_heads, num_layers, block_size = 256, 256, 2, 2, 16
    B, S = 2, 8

    key = jax.random.PRNGKey(0)
    k_params, k_idx = jax.random.split(key)
    params = init_params(k_params, vocab_size, embed_dim, num_heads,
                         num_layers, block_size)
    idx = jax.random.randint(k_idx, (B, S), 0, vocab_size, dtype=jnp.int32)

    prep = prepare_params(params)        # one-time transpose / bf16 / padding
    jax.block_until_ready(prep)

    logits, hidden = pretrained_backbone_forward(idx, prep, num_heads=num_heads)
    jax.block_until_ready((logits, hidden))

    assert logits.shape == (B, S, vocab_size)
    assert hidden.shape == (B, S, embed_dim)
    assert bool(jnp.all(jnp.isfinite(logits))) and bool(jnp.all(jnp.isfinite(hidden)))

    # Numerical sanity check vs. plain-JAX reference (loose tol: bf16 matmuls).
    ref_logits, ref_hidden = reference_forward(idx, params, num_heads=num_heads)
    assert float(jnp.max(jnp.abs(logits - ref_logits))) < 0.25
    assert float(jnp.max(jnp.abs(hidden - ref_hidden))) < 0.25

    print("KERNEL_OK")
</pallas_src>

<mosaic_0001>
module attributes {stable_mosaic.version = 11 : i64} {
  func.func @lm_head_kernel(%arg0: i32, %arg1: i32, %arg2: memref<16x256xbf16, #tpu.memory_space<vmem>>, %arg3: memref<256x256xbf16, #tpu.memory_space<vmem>>, %arg4: memref<1x256xf32, #tpu.memory_space<vmem>>, %arg5: memref<16x256xf32, #tpu.memory_space<vmem>>) attributes {dimension_semantics = [#tpu.dimension_semantics<parallel>, #tpu.dimension_semantics<parallel>], iteration_bounds = array<i64: 1, 1>, scalar_prefetch = 0 : i64, scratch_operands = 0 : i64, tpu.core_type = #tpu.core_type<tc>, window_params = [{transform_indices = @transform_0, window_bounds = array<i64: 16, 256>}, {transform_indices = @transform_1, window_bounds = array<i64: 256, 256>}, {transform_indices = @transform_2, window_bounds = array<i64: 1, 256>}, {transform_indices = @transform_3, window_bounds = array<i64: 16, 256>}]} {
    %c0 = arith.constant 0 : index
    %c0_0 = arith.constant 0 : index
    %0 = vector.load %arg2[%c0, %c0_0] : memref<16x256xbf16, #tpu.memory_space<vmem>>, vector<16x256xbf16>
    %c0_1 = arith.constant 0 : index
    %c0_2 = arith.constant 0 : index
    %1 = vector.load %arg3[%c0_1, %c0_2] : memref<256x256xbf16, #tpu.memory_space<vmem>>, vector<256x256xbf16>
    %cst = arith.constant dense<0.000000e+00> : vector<16x256xf32>
    %2 = tpu.matmul %0, %1, %cst {dimension_numbers = #tpu.dot_dimension_numbers<[1], [0], [0], [1], [0, 0, 1, 1], [], []>} : vector<16x256xbf16>, vector<256x256xbf16>, vector<16x256xf32> -> vector<16x256xf32>
    %c0_3 = arith.constant 0 : index
    %c0_4 = arith.constant 0 : index
    %3 = vector.load %arg4[%c0_3, %c0_4] : memref<1x256xf32, #tpu.memory_space<vmem>>, vector<1x256xf32>
    %4 = vector.broadcast %3 : vector<1x256xf32> to vector<16x256xf32>
    %5 = arith.addf %2, %4 : vector<16x256xf32>
    %c0_5 = arith.constant 0 : index
    %c0_6 = arith.constant 0 : index
    %6 = vector.load %arg5[%c0_5, %c0_6] : memref<16x256xf32, #tpu.memory_space<vmem>>, vector<16x256xf32>
    tpu.vector_store %arg5[%c0_5, %c0_6], %5 {strides = array<i32>} : memref<16x256xf32, #tpu.memory_space<vmem>>, vector<16x256xf32>,
    return
  }
  func.func @transform_0(%arg0: i32, %arg1: i32) -> (i32, i32) {
    %c0_i32 = arith.constant 0 : i32
    %c0_i32_0 = arith.constant 0 : i32
    return %arg1, %c0_i32 : i32, i32
  }
  func.func @transform_1(%arg0: i32, %arg1: i32) -> (i32, i32) {
    %c0_i32 = arith.constant 0 : i32
    %c0_i32_0 = arith.constant 0 : i32
    return %c0_i32, %arg0 : i32, i32
  }
  func.func @transform_2(%arg0: i32, %arg1: i32) -> (i32, i32) {
    %c0_i32 = arith.constant 0 : i32
    %c0_i32_0 = arith.constant 0 : i32
    return %c0_i32, %arg0 : i32, i32
  }
  func.func @transform_3(%arg0: i32, %arg1: i32) -> (i32, i32) {
    %c0_i32 = arith.constant 0 : i32
    return %arg1, %arg0 : i32, i32
  }
}

module attributes {stable_mosaic.version = 11 : i64} {
  func.func @backbone_layers_kernel(%arg0: i32, %arg1: memref<16x256xf32, #tpu.memory_space<vmem>>, %arg2: memref<8x8xf32, #tpu.memory_space<vmem>>, %arg3: memref<1x1x256xf32, #tpu.memory_space<vmem>>, %arg4: memref<1x1x256xf32, #tpu.memory_space<vmem>>, %arg5: memref<1x256x768xbf16, #tpu.memory_space<vmem>>, %arg6: memref<1x1x768xf32, #tpu.memory_space<vmem>>, %arg7: memref<1x256x256xbf16, #tpu.memory_space<vmem>>, %arg8: memref<1x1x256xf32, #tpu.memory_space<vmem>>, %arg9: memref<1x1x256xf32, #tpu.memory_space<vmem>>, %arg10: memref<1x1x256xf32, #tpu.memory_space<vmem>>, %arg11: memref<1x256x1024xbf16, #tpu.memory_space<vmem>>, %arg12: memref<1x1x1024xf32, #tpu.memory_space<vmem>>, %arg13: memref<1x1024x256xbf16, #tpu.memory_space<vmem>>, %arg14: memref<1x1x256xf32, #tpu.memory_space<vmem>>, %arg15: memref<1x256xf32, #tpu.memory_space<vmem>>, %arg16: memref<1x256xf32, #tpu.memory_space<vmem>>, %arg17: memref<16x256xf32, #tpu.memory_space<vmem>>, %arg18: memref<16x256xf32, #tpu.memory_space<vmem>>) attributes {dimension_semantics = [#tpu.dimension_semantics<arbitrary>], iteration_bounds = array<i64: 2>, scalar_prefetch = 0 : i64, scratch_operands = 1 : i64, tpu.core_type = #tpu.core_type<tc>, window_params = [{pipeline_mode = #tpu.pipeline_mode<synchronous>, transform_indices = @transform_0, window_bounds = array<i64: 16, 256>}, {pipeline_mode = #tpu.pipeline_mode<synchronous>, transform_indices = @transform_1, window_bounds = array<i64: 8, 8>}, {transform_indices = @transform_2, window_bounds = array<i64: 1, 1, 256>}, {transform_indices = @transform_3, window_bounds = array<i64: 1, 1, 256>}, {transform_indices = @transform_4, window_bounds = array<i64: 1, 256, 768>}, {transform_indices = @transform_5, window_bounds = array<i64: 1, 1, 768>}, {transform_indices = @transform_6, window_bounds = array<i64: 1, 256, 256>}, {transform_indices = @transform_7, window_bounds = array<i64: 1, 1, 256>}, {transform_indices = @transform_8, window_bounds = array<i64: 1, 1, 256>}, {transform_indices = @transform_9, window_bounds = array<i64: 1, 1, 256>}, {transform_indices = @transform_10, window_bounds = array<i64: 1, 256, 1024>}, {transform_indices = @transform_11, window_bounds = array<i64: 1, 1, 1024>}, {transform_indices = @transform_12, window_bounds = array<i64: 1, 1024, 256>}, {transform_indices = @transform_13, window_bounds = array<i64: 1, 1, 256>}, {pipeline_mode = #tpu.pipeline_mode<synchronous>, transform_indices = @transform_14, window_bounds = array<i64: 1, 256>}, {pipeline_mode = #tpu.pipeline_mode<synchronous>, transform_indices = @transform_15, window_bounds = array<i64: 1, 256>}, {pipeline_mode = #tpu.pipeline_mode<synchronous>, transform_indices = @transform_16, window_bounds = array<i64: 16, 256>}]} {
    %c0_i32 = arith.constant 0 : i32
    %0 = arith.cmpi eq, %arg0, %c0_i32 : i32
    %1 = arith.extui %0 : i1 to i32
    %c0_i32_0 = arith.constant 0 : i32
    %2 = arith.cmpi ne, %1, %c0_i32_0 : i32
    scf.if %2 {
      %c0_67 = arith.constant 0 : index
      %c0_68 = arith.constant 0 : index
      %144 = vector.load %arg1[%c0_67, %c0_68] : memref<16x256xf32, #tpu.memory_space<vmem>>, vector<16x256xf32>
      %c0_69 = arith.constant 0 : index
      %c0_70 = arith.constant 0 : index
      %145 = vector.load %arg18[%c0_69, %c0_70] : memref<16x256xf32, #tpu.memory_space<vmem>>, vector<16x256xf32>
      tpu.vector_store %arg18[%c0_69, %c0_70], %144 {strides = array<i32>} : memref<16x256xf32, #tpu.memory_space<vmem>>, vector<16x256xf32>,
    } else {
    }
    %c0 = arith.constant 0 : index
    %c0_1 = arith.constant 0 : index
    %3 = vector.load %arg18[%c0, %c0_1] : memref<16x256xf32, #tpu.memory_space<vmem>>, vector<16x256xf32>
    %c0_2 = arith.constant 0 : index
    %c0_3 = arith.constant 0 : index
    %c0_4 = arith.constant 0 : index
    %4 = vector.load %arg3[%c0_2, %c0_3, %c0_4] : memref<1x1x256xf32, #tpu.memory_space<vmem>>, vector<1x1x256xf32>
    %5 = vector.shape_cast %4 : vector<1x1x256xf32> to vector<1x256xf32>
    %c0_5 = arith.constant 0 : index
    %c0_6 = arith.constant 0 : index
    %c0_7 = arith.constant 0 : index
    %6 = vector.load %arg4[%c0_5, %c0_6, %c0_7] : memref<1x1x256xf32, #tpu.memory_space<vmem>>, vector<1x1x256xf32>
    %7 = vector.shape_cast %6 : vector<1x1x256xf32> to vector<1x256xf32>
    %cst = arith.constant dense<0.000000e+00> : vector<16xf32>
    %8 = vector.multi_reduction <add>, %3, %cst [1] : vector<16x256xf32> to vector<16xf32>
    %9 = vector.shape_cast %8 : vector<16xf32> to vector<16x1xf32>
    %cst_8 = arith.constant 2.560000e+02 : f32
    %10 = vector.broadcast %cst_8 : f32 to vector<16x1xf32>
    %11 = arith.divf %9, %10 : vector<16x1xf32>
    %12 = vector.broadcast %11 : vector<16x1xf32> to vector<16x256xf32>
    %13 = arith.subf %3, %12 : vector<16x256xf32>
    %14 = arith.mulf %13, %13 : vector<16x256xf32>
    %cst_9 = arith.constant dense<0.000000e+00> : vector<16xf32>
    %15 = vector.multi_reduction <add>, %14, %cst_9 [1] : vector<16x256xf32> to vector<16xf32>
    %16 = vector.shape_cast %15 : vector<16xf32> to vector<16x1xf32>
    %cst_10 = arith.constant 2.560000e+02 : f32
    %17 = vector.broadcast %cst_10 : f32 to vector<16x1xf32>
    %18 = arith.divf %16, %17 : vector<16x1xf32>
    %cst_11 = arith.constant 9.99999974E-6 : f32
    %19 = vector.broadcast %cst_11 : f32 to vector<16x1xf32>
    %20 = arith.addf %18, %19 : vector<16x1xf32>
    %21 = math.rsqrt %20 : vector<16x1xf32>
    %22 = vector.broadcast %21 : vector<16x1xf32> to vector<16x256xf32>
    %23 = arith.mulf %13, %22 : vector<16x256xf32>
    %24 = vector.broadcast %5 : vector<1x256xf32> to vector<16x256xf32>
    %25 = arith.mulf %23, %24 : vector<16x256xf32>
    %26 = vector.broadcast %7 : vector<1x256xf32> to vector<16x256xf32>
    %27 = arith.addf %25, %26 : vector<16x256xf32>
    %28 = arith.truncf %27 : vector<16x256xf32> to vector<16x256xbf16>
    %c0_12 = arith.constant 0 : index
    %c0_13 = arith.constant 0 : index
    %c0_14 = arith.constant 0 : index
    %29 = vector.load %arg5[%c0_12, %c0_13, %c0_14] : memref<1x256x768xbf16, #tpu.memory_space<vmem>>, vector<1x256x768xbf16>
    %30 = vector.shape_cast %29 : vector<1x256x768xbf16> to vector<256x768xbf16>
    %cst_15 = arith.constant dense<0.000000e+00> : vector<16x768xf32>
    %31 = tpu.matmul %28, %30, %cst_15 {dimension_numbers = #tpu.dot_dimension_numbers<[1], [0], [0], [1], [0, 0, 1, 1], [], []>} : vector<16x256xbf16>, vector<256x768xbf16>, vector<16x768xf32> -> vector<16x768xf32>
    %c0_16 = arith.constant 0 : index
    %c0_17 = arith.constant 0 : index
    %c0_18 = arith.constant 0 : index
    %32 = vector.load %arg6[%c0_16, %c0_17, %c0_18] : memref<1x1x768xf32, #tpu.memory_space<vmem>>, vector<1x1x768xf32>
    %33 = vector.shape_cast %32 : vector<1x1x768xf32> to vector<1x768xf32>
    %34 = vector.broadcast %33 : vector<1x768xf32> to vector<16x768xf32>
    %35 = arith.addf %31, %34 : vector<16x768xf32>
    %36 = vector.shape_cast %35 : vector<16x768xf32> to vector<2x8x768xf32>
    %c0_19 = arith.constant 0 : index
    %c0_20 = arith.constant 0 : index
    %37 = vector.load %arg2[%c0_19, %c0_20] : memref<8x8xf32, #tpu.memory_space<vmem>>, vector<8x8xf32>
    %38 = vector.extract_strided_slice %36 {offsets = [0, 0, 0], sizes = [2, 8, 128], strides = [1, 1, 1]} : vector<2x8x768xf32> to vector<2x8x128xf32>
    %39 = arith.truncf %38 : vector<2x8x128xf32> to vector<2x8x128xbf16>
    %40 = vector.extract_strided_slice %36 {offsets = [0, 0, 256], sizes = [2, 8, 128], strides = [1, 1, 1]} : vector<2x8x768xf32> to vector<2x8x128xf32>
    %41 = arith.truncf %40 : vector<2x8x128xf32> to vector<2x8x128xbf16>
    %42 = vector.extract_strided_slice %36 {offsets = [0, 0, 512], sizes = [2, 8, 128], strides = [1, 1, 1]} : vector<2x8x768xf32> to vector<2x8x128xf32>
    %43 = arith.truncf %42 : vector<2x8x128xf32> to vector<2x8x128xbf16>
    "tpu.trace_start"() <{level = 10 : i32, message = "bqd,bkd->bqk"}> : () -> ()
    %cst_21 = arith.constant dense<0.000000e+00> : vector<2x8x8xf32>
    %44 = tpu.matmul %39, %41, %cst_21 {dimension_numbers = #tpu.dot_dimension_numbers<[2], [2], [1], [1], [0, 0, 0, 1, 1, 1], [0], [0]>} : vector<2x8x128xbf16>, vector<2x8x128xbf16>, vector<2x8x8xf32> -> vector<2x8x8xf32>
    "tpu.trace_stop"() : () -> ()
    %cst_22 = arith.constant 0.0883883461 : f32
    %45 = vector.broadcast %cst_22 : f32 to vector<2x8x8xf32>
    %46 = arith.mulf %44, %45 : vector<2x8x8xf32>
    %47 = vector.shape_cast %37 : vector<8x8xf32> to vector<1x8x8xf32>
    %48 = vector.broadcast %47 : vector<1x8x8xf32> to vector<2x8x8xf32>
    %49 = arith.addf %46, %48 : vector<2x8x8xf32>
    %cst_23 = arith.constant dense<0xFF800000> : vector<2x8xf32>
    %50 = vector.multi_reduction <maximumf>, %49, %cst_23 [2] : vector<2x8x8xf32> to vector<2x8xf32>
    %51 = vector.shape_cast %50 : vector<2x8xf32> to vector<2x8x1xf32>
    %52 = vector.broadcast %51 : vector<2x8x1xf32> to vector<2x8x8xf32>
    %53 = arith.subf %49, %52 : vector<2x8x8xf32>
    %54 = math.exp %53 : vector<2x8x8xf32>
    %cst_24 = arith.constant dense<0.000000e+00> : vector<2x8xf32>
    %55 = vector.multi_reduction <add>, %54, %cst_24 [2] : vector<2x8x8xf32> to vector<2x8xf32>
    %56 = vector.shape_cast %55 : vector<2x8xf32> to vector<2x8x1xf32>
    %57 = arith.truncf %54 : vector<2x8x8xf32> to vector<2x8x8xbf16>
    "tpu.trace_start"() <{level = 10 : i32, message = "bqk,bkd->bqd"}> : () -> ()
    %cst_25 = arith.constant dense<0.000000e+00> : vector<2x8x128xf32>
    %58 = tpu.matmul %57, %43, %cst_25 {dimension_numbers = #tpu.dot_dimension_numbers<[2], [1], [1], [2], [0, 0, 0, 1, 1, 2], [0], [0]>} : vector<2x8x8xbf16>, vector<2x8x128xbf16>, vector<2x8x128xf32> -> vector<2x8x128xf32>
    "tpu.trace_stop"() : () -> ()
    %59 = tpu.reciprocal %56 {approx = true} : vector<2x8x1xf32> -> vector<2x8x1xf32>
    %60 = vector.broadcast %59 : vector<2x8x1xf32> to vector<2x8x128xf32>
    %61 = arith.mulf %58, %60 : vector<2x8x128xf32>
    %62 = vector.extract_strided_slice %36 {offsets = [0, 0, 128], sizes = [2, 8, 128], strides = [1, 1, 1]} : vector<2x8x768xf32> to vector<2x8x128xf32>
    %63 = arith.truncf %62 : vector<2x8x128xf32> to vector<2x8x128xbf16>
    %64 = vector.extract_strided_slice %36 {offsets = [0, 0, 384], sizes = [2, 8, 128], strides = [1, 1, 1]} : vector<2x8x768xf32> to vector<2x8x128xf32>
    %65 = arith.truncf %64 : vector<2x8x128xf32> to vector<2x8x128xbf16>
    %66 = vector.extract_strided_slice %36 {offsets = [0, 0, 640], sizes = [2, 8, 128], strides = [1, 1, 1]} : vector<2x8x768xf32> to vector<2x8x128xf32>
    %67 = arith.truncf %66 : vector<2x8x128xf32> to vector<2x8x128xbf16>
    "tpu.trace_start"() <{level = 10 : i32, message = "bqd,bkd->bqk"}> : () -> ()
    %cst_26 = arith.constant dense<0.000000e+00> : vector<2x8x8xf32>
    %68 = tpu.matmul %63, %65, %cst_26 {dimension_numbers = #tpu.dot_dimension_numbers<[2], [2], [1], [1], [0, 0, 0, 1, 1, 1], [0], [0]>} : vector<2x8x128xbf16>, vector<2x8x128xbf16>, vector<2x8x8xf32> -> vector<2x8x8xf32>
    "tpu.trace_stop"() : () -> ()
    %cst_27 = arith.constant 0.0883883461 : f32
    %69 = vector.broadcast %cst_27 : f32 to vector<2x8x8xf32>
    %70 = arith.mulf %68, %69 : vector<2x8x8xf32>
    %71 = vector.shape_cast %37 : vector<8x8xf32> to vector<1x8x8xf32>
    %72 = vector.broadcast %71 : vector<1x8x8xf32> to vector<2x8x8xf32>
    %73 = arith.addf %70, %72 : vector<2x8x8xf32>
    %cst_28 = arith.constant dense<0xFF800000> : vector<2x8xf32>
    %74 = vector.multi_reduction <maximumf>, %73, %cst_28 [2] : vector<2x8x8xf32> to vector<2x8xf32>
    %75 = vector.shape_cast %74 : vector<2x8xf32> to vector<2x8x1xf32>
    %76 = vector.broadcast %75 : vector<2x8x1xf32> to vector<2x8x8xf32>
    %77 = arith.subf %73, %76 : vector<2x8x8xf32>
    %78 = math.exp %77 : vector<2x8x8xf32>
    %cst_29 = arith.constant dense<0.000000e+00> : vector<2x8xf32>
    %79 = vector.multi_reduction <add>, %78, %cst_29 [2] : vector<2x8x8xf32> to vector<2x8xf32>
    %80 = vector.shape_cast %79 : vector<2x8xf32> to vector<2x8x1xf32>
    %81 = arith.truncf %78 : vector<2x8x8xf32> to vector<2x8x8xbf16>
    "tpu.trace_start"() <{level = 10 : i32, message = "bqk,bkd->bqd"}> : () -> ()
    %cst_30 = arith.constant dense<0.000000e+00> : vector<2x8x128xf32>
    %82 = tpu.matmul %81, %67, %cst_30 {dimension_numbers = #tpu.dot_dimension_numbers<[2], [1], [1], [2], [0, 0, 0, 1, 1, 2], [0], [0]>} : vector<2x8x8xbf16>, vector<2x8x128xbf16>, vector<2x8x128xf32> -> vector<2x8x128xf32>
    "tpu.trace_stop"() : () -> ()
    %83 = tpu.reciprocal %80 {approx = true} : vector<2x8x1xf32> -> vector<2x8x1xf32>
    %84 = vector.broadcast %83 : vector<2x8x1xf32> to vector<2x8x128xf32>
    %85 = arith.mulf %82, %84 : vector<2x8x128xf32>
    %86 = tpu.concatenate %61, %85 in 2 : vector<2x8x128xf32>, vector<2x8x128xf32> -> vector<2x8x256xf32>
    %87 = vector.shape_cast %86 : vector<2x8x256xf32> to vector<16x256xf32>
    %88 = arith.truncf %87 : vector<16x256xf32> to vector<16x256xbf16>
    %c0_31 = arith.constant 0 : index
    %c0_32 = arith.constant 0 : index
    %c0_33 = arith.constant 0 : index
    %89 = vector.load %arg7[%c0_31, %c0_32, %c0_33] : memref<1x256x256xbf16, #tpu.memory_space<vmem>>, vector<1x256x256xbf16>
    %90 = vector.shape_cast %89 : vector<1x256x256xbf16> to vector<256x256xbf16>
    %cst_34 = arith.constant dense<0.000000e+00> : vector<16x256xf32>
    %91 = tpu.matmul %88, %90, %cst_34 {dimension_numbers = #tpu.dot_dimension_numbers<[1], [0], [0], [1], [0, 0, 1, 1], [], []>} : vector<16x256xbf16>, vector<256x256xbf16>, vector<16x256xf32> -> vector<16x256xf32>
    %c0_35 = arith.constant 0 : index
    %c0_36 = arith.constant 0 : index
    %c0_37 = arith.constant 0 : index
    %92 = vector.load %arg8[%c0_35, %c0_36, %c0_37] : memref<1x1x256xf32, #tpu.memory_space<vmem>>, vector<1x1x256xf32>
    %93 = vector.shape_cast %92 : vector<1x1x256xf32> to vector<1x256xf32>
    %94 = vector.broadcast %93 : vector<1x256xf32> to vector<16x256xf32>
    %95 = arith.addf %91, %94 : vector<16x256xf32>
    %96 = arith.addf %3, %95 : vector<16x256xf32>
    %c0_38 = arith.constant 0 : index
    %c0_39 = arith.constant 0 : index
    %c0_40 = arith.constant 0 : index
    %97 = vector.load %arg9[%c0_38, %c0_39, %c0_40] : memref<1x1x256xf32, #tpu.memory_space<vmem>>, vector<1x1x256xf32>
    %98 = vector.shape_cast %97 : vector<1x1x256xf32> to vector<1x256xf32>
    %c0_41 = arith.constant 0 : index
    %c0_42 = arith.constant 0 : index
    %c0_43 = arith.constant 0 : index
    %99 = vector.load %arg10[%c0_41, %c0_42, %c0_43] : memref<1x1x256xf32, #tpu.memory_space<vmem>>, vector<1x1x256xf32>
    %100 = vector.shape_cast %99 : vector<1x1x256xf32> to vector<1x256xf32>
    %cst_44 = arith.constant dense<0.000000e+00> : vector<16xf32>
    %101 = vector.multi_reduction <add>, %96, %cst_44 [1] : vector<16x256xf32> to vector<16xf32>
    %102 = vector.shape_cast %101 : vector<16xf32> to vector<16x1xf32>
    %cst_45 = arith.constant 2.560000e+02 : f32
    %103 = vector.broadcast %cst_45 : f32 to vector<16x1xf32>
    %104 = arith.divf %102, %103 : vector<16x1xf32>
    %105 = vector.broadcast %104 : vector<16x1xf32> to vector<16x256xf32>
    %106 = arith.subf %96, %105 : vector<16x256xf32>
    %107 = arith.mulf %106, %106 : vector<16x256xf32>
    %cst_46 = arith.constant dense<0.000000e+00> : vector<16xf32>
    %108 = vector.multi_reduction <add>, %107, %cst_46 [1] : vector<16x256xf32> to vector<16xf32>
    %109 = vector.shape_cast %108 : vector<16xf32> to vector<16x1xf32>
    %cst_47 = arith.constant 2.560000e+02 : f32
    %110 = vector.broadcast %cst_47 : f32 to vector<16x1xf32>
    %111 = arith.divf %109, %110 : vector<16x1xf32>
    %cst_48 = arith.constant 9.99999974E-6 : f32
    %112 = vector.broadcast %cst_48 : f32 to vector<16x1xf32>
    %113 = arith.addf %111, %112 : vector<16x1xf32>
    %114 = math.rsqrt %113 : vector<16x1xf32>
    %115 = vector.broadcast %114 : vector<16x1xf32> to vector<16x256xf32>
    %116 = arith.mulf %106, %115 : vector<16x256xf32>
    %117 = vector.broadcast %98 : vector<1x256xf32> to vector<16x256xf32>
    %118 = arith.mulf %116, %117 : vector<16x256xf32>
    %119 = vector.broadcast %100 : vector<1x256xf32> to vector<16x256xf32>
    %120 = arith.addf %118, %119 : vector<16x256xf32>
    %121 = arith.truncf %120 : vector<16x256xf32> to vector<16x256xbf16>
    %c0_49 = arith.constant 0 : index
    %c0_50 = arith.constant 0 : index
    %c0_51 = arith.constant 0 : index
    %122 = vector.load %arg11[%c0_49, %c0_50, %c0_51] : memref<1x256x1024xbf16, #tpu.memory_space<vmem>>, vector<1x256x1024xbf16>
    %123 = vector.shape_cast %122 : vector<1x256x1024xbf16> to vector<256x1024xbf16>
    %cst_52 = arith.constant dense<0.000000e+00> : vector<16x1024xf32>
    %124 = tpu.matmul %121, %123, %cst_52 {dimension_numbers = #tpu.dot_dimension_numbers<[1], [0], [0], [1], [0, 0, 1, 1], [], []>} : vector<16x256xbf16>, vector<256x1024xbf16>, vector<16x1024xf32> -> vector<16x1024xf32>
    %c0_53 = arith.constant 0 : index
    %c0_54 = arith.constant 0 : index
    %c0_55 = arith.constant 0 : index
    %125 = vector.load %arg12[%c0_53, %c0_54, %c0_55] : memref<1x1x1024xf32, #tpu.memory_space<vmem>>, vector<1x1x1024xf32>
    %126 = vector.shape_cast %125 : vector<1x1x1024xf32> to vector<1x1024xf32>
    %127 = vector.broadcast %126 : vector<1x1024xf32> to vector<16x1024xf32>
    %128 = arith.addf %124, %127 : vector<16x1024xf32>
    %cst_56 = arith.constant 0.000000e+00 : f32
    %129 = vector.broadcast %cst_56 : f32 to vector<16x1024xf32>
    %130 = arith.maximumf %128, %129 : vector<16x1024xf32>
    %131 = arith.truncf %130 : vector<16x1024xf32> to vector<16x1024xbf16>
    %c0_57 = arith.constant 0 : index
    %c0_58 = arith.constant 0 : index
    %c0_59 = arith.constant 0 : index
    %132 = vector.load %arg13[%c0_57, %c0_58, %c0_59] : memref<1x1024x256xbf16, #tpu.memory_space<vmem>>, vector<1x1024x256xbf16>
    %133 = vector.shape_cast %132 : vector<1x1024x256xbf16> to vector<1024x256xbf16>
    %cst_60 = arith.constant dense<0.000000e+00> : vector<16x256xf32>
    %134 = tpu.matmul %131, %133, %cst_60 {dimension_numbers = #tpu.dot_dimension_numbers<[1], [0], [0], [1], [0, 0, 1, 1], [], []>} : vector<16x1024xbf16>, vector<1024x256xbf16>, vector<16x256xf32> -> vector<16x256xf32>
    %c0_61 = arith.constant 0 : index
    %c0_62 = arith.constant 0 : index
    %c0_63 = arith.constant 0 : index
    %135 = vector.load %arg14[%c0_61, %c0_62, %c0_63] : memref<1x1x256xf32, #tpu.memory_space<vmem>>, vector<1x1x256xf32>
    %136 = vector.shape_cast %135 : vector<1x1x256xf32> to vector<1x256xf32>
    %137 = vector.broadcast %136 : vector<1x256xf32> to vector<16x256xf32>
    %138 = arith.addf %134, %137 : vector<16x256xf32>
    %139 = arith.addf %96, %138 : vector<16x256xf32>
    %c0_64 = arith.constant 0 : index
    %c0_65 = arith.constant 0 : index
    %140 = vector.load %arg18[%c0_64, %c0_65] : memref<16x256xf32, #tpu.memory_space<vmem>>, vector<16x256xf32>
    tpu.vector_store %arg18[%c0_64, %c0_65], %139 {strides = array<i32>} : memref<16x256xf32, #tpu.memory_space<vmem>>, vector<16x256xf32>,
    %c1_i32 = arith.constant 1 : i32
    %141 = arith.cmpi eq, %arg0, %c1_i32 : i32
    %142 = arith.extui %141 : i1 to i32
    %c0_i32_66 = arith.constant 0 : i32
    %143 = arith.cmpi ne, %142, %c0_i32_66 : i32
    scf.if %143 {
      %c0_67 = arith.constant 0 : index
      %c0_68 = arith.constant 0 : index
      %144 = vector.load %arg15[%c0_67, %c0_68] : memref<1x256xf32, #tpu.memory_space<vmem>>, vector<1x256xf32>
      %c0_69 = arith.constant 0 : index
      %c0_70 = arith.constant 0 : index
      %145 = vector.load %arg16[%c0_69, %c0_70] : memref<1x256xf32, #tpu.memory_space<vmem>>, vector<1x256xf32>
      %cst_71 = arith.constant dense<0.000000e+00> : vector<16xf32>
      %146 = vector.multi_reduction <add>, %139, %cst_71 [1] : vector<16x256xf32> to vector<16xf32>
      %147 = vector.shape_cast %146 : vector<16xf32> to vector<16x1xf32>
      %cst_72 = arith.constant 2.560000e+02 : f32
      %148 = vector.broadcast %cst_72 : f32 to vector<16x1xf32>
      %149 = arith.divf %147, %148 : vector<16x1xf32>
      %150 = vector.broadcast %149 : vector<16x1xf32> to vector<16x256xf32>
      %151 = arith.subf %139, %150 : vector<16x256xf32>
      %152 = arith.mulf %151, %151 : vector<16x256xf32>
      %cst_73 = arith.constant dense<0.000000e+00> : vector<16xf32>
      %153 = vector.multi_reduction <add>, %152, %cst_73 [1] : vector<16x256xf32> to vector<16xf32>
      %154 = vector.shape_cast %153 : vector<16xf32> to vector<16x1xf32>
      %cst_74 = arith.constant 2.560000e+02 : f32
      %155 = vector.broadcast %cst_74 : f32 to vector<16x1xf32>
      %156 = arith.divf %154, %155 : vector<16x1xf32>
      %cst_75 = arith.constant 9.99999974E-6 : f32
      %157 = vector.broadcast %cst_75 : f32 to vector<16x1xf32>
      %158 = arith.addf %156, %157 : vector<16x1xf32>
      %159 = math.rsqrt %158 : vector<16x1xf32>
      %160 = vector.broadcast %159 : vector<16x1xf32> to vector<16x256xf32>
      %161 = arith.mulf %151, %160 : vector<16x256xf32>
      %162 = vector.broadcast %144 : vector<1x256xf32> to vector<16x256xf32>
      %163 = arith.mulf %161, %162 : vector<16x256xf32>
      %164 = vector.broadcast %145 : vector<1x256xf32> to vector<16x256xf32>
      %165 = arith.addf %163, %164 : vector<16x256xf32>
      %c0_76 = arith.constant 0 : index
      %c0_77 = arith.constant 0 : index
      %166 = vector.load %arg17[%c0_76, %c0_77] : memref<16x256xf32, #tpu.memory_space<vmem>>, vector<16x256xf32>
      tpu.vector_store %arg17[%c0_76, %c0_77], %165 {strides = array<i32>} : memref<16x256xf32, #tpu.memory_space<vmem>>, vector<16x256xf32>,
    } else {
    }
    return
  }
  func.func @transform_0(%arg0: i32) -> (i32, i32) {
    %c0_i32 = arith.constant 0 : i32
    %c0_i32_0 = arith.constant 0 : i32
    %c0_i32_1 = arith.constant 0 : i32
    return %c0_i32, %c0_i32_0 : i32, i32
  }
  func.func @transform_1(%arg0: i32) -> (i32, i32) {
    %c0_i32 = arith.constant 0 : i32
    %c0_i32_0 = arith.constant 0 : i32
    %c0_i32_1 = arith.constant 0 : i32
    return %c0_i32, %c0_i32_0 : i32, i32
  }
  func.func @transform_2(%arg0: i32) -> (i32, i32, i32) {
    %c0_i32 = arith.constant 0 : i32
    %c0_i32_0 = arith.constant 0 : i32
    %c0_i32_1 = arith.constant 0 : i32
    return %arg0, %c0_i32, %c0_i32_0 : i32, i32, i32
  }
  func.func @transform_3(%arg0: i32) -> (i32, i32, i32) {
    %c0_i32 = arith.constant 0 : i32
    %c0_i32_0 = arith.constant 0 : i32
    %c0_i32_1 = arith.constant 0 : i32
    return %arg0, %c0_i32, %c0_i32_0 : i32, i32, i32
  }
  func.func @transform_4(%arg0: i32) -> (i32, i32, i32) {
    %c0_i32 = arith.constant 0 : i32
    %c0_i32_0 = arith.constant 0 : i32
    %c0_i32_1 = arith.constant 0 : i32
    return %arg0, %c0_i32, %c0_i32_0 : i32, i32, i32
  }
  func.func @transform_5(%arg0: i32) -> (i32, i32, i32) {
    %c0_i32 = arith.constant 0 : i32
    %c0_i32_0 = arith.constant 0 : i32
    %c0_i32_1 = arith.constant 0 : i32
    return %arg0, %c0_i32, %c0_i32_0 : i32, i32, i32
  }
  func.func @transform_6(%arg0: i32) -> (i32, i32, i32) {
    %c0_i32 = arith.constant 0 : i32
    %c0_i32_0 = arith.constant 0 : i32
    %c0_i32_1 = arith.constant 0 : i32
    return %arg0, %c0_i32, %c0_i32_0 : i32, i32, i32
  }
  func.func @transform_7(%arg0: i32) -> (i32, i32, i32) {
    %c0_i32 = arith.constant 0 : i32
    %c0_i32_0 = arith.constant 0 : i32
    %c0_i32_1 = arith.constant 0 : i32
    return %arg0, %c0_i32, %c0_i32_0 : i32, i32, i32
  }
  func.func @transform_8(%arg0: i32) -> (i32, i32, i32) {
    %c0_i32 = arith.constant 0 : i32
    %c0_i32_0 = arith.constant 0 : i32
    %c0_i32_1 = arith.constant 0 : i32
    return %arg0, %c0_i32, %c0_i32_0 : i32, i32, i32
  }
  func.func @transform_9(%arg0: i32) -> (i32, i32, i32) {
    %c0_i32 = arith.constant 0 : i32
    %c0_i32_0 = arith.constant 0 : i32
    %c0_i32_1 = arith.constant 0 : i32
    return %arg0, %c0_i32, %c0_i32_0 : i32, i32, i32
  }
  func.func @transform_10(%arg0: i32) -> (i32, i32, i32) {
    %c0_i32 = arith.constant 0 : i32
    %c0_i32_0 = arith.constant 0 : i32
    %c0_i32_1 = arith.constant 0 : i32
    return %arg0, %c0_i32, %c0_i32_0 : i32, i32, i32
  }
  func.func @transform_11(%arg0: i32) -> (i32, i32, i32) {
    %c0_i32 = arith.constant 0 : i32
    %c0_i32_0 = arith.constant 0 : i32
    %c0_i32_1 = arith.constant 0 : i32
    return %arg0, %c0_i32, %c0_i32_0 : i32, i32, i32
  }
  func.func @transform_12(%arg0: i32) -> (i32, i32, i32) {
    %c0_i32 = arith.constant 0 : i32
    %c0_i32_0 = arith.constant 0 : i32
    %c0_i32_1 = arith.constant 0 : i32
    return %arg0, %c0_i32, %c0_i32_0 : i32, i32, i32
  }
  func.func @transform_13(%arg0: i32) -> (i32, i32, i32) {
    %c0_i32 = arith.constant 0 : i32
    %c0_i32_0 = arith.constant 0 : i32
    %c0_i32_1 = arith.constant 0 : i32
    return %arg0, %c0_i32, %c0_i32_0 : i32, i32, i32
  }
  func.func @transform_14(%arg0: i32) -> (i32, i32) {
    %c0_i32 = arith.constant 0 : i32
    %c0_i32_0 = arith.constant 0 : i32
    %c0_i32_1 = arith.constant 0 : i32
    return %c0_i32, %c0_i32_0 : i32, i32
  }
  func.func @transform_15(%arg0: i32) -> (i32, i32) {
    %c0_i32 = arith.constant 0 : i32
    %c0_i32_0 = arith.constant 0 : i32
    %c0_i32_1 = arith.constant 0 : i32
    return %c0_i32, %c0_i32_0 : i32, i32
  }
  func.func @transform_16(%arg0: i32) -> (i32, i32) {
    %c0_i32 = arith.constant 0 : i32
    %c0_i32_0 = arith.constant 0 : i32
    %c0_i32_1 = arith.constant 0 : i32
    return %c0_i32, %c0_i32_0 : i32, i32
  }
}

</mosaic_0001>

<llo_original>
// kernel: pretrained_backbone_forward.3
$region0: #{pretrained_backbone_forward.3}
  #allocation0 [shape = 'u32[]', space=smem, size = 0x4, offset = 0x4, fixed_abs, tag = 'smem constant byte address 0x4 - core index']
  #allocation1 [shape = 'u32[144,128]{1,0:T(1,128)}', space=vmem, size = 0x12000, scoped, tag = 'internal scratch']
  %s0 = inlined_call_operand.vmem [shape: bf16[16,256], index: 0, kind: input, shape index: {}]
  %s1 = inlined_call_operand.vmem [shape: bf16[256,256], index: 1, kind: input, shape index: {}]
  %s2 = inlined_call_operand.vmem [shape: f32[1,256], index: 2, kind: input, shape index: {}]
  %s3 = inlined_call_operand.hbm [shape: f32[16,256], index: 3, kind: output, shape index: {}]
  %s4 = sld [smem:[#allocation0]]
  $region22: #{pretrained_backbone_forward.3} parent=0
    _
  %s6 = ssub.s32 1, %s4
  %s7 = scalar_select 0, %s6, %s4
  $region1: #{pretrained_backbone_forward.3} parent=0
    #allocation2 [shape = 'u8[16384]{0}', space=vmem, size = 0x4000, scoped, tag = 'output window, operand 0, single buffered']
    #allocation3 [shape = 's32[1]{0}', space=sflag, size = 0x4, scoped, tag = 'scoped memory for pretrained_backbone_forward.3']
    %8 = vsyncpa [#allocation3], 0
    // Predicated region
    $region2: #{pretrained_backbone_forward.3} parent=1 // pred_check
      _
    $region3: #{pretrained_backbone_forward.3} parent=1 // pred_check_branch
      %10 = sbr.rel (0) target = $region5
    $region4: #{pretrained_backbone_forward.3} parent=1 // pred_region
      _
    $region5: #{pretrained_backbone_forward.3} parent=1 // pred_fallthru
      _
    // Predicated region
    $region6: #{pretrained_backbone_forward.3} parent=1 // pred_check
      _
    $region7: #{pretrained_backbone_forward.3} parent=1 // pred_check_branch
      %12 = sbr.rel (0) target = $region9
    $region8: #{pretrained_backbone_forward.3} parent=1 // pred_region
      _
    $region9: #{pretrained_backbone_forward.3} parent=1 // pred_fallthru
      _
    // Predicated region
    $region10: #{pretrained_backbone_forward.3} parent=1 // pred_check
      _
    $region11: #{pretrained_backbone_forward.3} parent=1 // pred_check_branch
      %14 = sbr.rel (0) target = $region13
    $region12: #{pretrained_backbone_forward.3} parent=1 // pred_region
      _
    $region13: #{pretrained_backbone_forward.3} parent=1 // pred_fallthru
      _
    %v15 = vld [vmem:[%s0] sm:$0xff]
    %v16 = vld [vmem:[%s0 + $0x8] sm:$0xff]
    %v17 = vld [vmem:[%s1] sm:$0xff]
    %v18 = vld [vmem:[%s1 + $0x8] sm:$0xff]
    %v19 = vld [vmem:[%s1 + $0x10] sm:$0xff]
    %v20 = vld [vmem:[%s1 + $0x18] sm:$0xff]
    %v21 = vld [vmem:[%s1 + $0x20] sm:$0xff]
    %v22 = vld [vmem:[%s1 + $0x28] sm:$0xff]
    %v23 = vld [vmem:[%s1 + $0x30] sm:$0xff]
    %v24 = vld [vmem:[%s1 + $0x38] sm:$0xff]
    %v25 = vld [vmem:[%s1 + $0x40] sm:$0xff]
    %v26 = vld [vmem:[%s1 + $0x48] sm:$0xff]
    %v27 = vld [vmem:[%s1 + $0x50] sm:$0xff]
    %v28 = vld [vmem:[%s1 + $0x58] sm:$0xff]
    %v29 = vld [vmem:[%s1 + $0x60] sm:$0xff]
    %v30 = vld [vmem:[%s1 + $0x68] sm:$0xff]
    %v31 = vld [vmem:[%s1 + $0x70] sm:$0xff]
    %v32 = vld [vmem:[%s1 + $0x78] sm:$0xff]
    %v33 = vld [vmem:[%s1 + $0x80] sm:$0xff]
    %v34 = vld [vmem:[%s1 + $0x88] sm:$0xff]
    %v35 = vld [vmem:[%s1 + $0x90] sm:$0xff]
    %v36 = vld [vmem:[%s1 + $0x98] sm:$0xff]
    %v37 = vld [vmem:[%s1 + $0xa0] sm:$0xff]
    %v38 = vld [vmem:[%s1 + $0xa8] sm:$0xff]
    %v39 = vld [vmem:[%s1 + $0xb0] sm:$0xff]
    %v40 = vld [vmem:[%s1 + $0xb8] sm:$0xff]
    %v41 = vld [vmem:[%s1 + $0xc0] sm:$0xff]
    %v42 = vld [vmem:[%s1 + $0xc8] sm:$0xff]
    %v43 = vld [vmem:[%s1 + $0xd0] sm:$0xff]
    %v44 = vld [vmem:[%s1 + $0xd8] sm:$0xff]
    %v45 = vld [vmem:[%s1 + $0xe0] sm:$0xff]
    %v46 = vld [vmem:[%s1 + $0xe8] sm:$0xff]
    %v47 = vld [vmem:[%s1 + $0xf0] sm:$0xff]
    %v48 = vld [vmem:[%s1 + $0xf8] sm:$0xff]
    %v49 = vld [vmem:[%s2] sm:$0x3]
    %v51 = vlaneseq
    %v52 = vshrl.u32 %v51, 7
    %v53 = vsub.s32 0, %v52
    %v54 = vrot.slane %v49, %v53
    %v55 = vlaneseq
    %v56 = vshrl.u32 %v55, 7
    %v57 = vsub.s32 1, %v56
    %v58 = vrot.slane %v49, %v57
    %v63 = vunpack.c.l.b16 %v15
    %v64 = vunpack.c.h.b16 %v15
    %v65 = vunpack.c.l.b16 %v16
    %v66 = vunpack.c.h.b16 %v16
    %v67 = vpack.c.b16 %v65, %v63
    %v68 = vpack.c.b16 %v66, %v64
    %v103 = vunpack.c.l.b16 %v17
    %v104 = vunpack.c.h.b16 %v17
    %v105 = vunpack.c.l.b16 %v18
    %v106 = vunpack.c.h.b16 %v18
    %v107 = vunpack.c.l.b16 %v19
    %v108 = vunpack.c.h.b16 %v19
    %v109 = vunpack.c.l.b16 %v20
    %v110 = vunpack.c.h.b16 %v20
    %v111 = vunpack.c.l.b16 %v21
    %v112 = vunpack.c.h.b16 %v21
    %v113 = vunpack.c.l.b16 %v22
    %v114 = vunpack.c.h.b16 %v22
    %v115 = vunpack.c.l.b16 %v23
    %v116 = vunpack.c.h.b16 %v23
    %v117 = vunpack.c.l.b16 %v24
    %v118 = vunpack.c.h.b16 %v24
    %v119 = vunpack.c.l.b16 %v25
    %v120 = vunpack.c.h.b16 %v25
    %v121 = vunpack.c.l.b16 %v26
    %v122 = vunpack.c.h.b16 %v26
    %v123 = vunpack.c.l.b16 %v27
    %v124 = vunpack.c.h.b16 %v27
    %v125 = vunpack.c.l.b16 %v28
    %v126 = vunpack.c.h.b16 %v28
    %v127 = vunpack.c.l.b16 %v29
    %v128 = vunpack.c.h.b16 %v29
    %v129 = vunpack.c.l.b16 %v30
    %v130 = vunpack.c.h.b16 %v30
    %v131 = vunpack.c.l.b16 %v31
    %v132 = vunpack.c.h.b16 %v31
    %v133 = vunpack.c.l.b16 %v32
    %v134 = vunpack.c.h.b16 %v32
    %v135 = vunpack.c.l.b16 %v33
    %v136 = vunpack.c.h.b16 %v33
    %v137 = vunpack.c.l.b16 %v34
    %v138 = vunpack.c.h.b16 %v34
    %v139 = vunpack.c.l.b16 %v35
    %v140 = vunpack.c.h.b16 %v35
    %v141 = vunpack.c.l.b16 %v36
    %v142 = vunpack.c.h.b16 %v36
    %v143 = vunpack.c.l.b16 %v37
    %v144 = vunpack.c.h.b16 %v37
    %v145 = vunpack.c.l.b16 %v38
    %v146 = vunpack.c.h.b16 %v38
    %v147 = vunpack.c.l.b16 %v39
    %v148 = vunpack.c.h.b16 %v39
    %v149 = vunpack.c.l.b16 %v40
    %v150 = vunpack.c.h.b16 %v40
    %v151 = vunpack.c.l.b16 %v41
    %v152 = vunpack.c.h.b16 %v41
    %v153 = vunpack.c.l.b16 %v42
    %v154 = vunpack.c.h.b16 %v42
    %v155 = vunpack.c.l.b16 %v43
    %v156 = vunpack.c.h.b16 %v43
    %v157 = vunpack.c.l.b16 %v44
    %v158 = vunpack.c.h.b16 %v44
    %v159 = vunpack.c.l.b16 %v45
    %v160 = vunpack.c.h.b16 %v45
    %v161 = vunpack.c.l.b16 %v46
    %v162 = vunpack.c.h.b16 %v46
    %v163 = vunpack.c.l.b16 %v47
    %v164 = vunpack.c.h.b16 %v47
    %v165 = vunpack.c.l.b16 %v48
    %v166 = vunpack.c.h.b16 %v48
    %v167 = vpack.c.b16 %v105, %v103
    %v168 = vpack.c.b16 %v106, %v104
    %v169 = vpack.c.b16 %v109, %v107
    %v170 = vpack.c.b16 %v110, %v108
    %v171 = vpack.c.b16 %v113, %v111
    %v172 = vpack.c.b16 %v114, %v112
    %v173 = vpack.c.b16 %v117, %v115
    %v174 = vpack.c.b16 %v118, %v116
    %v175 = vpack.c.b16 %v121, %v119
    %v176 = vpack.c.b16 %v122, %v120
    %v177 = vpack.c.b16 %v125, %v123
    %v178 = vpack.c.b16 %v126, %v124
    %v179 = vpack.c.b16 %v129, %v127
    %v180 = vpack.c.b16 %v130, %v128
    %v181 = vpack.c.b16 %v133, %v131
    %v182 = vpack.c.b16 %v134, %v132
    %v183 = vpack.c.b16 %v137, %v135
    %v184 = vpack.c.b16 %v138, %v136
    %v185 = vpack.c.b16 %v141, %v139
    %v186 = vpack.c.b16 %v142, %v140
    %v187 = vpack.c.b16 %v145, %v143
    %v188 = vpack.c.b16 %v146, %v144
    %v189 = vpack.c.b16 %v149, %v147
    %v190 = vpack.c.b16 %v150, %v148
    %v191 = vpack.c.b16 %v153, %v151
    %v192 = vpack.c.b16 %v154, %v152
    %v193 = vpack.c.b16 %v157, %v155
    %v194 = vpack.c.b16 %v158, %v156
    %v195 = vpack.c.b16 %v161, %v159
    %v196 = vpack.c.b16 %v162, %v160
    %v197 = vpack.c.b16 %v165, %v163
    %v198 = vpack.c.b16 %v166, %v164
    %231 = vmatprep.subr.bf16.mxu0 %v182
    %232 = vmatpush1.bf16.msra.mxu0 %v181
    %233 = vmatprep.subr.bf16.mxu0 %v180
    %234 = vmatpush1.bf16.msra.mxu0 %v179
    %235 = vmatprep.subr.bf16.mxu0 %v178
    %236 = vmatpush1.bf16.msra.mxu0 %v177
    %237 = vmatprep.subr.bf16.mxu0 %v176
    %238 = vmatpush1.bf16.msra.mxu0 %v175
    %239 = vmatprep.subr.bf16.mxu0 %v174
    %240 = vmatpush1.bf16.msra.mxu0 %v173
    %241 = vmatprep.subr.bf16.mxu0 %v172
    %242 = vmatpush1.bf16.msra.mxu0 %v171
    %243 = vmatprep.subr.bf16.mxu0 %v170
    %244 = vmatpush1.bf16.msra.mxu0 %v169
    %245 = vmatprep.subr.bf16.mxu0 %v168
    %246 = vmatpush1.bf16.msra.mxu0 %v167
    %247 = vmatprep.subr.bf16.mxu0 %v198
    %248 = vmatpush2.bf16.msra.mxu0 %v197
    %249 = vmatprep.subr.bf16.mxu0 %v196
    %250 = vmatpush2.bf16.msra.mxu0 %v195
    %251 = vmatprep.subr.bf16.mxu0 %v194
    %252 = vmatpush2.bf16.msra.mxu0 %v193
    %253 = vmatprep.subr.bf16.mxu0 %v192
    %254 = vmatpush2.bf16.msra.mxu0 %v191
    %255 = vmatprep.subr.bf16.mxu0 %v190
    %256 = vmatpush2.bf16.msra.mxu0 %v189
    %257 = vmatprep.subr.bf16.mxu0 %v188
    %258 = vmatpush2.bf16.msra.mxu0 %v187
    %259 = vmatprep.subr.bf16.mxu0 %v186
    %260 = vmatpush2.bf16.msra.mxu0 %v185
    %261 = vmatprep.subr.bf16.mxu0 %v184
    %262 = vmatpush2.bf16.msra.mxu0 %v183
    %263 = vmatprep.mubr.bf16.mxu0 %v68
    %264 = vmatmul.mubr.bf16.gmra.mxu0 %v67
    %v265 = vpop.f32.mrf.mxu0
    %v266 = vadd.f32 %v54, %v265
    %v267 = vpop.f32.mrf.mxu0
    %v268 = vadd.f32 %v58, %v267
    %v269 = vpop.f32.mrf.mxu0
    %v270 = vadd.f32 %v54, %v269
    %v271 = vpop.f32.mrf.mxu0
    %v272 = vadd.f32 %v58, %v271
    %273 = vdwg.mxu0
    %274 = vst [vmem:[#allocation2] sm:$0xff] %v266
    %275 = vst [vmem:[#allocation2 + $0x8] sm:$0xff] %v268
    %276 = vst [vmem:[#allocation2 + $0x10] sm:$0xff] %v270
    %277 = vst [vmem:[#allocation2 + $0x18] sm:$0xff] %v272
    // Predicated region
    $region14: #{pretrained_backbone_forward.3} parent=1 // pred_check
      _
    $region15: #{pretrained_backbone_forward.3} parent=1 // pred_check_branch
      %279 = sbr.rel (0) target = $region17
    $region16: #{pretrained_backbone_forward.3} parent=1 // pred_region
      %s281 = ssub.s32 512, 512
      %282 = vsyncadd [#allocation3], %s281
      %s283 = sshll.u32 [#allocation2], 4
      %s284 = int_to_ptr.vmem [resolvable:$true] %s283
      %289 = dma.vmem_to_hbm [thread:$0]  %s284, 512, %s3, [#allocation3], 256, 256, 16
    $region17: #{pretrained_backbone_forward.3} parent=1 // pred_fallthru
      _
    // Predicated region
    $region18: #{pretrained_backbone_forward.3} parent=1 // pred_check
      _
    $region19: #{pretrained_backbone_forward.3} parent=1 // pred_check_branch
      %291 = sbr.rel (0) target = $region21
    $region20: #{pretrained_backbone_forward.3} parent=1 // pred_region
      %292 = dma.done [#allocation3], 512
    $region21: #{pretrained_backbone_forward.3} parent=1 // pred_fallthru
      _
    %293 = vsyncpa [#allocation3], 1

// kernel: pretrained_backbone_forward.2
$region0: #{pretrained_backbone_forward.2}
  #allocation0 [shape = 'u32[]', space=smem, size = 0x4, offset = 0x4, fixed_abs, tag = 'smem constant byte address 0x4 - core index']
  #allocation1 [shape = 'u32[144,128]{1,0:T(1,128)}', space=vmem, size = 0x12000, scoped, tag = 'internal scratch']
  #allocation2 [shape = 'f32[16,256]{1,0:T(8,128)}', space=vmem, size = 0x4000, scoped, tag = 'scratch operand']
  %s0 = inlined_call_operand.vmem [shape: f32[16,256], index: 0, kind: input, shape index: {}]
  %s1 = inlined_call_operand.vmem [shape: f32[8,8], index: 1, kind: input, shape index: {}]
  %s2 = inlined_call_operand.vmem [shape: f32[2,1,256], index: 2, kind: input, shape index: {}]
  %s3 = inlined_call_operand.vmem [shape: f32[2,1,256], index: 3, kind: input, shape index: {}]
  %s4 = inlined_call_operand.hbm [shape: bf16[2,256,768], index: 4, kind: input, shape index: {}]
  %s5 = inlined_call_operand.vmem [shape: f32[2,1,768], index: 5, kind: input, shape index: {}]
  %s6 = inlined_call_operand.hbm [shape: bf16[2,256,256], index: 6, kind: input, shape index: {}]
  %s7 = inlined_call_operand.vmem [shape: f32[2,1,256], index: 7, kind: input, shape index: {}]
  %s8 = inlined_call_operand.vmem [shape: f32[2,1,256], index: 8, kind: input, shape index: {}]
  %s9 = inlined_call_operand.vmem [shape: f32[2,1,256], index: 9, kind: input, shape index: {}]
  %s10 = inlined_call_operand.hbm [shape: bf16[2,256,1024], index: 10, kind: input, shape index: {}]
  %s11 = inlined_call_operand.vmem [shape: f32[2,1,1024], index: 11, kind: input, shape index: {}]
  %s12 = inlined_call_operand.hbm [shape: bf16[2,1024,256], index: 12, kind: input, shape index: {}]
  %s13 = inlined_call_operand.vmem [shape: f32[2,1,256], index: 13, kind: input, shape index: {}]
  %s14 = inlined_call_operand.vmem [shape: f32[1,256], index: 14, kind: input, shape index: {}]
  %s15 = inlined_call_operand.vmem [shape: f32[1,256], index: 15, kind: input, shape index: {}]
  %s16 = inlined_call_operand.vmem [shape: f32[16,256], index: 16, kind: output, shape index: {}]
  %s17 = sld [smem:[#allocation0]]
  $region121: #{pretrained_backbone_forward.2} parent=0
    _
  %s19 = ssub.s32 1, %s17
  %s20 = scalar_select 0, %s19, %s17
  $region1: #{pretrained_backbone_forward.2} parent=0
    #allocation3 [shape = 'u8[786432]{0}', space=vmem, size = 0xc0000, scoped, tag = 'input window, operand 4']
    #allocation4 [shape = 's32[2]{0}', space=sflag, size = 0x8, scoped, tag = 'scoped memory for pretrained_backbone_forward.2']
    #allocation5 [shape = 'u8[262144]{0}', space=vmem, size = 0x40000, scoped, tag = 'input window, operand 6']
    #allocation6 [shape = 's32[2]{0}', space=sflag, size = 0x8, scoped, tag = 'scoped memory for pretrained_backbone_forward.2']
    #allocation7 [shape = 'u8[1048576]{0}', space=vmem, size = 0x100000, scoped, tag = 'input window, operand 10']
    #allocation8 [shape = 'u8[1048576]{0}', space=vmem, size = 0x100000, scoped, tag = 'input window, operand 12']
    #allocation9 [shape = 's32[2]{0}', space=sflag, size = 0x8, scoped, tag = 'scoped memory for pretrained_backbone_forward.2']
    %21 = vsyncpa [#allocation4], 0
    %s22 = scalar_lea.sflag [#allocation4], 1
    %23 = vsyncpa %s22, 0
    %24 = vsyncpa [#allocation6], 0
    %s25 = scalar_lea.sflag [#allocation6], 1
    %26 = vsyncpa %s25, 0
    %27 = vsyncpa [#allocation9], 0
    %s28 = scalar_lea.sflag [#allocation9], 1
    %29 = vsyncpa %s28, 0
    loop: start=0, step=1, limit=4
    $region2: #{pretrained_backbone_forward.2} parent=1 // loop_pre_header
      _
    $region3: #{pretrained_backbone_forward.2} parent=1 // loop_header
      %s31 = sphi 0, %s35
      %p32 = scmp.ge.s32.totalorder %s31, 4
      %s39 = sphi 0, %s39
      %s41 = sphi 0, %s39
      %s42 = sphi 0, %s41
      %s56 = sphi 0, %s42
      %s60 = sphi 0, %s60
      %s62 = sphi 0, %s60
      %s63 = sphi 0, %s62
      %s77 = sphi 0, %s63
      %s83 = sphi 0, %s85
      %s86 = sphi 0, %s83
      %s87 = sphi 0, %s86
      %s103 = sphi 0, %s87
      %s109 = sphi 0, %s111
      %s112 = sphi 0, %s109
      %s113 = sphi 0, %s112
      %s129 = sphi 0, %s113
      %s135 = sphi 0, %s137
      %s138 = sphi 0, %s135
      %s139 = sphi 0, %s138
      %s155 = sphi 0, %s139
      %s161 = sphi 0, %s163
      %s164 = sphi 0, %s161
      %s165 = sphi 0, %s164
      %s181 = sphi 0, %s165
      %s187 = sphi 0, %s189
      %s190 = sphi 0, %s187
      %s191 = sphi 0, %s190
      %s207 = sphi 0, %s191
      %s213 = sphi 0, %s215
      %s216 = sphi 0, %s213
      %s217 = sphi 0, %s216
      %s233 = sphi 0, %s217
      %s239 = sphi 0, %s241
      %s242 = sphi 0, %s239
      %s243 = sphi 0, %s242
      %s259 = sphi 0, %s243
      %s265 = sphi 0, %s267
      %s268 = sphi 0, %s265
      %s269 = sphi 0, %s268
      %s285 = sphi 0, %s269
      %s291 = sphi 0, %s293
      %s294 = sphi 0, %s291
      %s295 = sphi 0, %s294
      %s311 = sphi 0, %s295
      %s317 = sphi 0, %s319
      %s320 = sphi 0, %s317
      %s321 = sphi 0, %s320
      %s337 = sphi 0, %s321
      %s343 = sphi 0, %s345
      %s346 = sphi 0, %s343
      %s347 = sphi 0, %s346
      %s363 = sphi 0, %s347
      %s369 = sphi 0, %s371
      %s372 = sphi 0, %s369
      %s373 = sphi 0, %s372
      %s389 = sphi 0, %s373
      %s393 = sphi 0, %s393
      %s395 = sphi 0, %s393
      %s396 = sphi 0, %s395
      %s410 = sphi 0, %s396
      %s414 = sphi 0, %s414
      %s416 = sphi 0, %s414
      %s417 = sphi 0, %s416
      %s431 = sphi 0, %s417
      %s435 = sphi 0, %s435
      %s437 = sphi 0, %s435
      %s438 = sphi 0, %s437
      %s452 = sphi 0, %s438
    $region4: #{pretrained_backbone_forward.2} parent=1 // loop_header_branch
      %34 = sbr.rel (%p32) target = $region8
    $region5: #{pretrained_backbone_forward.2} parent=1 // loop_body
      %s36 = ssub.s32 %s31, 1
      %s37 = ssub.s32 %s31, 2
      %s38 = sadd.s32 %s31, 1
      %s40 = sadd.s32 %s39, 1
      %p43 = scmp.eq.s32.totalorder %s31, 1
      %p44 = scmp.ne.s32.totalorder %s39, %s41
      %p45 = scmp.eq.s32.totalorder %s31, 0
      %p46 = por %p44, %p45
      %p47 = scmp.ne.s32.totalorder %s39, %s41
      %p48 = scmp.eq.s32.totalorder %s36, 1
      %p49 = por %p47, %p48
      %p50 = scmp.ne.s32.totalorder %s41, %s42
      %p51 = scmp.eq.s32.totalorder %s36, 0
      %p52 = por %p50, %p51
      %p53 = scmp.ne.s32.totalorder %s41, %s42
      %p54 = scmp.eq.s32.totalorder %s37, 1
      %p55 = por %p53, %p54
      %p57 = scmp.ne.s32.totalorder %s42, %s56
      %p58 = scmp.eq.s32.totalorder %s37, 0
      %p59 = por %p57, %p58
      %s61 = sadd.s32 %s60, 1
      %p64 = scmp.eq.s32.totalorder %s31, 1
      %p65 = scmp.ne.s32.totalorder %s60, %s62
      %p66 = scmp.eq.s32.totalorder %s31, 0
      %p67 = por %p65, %p66
      %p68 = scmp.ne.s32.totalorder %s60, %s62
      %p69 = scmp.eq.s32.totalorder %s36, 1
      %p70 = por %p68, %p69
      %p71 = scmp.ne.s32.totalorder %s62, %s63
      %p72 = scmp.eq.s32.totalorder %s36, 0
      %p73 = por %p71, %p72
      %p74 = scmp.ne.s32.totalorder %s62, %s63
      %p75 = scmp.eq.s32.totalorder %s37, 1
      %p76 = por %p74, %p75
      %p78 = scmp.ne.s32.totalorder %s63, %s77
      %p79 = scmp.eq.s32.totalorder %s37, 0
      %p80 = por %p78, %p79
      %s81 = ssub.s32 %s31, %s38
      %p82 = scmp.eq.s32.totalorder %s81, 0
      %s84 = sadd.s32 %s83, 1
      %s85 = scalar_select %p82, %s83, %s84
      %p88 = pneg %p82
      %p89 = scmp.eq.s32.totalorder %s31, 1
      %p90 = por %p88, %p89
      %p91 = scmp.ne.s32.totalorder %s83, %s86
      %p92 = scmp.eq.s32.totalorder %s31, 0
      %p93 = por %p91, %p92
      %p94 = scmp.ne.s32.totalorder %s83, %s86
      %p95 = scmp.eq.s32.totalorder %s36, 1
      %p96 = por %p94, %p95
      %p97 = scmp.ne.s32.totalorder %s86, %s87
      %p98 = scmp.eq.s32.totalorder %s36, 0
      %p99 = por %p97, %p98
      %p100 = scmp.ne.s32.totalorder %s86, %s87
      %p101 = scmp.eq.s32.totalorder %s37, 1
      %p102 = por %p100, %p101
      %p104 = scmp.ne.s32.totalorder %s87, %s103
      %p105 = scmp.eq.s32.totalorder %s37, 0
      %p106 = por %p104, %p105
      %s107 = ssub.s32 %s31, %s38
      %p108 = scmp.eq.s32.totalorder %s107, 0
      %s110 = sadd.s32 %s109, 1
      %s111 = scalar_select %p108, %s109, %s110
      %p114 = pneg %p108
      %p115 = scmp.eq.s32.totalorder %s31, 1
      %p116 = por %p114, %p115
      %p117 = scmp.ne.s32.totalorder %s109, %s112
      %p118 = scmp.eq.s32.totalorder %s31, 0
      %p119 = por %p117, %p118
      %p120 = scmp.ne.s32.totalorder %s109, %s112
      %p121 = scmp.eq.s32.totalorder %s36, 1
      %p122 = por %p120, %p121
      %p123 = scmp.ne.s32.totalorder %s112, %s113
      %p124 = scmp.eq.s32.totalorder %s36, 0
      %p125 = por %p123, %p124
      %p126 = scmp.ne.s32.totalorder %s112, %s113
      %p127 = scmp.eq.s32.totalorder %s37, 1
      %p128 = por %p126, %p127
      %p130 = scmp.ne.s32.totalorder %s113, %s129
      %p131 = scmp.eq.s32.totalorder %s37, 0
      %p132 = por %p130, %p131
      %s133 = ssub.s32 %s31, %s38
      %p134 = scmp.eq.s32.totalorder %s133, 0
      %s136 = sadd.s32 %s135, 1
      %s137 = scalar_select %p134, %s135, %s136
      %p140 = pneg %p134
      %p141 = scmp.eq.s32.totalorder %s31, 1
      %p142 = por %p140, %p141
      %p143 = scmp.ne.s32.totalorder %s135, %s138
      %p144 = scmp.eq.s32.totalorder %s31, 0
      %p145 = por %p143, %p144
      %p146 = scmp.ne.s32.totalorder %s135, %s138
      %p147 = scmp.eq.s32.totalorder %s36, 1
      %p148 = por %p146, %p147
      %p149 = scmp.ne.s32.totalorder %s138, %s139
      %p150 = scmp.eq.s32.totalorder %s36, 0
      %p151 = por %p149, %p150
      %p152 = scmp.ne.s32.totalorder %s138, %s139
      %p153 = scmp.eq.s32.totalorder %s37, 1
      %p154 = por %p152, %p153
      %p156 = scmp.ne.s32.totalorder %s139, %s155
      %p157 = scmp.eq.s32.totalorder %s37, 0
      %p158 = por %p156, %p157
      %s159 = ssub.s32 %s31, %s38
      %p160 = scmp.eq.s32.totalorder %s159, 0
      %s162 = sadd.s32 %s161, 1
      %s163 = scalar_select %p160, %s161, %s162
      %p166 = pneg %p160
      %p167 = scmp.eq.s32.totalorder %s31, 1
      %p168 = por %p166, %p167
      %p169 = scmp.ne.s32.totalorder %s161, %s164
      %p170 = scmp.eq.s32.totalorder %s31, 0
      %p171 = por %p169, %p170
      %p172 = scmp.ne.s32.totalorder %s161, %s164
      %p173 = scmp.eq.s32.totalorder %s36, 1
      %p174 = por %p172, %p173
      %p175 = scmp.ne.s32.totalorder %s164, %s165
      %p176 = scmp.eq.s32.totalorder %s36, 0
      %p177 = por %p175, %p176
      %p178 = scmp.ne.s32.totalorder %s164, %s165
      %p179 = scmp.eq.s32.totalorder %s37, 1
      %p180 = por %p178, %p179
      %p182 = scmp.ne.s32.totalorder %s165, %s181
      %p183 = scmp.eq.s32.totalorder %s37, 0
      %p184 = por %p182, %p183
      %s185 = ssub.s32 %s31, %s38
      %p186 = scmp.eq.s32.totalorder %s185, 0
      %s188 = sadd.s32 %s187, 1
      %s189 = scalar_select %p186, %s187, %s188
      %p192 = pneg %p186
      %p193 = scmp.eq.s32.totalorder %s31, 1
      %p194 = por %p192, %p193
      %p195 = scmp.ne.s32.totalorder %s187, %s190
      %p196 = scmp.eq.s32.totalorder %s31, 0
      %p197 = por %p195, %p196
      %p198 = scmp.ne.s32.totalorder %s187, %s190
      %p199 = scmp.eq.s32.totalorder %s36, 1
      %p200 = por %p198, %p199
      %p201 = scmp.ne.s32.totalorder %s190, %s191
      %p202 = scmp.eq.s32.totalorder %s36, 0
      %p203 = por %p201, %p202
      %p204 = scmp.ne.s32.totalorder %s190, %s191
      %p205 = scmp.eq.s32.totalorder %s37, 1
      %p206 = por %p204, %p205
      %p208 = scmp.ne.s32.totalorder %s191, %s207
      %p209 = scmp.eq.s32.totalorder %s37, 0
      %p210 = por %p208, %p209
      %s211 = ssub.s32 %s31, %s38
      %p212 = scmp.eq.s32.totalorder %s211, 0
      %s214 = sadd.s32 %s213, 1
      %s215 = scalar_select %p212, %s213, %s214
      %p218 = pneg %p212
      %p219 = scmp.eq.s32.totalorder %s31, 1
      %p220 = por %p218, %p219
      %p221 = scmp.ne.s32.totalorder %s213, %s216
      %p222 = scmp.eq.s32.totalorder %s31, 0
      %p223 = por %p221, %p222
      %p224 = scmp.ne.s32.totalorder %s213, %s216
      %p225 = scmp.eq.s32.totalorder %s36, 1
      %p226 = por %p224, %p225
      %p227 = scmp.ne.s32.totalorder %s216, %s217
      %p228 = scmp.eq.s32.totalorder %s36, 0
      %p229 = por %p227, %p228
      %p230 = scmp.ne.s32.totalorder %s216, %s217
      %p231 = scmp.eq.s32.totalorder %s37, 1
      %p232 = por %p230, %p231
      %p234 = scmp.ne.s32.totalorder %s217, %s233
      %p235 = scmp.eq.s32.totalorder %s37, 0
      %p236 = por %p234, %p235
      %s237 = ssub.s32 %s31, %s38
      %p238 = scmp.eq.s32.totalorder %s237, 0
      %s240 = sadd.s32 %s239, 1
      %s241 = scalar_select %p238, %s239, %s240
      %p244 = pneg %p238
      %p245 = scmp.eq.s32.totalorder %s31, 1
      %p246 = por %p244, %p245
      %p247 = scmp.ne.s32.totalorder %s239, %s242
      %p248 = scmp.eq.s32.totalorder %s31, 0
      %p249 = por %p247, %p248
      %p250 = scmp.ne.s32.totalorder %s239, %s242
      %p251 = scmp.eq.s32.totalorder %s36, 1
      %p252 = por %p250, %p251
      %p253 = scmp.ne.s32.totalorder %s242, %s243
      %p254 = scmp.eq.s32.totalorder %s36, 0
      %p255 = por %p253, %p254
      %p256 = scmp.ne.s32.totalorder %s242, %s243
      %p257 = scmp.eq.s32.totalorder %s37, 1
      %p258 = por %p256, %p257
      %p260 = scmp.ne.s32.totalorder %s243, %s259
      %p261 = scmp.eq.s32.totalorder %s37, 0
      %p262 = por %p260, %p261
      %s263 = ssub.s32 %s31, %s38
      %p264 = scmp.eq.s32.totalorder %s263, 0
      %s266 = sadd.s32 %s265, 1
      %s267 = scalar_select %p264, %s265, %s266
      %p270 = pneg %p264
      %p271 = scmp.eq.s32.totalorder %s31, 1
      %p272 = por %p270, %p271
      %p273 = scmp.ne.s32.totalorder %s265, %s268
      %p274 = scmp.eq.s32.totalorder %s31, 0
      %p275 = por %p273, %p274
      %p276 = scmp.ne.s32.totalorder %s265, %s268
      %p277 = scmp.eq.s32.totalorder %s36, 1
      %p278 = por %p276, %p277
      %p279 = scmp.ne.s32.totalorder %s268, %s269
      %p280 = scmp.eq.s32.totalorder %s36, 0
      %p281 = por %p279, %p280
      %p282 = scmp.ne.s32.totalorder %s268, %s269
      %p283 = scmp.eq.s32.totalorder %s37, 1
      %p284 = por %p282, %p283
      %p286 = scmp.ne.s32.totalorder %s269, %s285
      %p287 = scmp.eq.s32.totalorder %s37, 0
      %p288 = por %p286, %p287
      %s289 = ssub.s32 %s31, %s38
      %p290 = scmp.eq.s32.totalorder %s289, 0
      %s292 = sadd.s32 %s291, 1
      %s293 = scalar_select %p290, %s291, %s292
      %p296 = pneg %p290
      %p297 = scmp.eq.s32.totalorder %s31, 1
      %p298 = por %p296, %p297
      %p299 = scmp.ne.s32.totalorder %s291, %s294
      %p300 = scmp.eq.s32.totalorder %s31, 0
      %p301 = por %p299, %p300
      %p302 = scmp.ne.s32.totalorder %s291, %s294
      %p303 = scmp.eq.s32.totalorder %s36, 1
      %p304 = por %p302, %p303
      %p305 = scmp.ne.s32.totalorder %s294, %s295
      %p306 = scmp.eq.s32.totalorder %s36, 0
      %p307 = por %p305, %p306
      %p308 = scmp.ne.s32.totalorder %s294, %s295
      %p309 = scmp.eq.s32.totalorder %s37, 1
      %p310 = por %p308, %p309
      %p312 = scmp.ne.s32.totalorder %s295, %s311
      %p313 = scmp.eq.s32.totalorder %s37, 0
      %p314 = por %p312, %p313
      %s315 = ssub.s32 %s31, %s38
      %p316 = scmp.eq.s32.totalorder %s315, 0
      %s318 = sadd.s32 %s317, 1
      %s319 = scalar_select %p316, %s317, %s318
      %p322 = pneg %p316
      %p323 = scmp.eq.s32.totalorder %s31, 1
      %p324 = por %p322, %p323
      %p325 = scmp.ne.s32.totalorder %s317, %s320
      %p326 = scmp.eq.s32.totalorder %s31, 0
      %p327 = por %p325, %p326
      %p328 = scmp.ne.s32.totalorder %s317, %s320
      %p329 = scmp.eq.s32.totalorder %s36, 1
      %p330 = por %p328, %p329
      %p331 = scmp.ne.s32.totalorder %s320, %s321
      %p332 = scmp.eq.s32.totalorder %s36, 0
      %p333 = por %p331, %p332
      %p334 = scmp.ne.s32.totalorder %s320, %s321
      %p335 = scmp.eq.s32.totalorder %s37, 1
      %p336 = por %p334, %p335
      %p338 = scmp.ne.s32.totalorder %s321, %s337
      %p339 = scmp.eq.s32.totalorder %s37, 0
      %p340 = por %p338, %p339
      %s341 = ssub.s32 %s31, %s38
      %p342 = scmp.eq.s32.totalorder %s341, 0
      %s344 = sadd.s32 %s343, 1
      %s345 = scalar_select %p342, %s343, %s344
      %p348 = pneg %p342
      %p349 = scmp.eq.s32.totalorder %s31, 1
      %p350 = por %p348, %p349
      %p351 = scmp.ne.s32.totalorder %s343, %s346
      %p352 = scmp.eq.s32.totalorder %s31, 0
      %p353 = por %p351, %p352
      %p354 = scmp.ne.s32.totalorder %s343, %s346
      %p355 = scmp.eq.s32.totalorder %s36, 1
      %p356 = por %p354, %p355
      %p357 = scmp.ne.s32.totalorder %s346, %s347
      %p358 = scmp.eq.s32.totalorder %s36, 0
      %p359 = por %p357, %p358
      %p360 = scmp.ne.s32.totalorder %s346, %s347
      %p361 = scmp.eq.s32.totalorder %s37, 1
      %p362 = por %p360, %p361
      %p364 = scmp.ne.s32.totalorder %s347, %s363
      %p365 = scmp.eq.s32.totalorder %s37, 0
      %p366 = por %p364, %p365
      %s367 = ssub.s32 %s31, %s38
      %p368 = scmp.eq.s32.totalorder %s367, 0
      %s370 = sadd.s32 %s369, 1
      %s371 = scalar_select %p368, %s369, %s370
      %p374 = pneg %p368
      %p375 = scmp.eq.s32.totalorder %s31, 1
      %p376 = por %p374, %p375
      %p377 = scmp.ne.s32.totalorder %s369, %s372
      %p378 = scmp.eq.s32.totalorder %s31, 0
      %p379 = por %p377, %p378
      %p380 = scmp.ne.s32.totalorder %s369, %s372
      %p381 = scmp.eq.s32.totalorder %s36, 1
      %p382 = por %p380, %p381
      %p383 = scmp.ne.s32.totalorder %s372, %s373
      %p384 = scmp.eq.s32.totalorder %s36, 0
      %p385 = por %p383, %p384
      %p386 = scmp.ne.s32.totalorder %s372, %s373
      %p387 = scmp.eq.s32.totalorder %s37, 1
      %p388 = por %p386, %p387
      %p390 = scmp.ne.s32.totalorder %s373, %s389
      %p391 = scmp.eq.s32.totalorder %s37, 0
      %p392 = por %p390, %p391
      %s394 = sadd.s32 %s393, 1
      %p397 = scmp.eq.s32.totalorder %s31, 1
      %p398 = scmp.ne.s32.totalorder %s393, %s395
      %p399 = scmp.eq.s32.totalorder %s31, 0
      %p400 = por %p398, %p399
      %p401 = scmp.ne.s32.totalorder %s393, %s395
      %p402 = scmp.eq.s32.totalorder %s36, 1
      %p403 = por %p401, %p402
      %p404 = scmp.ne.s32.totalorder %s395, %s396
      %p405 = scmp.eq.s32.totalorder %s36, 0
      %p406 = por %p404, %p405
      %p407 = scmp.ne.s32.totalorder %s395, %s396
      %p408 = scmp.eq.s32.totalorder %s37, 1
      %p409 = por %p407, %p408
      %p411 = scmp.ne.s32.totalorder %s396, %s410
      %p412 = scmp.eq.s32.totalorder %s37, 0
      %p413 = por %p411, %p412
      %s415 = sadd.s32 %s414, 1
      %p418 = scmp.eq.s32.totalorder %s31, 1
      %p419 = scmp.ne.s32.totalorder %s414, %s416
      %p420 = scmp.eq.s32.totalorder %s31, 0
      %p421 = por %p419, %p420
      %p422 = scmp.ne.s32.totalorder %s414, %s416
      %p423 = scmp.eq.s32.totalorder %s36, 1
      %p424 = por %p422, %p423
      %p425 = scmp.ne.s32.totalorder %s416, %s417
      %p426 = scmp.eq.s32.totalorder %s36, 0
      %p427 = por %p425, %p426
      %p428 = scmp.ne.s32.totalorder %s416, %s417
      %p429 = scmp.eq.s32.totalorder %s37, 1
      %p430 = por %p428, %p429
      %p432 = scmp.ne.s32.totalorder %s417, %s431
      %p433 = scmp.eq.s32.totalorder %s37, 0
      %p434 = por %p432, %p433
      %s436 = sadd.s32 %s435, 1
      %p439 = scmp.eq.s32.totalorder %s31, 1
      %p440 = scmp.ne.s32.totalorder %s435, %s437
      %p441 = scmp.eq.s32.totalorder %s31, 0
      %p442 = por %p440, %p441
      %p443 = scmp.ne.s32.totalorder %s435, %s437
      %p444 = scmp.eq.s32.totalorder %s36, 1
      %p445 = por %p443, %p444
      %p446 = scmp.ne.s32.totalorder %s437, %s438
      %p447 = scmp.eq.s32.totalorder %s36, 0
      %p448 = por %p446, %p447
      %p449 = scmp.ne.s32.totalorder %s437, %s438
      %p450 = scmp.eq.s32.totalorder %s37, 1
      %p451 = por %p449, %p450
      %p453 = scmp.ne.s32.totalorder %s438, %s452
      %p454 = scmp.eq.s32.totalorder %s37, 0
      %p455 = por %p453, %p454
      %p456 = scmp.le.s32.totalorder 1, %s31
      %p457 = scmp.lt.s32.totalorder %s31, 3
      %p458 = pnand %p456, %p457
      %p459 = pneg %p458
      // Predicated region
      $region9: #{pretrained_backbone_forward.2} parent=5 // pred_check
        _
      $region10: #{pretrained_backbone_forward.2} parent=5 // pred_check_branch
        %461 = sbr.rel (%p458) target = $region12
      $region11: #{pretrained_backbone_forward.2} parent=5 // pred_region
        %s462 = ssub.s32 %s31, 1
        // Predicated region
        $region13: #{pretrained_backbone_forward.2} parent=11 // pred_check
          %p463 = pneg %p52
        $region14: #{pretrained_backbone_forward.2} parent=11 // pred_check_branch
          %465 = sbr.rel (%p463) target = $region16
        $region15: #{pretrained_backbone_forward.2} parent=11 // pred_region
          _
        $region16: #{pretrained_backbone_forward.2} parent=11 // pred_fallthru
          _
        // Predicated region
        $region17: #{pretrained_backbone_forward.2} parent=11 // pred_check
          %p466 = pneg %p73
        $region18: #{pretrained_backbone_forward.2} parent=11 // pred_check_branch
          %468 = sbr.rel (%p466) target = $region20
        $region19: #{pretrained_backbone_forward.2} parent=11 // pred_region
          _
        $region20: #{pretrained_backbone_forward.2} parent=11 // pred_fallthru
          _
        // Predicated region
        $region21: #{pretrained_backbone_forward.2} parent=11 // pred_check
          %p469 = pneg %p406
        $region22: #{pretrained_backbone_forward.2} parent=11 // pred_check_branch
          %471 = sbr.rel (%p469) target = $region24
        $region23: #{pretrained_backbone_forward.2} parent=11 // pred_region
          _
        $region24: #{pretrained_backbone_forward.2} parent=11 // pred_fallthru
          _
        // Predicated region
        $region25: #{pretrained_backbone_forward.2} parent=11 // pred_check
          %p472 = pneg %p427
        $region26: #{pretrained_backbone_forward.2} parent=11 // pred_check_branch
          %474 = sbr.rel (%p472) target = $region28
        $region27: #{pretrained_backbone_forward.2} parent=11 // pred_region
          _
        $region28: #{pretrained_backbone_forward.2} parent=11 // pred_fallthru
          _
      $region12: #{pretrained_backbone_forward.2} parent=5 // pred_fallthru
        _
      %p475 = scmp.lt.s32.totalorder %s31, 2
      // Predicated region
      $region29: #{pretrained_backbone_forward.2} parent=5 // pred_check
        %p476 = pneg %p475
      $region30: #{pretrained_backbone_forward.2} parent=5 // pred_check_branch
        %478 = sbr.rel (%p476) target = $region32
      $region31: #{pretrained_backbone_forward.2} parent=5 // pred_region
        // Predicated region
        $region33: #{pretrained_backbone_forward.2} parent=31 // pred_check
          %p479 = pneg %p93
        $region34: #{pretrained_backbone_forward.2} parent=31 // pred_check_branch
          %481 = sbr.rel (%p479) target = $region36
        $region35: #{pretrained_backbone_forward.2} parent=31 // pred_region
          %p482 = scmp.lt.s32.totalorder %s31, 1
          %s483 = scalar_select %p482, %s31, 1
          %s484 = smul.addr %s483, 2
          %s485 = scalar_lea.vmem %s2, %s484
        $region36: #{pretrained_backbone_forward.2} parent=31 // pred_fallthru
          _
        // Predicated region
        $region37: #{pretrained_backbone_forward.2} parent=31 // pred_check
          %p486 = pneg %p119
        $region38: #{pretrained_backbone_forward.2} parent=31 // pred_check_branch
          %488 = sbr.rel (%p486) target = $region40
        $region39: #{pretrained_backbone_forward.2} parent=31 // pred_region
          %p489 = scmp.lt.s32.totalorder %s31, 1
          %s490 = scalar_select %p489, %s31, 1
          %s491 = smul.addr %s490, 2
          %s492 = scalar_lea.vmem %s3, %s491
        $region40: #{pretrained_backbone_forward.2} parent=31 // pred_fallthru
          _
        // Predicated region
        $region41: #{pretrained_backbone_forward.2} parent=31 // pred_check
          %p493 = pneg %p145
        $region42: #{pretrained_backbone_forward.2} parent=31 // pred_check_branch
          %495 = sbr.rel (%p493) target = $region44
        $region43: #{pretrained_backbone_forward.2} parent=31 // pred_region
          %s496 = sand.u32 %s135, 1
          %s497 = scalar_lea.sflag [#allocation4], %s496
          %s498 = sand.u32 %s135, 1
          %s499 = smul.addr %s498, 768
          %s500 = scalar_lea.vmem [#allocation3], %s499
          %s502 = ssub.s32 12288, 12288
          %503 = vsyncadd %s497, %s502
          %s504 = smul.addr %s31, 192
          %s505 = smul.addr %s504, 64
          %s506 = scalar_lea.hbm %s4, %s505
          %s507 = sshll.u32 %s500, 4
          %s508 = int_to_ptr.vmem [resolvable:$true] %s507
          %513 = dma.hbm_to_vmem [thread:$0]  %s506, 12288, %s508, %s497, 384, 384, 24
        $region44: #{pretrained_backbone_forward.2} parent=31 // pred_fallthru
          _
        // Predicated region
        $region45: #{pretrained_backbone_forward.2} parent=31 // pred_check
          %p514 = pneg %p171
        $region46: #{pretrained_backbone_forward.2} parent=31 // pred_check_branch
          %516 = sbr.rel (%p514) target = $region48
        $region47: #{pretrained_backbone_forward.2} parent=31 // pred_region
          %p517 = scmp.lt.s32.totalorder %s31, 1
          %s518 = scalar_select %p517, %s31, 1
          %s519 = smul.addr %s518, 6
          %s520 = scalar_lea.vmem %s5, %s519
        $region48: #{pretrained_backbone_forward.2} parent=31 // pred_fallthru
          _
        // Predicated region
        $region49: #{pretrained_backbone_forward.2} parent=31 // pred_check
          %p521 = pneg %p197
        $region50: #{pretrained_backbone_forward.2} parent=31 // pred_check_branch
          %523 = sbr.rel (%p521) target = $region52
        $region51: #{pretrained_backbone_forward.2} parent=31 // pred_region
          %s524 = sand.u32 %s31, 1
          %s525 = scalar_lea.sflag [#allocation6], %s524
          %s526 = sand.u32 %s187, 1
          %s527 = smul.addr %s526, 256
          %s528 = scalar_lea.vmem [#allocation5], %s527
          %s530 = ssub.s32 4096, 4096
          %531 = vsyncadd %s525, %s530
          %s532 = smul.addr %s31, 64
          %s533 = smul.addr %s532, 64
          %s534 = scalar_lea.hbm %s6, %s533
          %s535 = sshll.u32 %s528, 4
          %s536 = int_to_ptr.vmem [resolvable:$true] %s535
          %541 = dma.hbm_to_vmem [thread:$0]  %s534, 4096, %s536, %s525, 128, 128, 8
        $region52: #{pretrained_backbone_forward.2} parent=31 // pred_fallthru
          _
        // Predicated region
        $region53: #{pretrained_backbone_forward.2} parent=31 // pred_check
          %p542 = pneg %p223
        $region54: #{pretrained_backbone_forward.2} parent=31 // pred_check_branch
          %544 = sbr.rel (%p542) target = $region56
        $region55: #{pretrained_backbone_forward.2} parent=31 // pred_region
          %p545 = scmp.lt.s32.totalorder %s31, 1
          %s546 = scalar_select %p545, %s31, 1
          %s547 = smul.addr %s546, 2
          %s548 = scalar_lea.vmem %s7, %s547
        $region56: #{pretrained_backbone_forward.2} parent=31 // pred_fallthru
          _
        // Predicated region
        $region57: #{pretrained_backbone_forward.2} parent=31 // pred_check
          %p549 = pneg %p249
        $region58: #{pretrained_backbone_forward.2} parent=31 // pred_check_branch
          %551 = sbr.rel (%p549) target = $region60
        $region59: #{pretrained_backbone_forward.2} parent=31 // pred_region
          %p552 = scmp.lt.s32.totalorder %s31, 1
          %s553 = scalar_select %p552, %s31, 1
          %s554 = smul.addr %s553, 2
          %s555 = scalar_lea.vmem %s8, %s554
        $region60: #{pretrained_backbone_forward.2} parent=31 // pred_fallthru
          _
        // Predicated region
        $region61: #{pretrained_backbone_forward.2} parent=31 // pred_check
          %p556 = pneg %p275
        $region62: #{pretrained_backbone_forward.2} parent=31 // pred_check_branch
          %558 = sbr.rel (%p556) target = $region64
        $region63: #{pretrained_backbone_forward.2} parent=31 // pred_region
          %p559 = scmp.lt.s32.totalorder %s31, 1
          %s560 = scalar_select %p559, %s31, 1
          %s561 = smul.addr %s560, 2
          %s562 = scalar_lea.vmem %s9, %s561
        $region64: #{pretrained_backbone_forward.2} parent=31 // pred_fallthru
          _
        // Predicated region
        $region65: #{pretrained_backbone_forward.2} parent=31 // pred_check
          %p563 = pneg %p301
        $region66: #{pretrained_backbone_forward.2} parent=31 // pred_check_branch
          %565 = sbr.rel (%p563) target = $region68
        $region67: #{pretrained_backbone_forward.2} parent=31 // pred_region
          %s566 = sand.u32 %s31, 1
          %s567 = scalar_lea.sflag [#allocation6], %s566
          %s568 = sand.u32 %s291, 1
          %s569 = smul.addr %s568, 1024
          %s570 = scalar_lea.vmem [#allocation7], %s569
          %s572 = ssub.s32 16384, 16384
          %573 = vsyncadd %s567, %s572
          %s574 = smul.addr %s31, 256
          %s575 = smul.addr %s574, 64
          %s576 = scalar_lea.hbm %s10, %s575
          %s577 = sshll.u32 %s570, 4
          %s578 = int_to_ptr.vmem [resolvable:$true] %s577
          %583 = dma.hbm_to_vmem [thread:$0]  %s576, 16384, %s578, %s567, 512, 512, 32
        $region68: #{pretrained_backbone_forward.2} parent=31 // pred_fallthru
          _
        // Predicated region
        $region69: #{pretrained_backbone_forward.2} parent=31 // pred_check
          %p584 = pneg %p327
        $region70: #{pretrained_backbone_forward.2} parent=31 // pred_check_branch
          %586 = sbr.rel (%p584) target = $region72
        $region71: #{pretrained_backbone_forward.2} parent=31 // pred_region
          %p587 = scmp.lt.s32.totalorder %s31, 1
          %s588 = scalar_select %p587, %s31, 1
          %s589 = smul.addr %s588, 8
          %s590 = scalar_lea.vmem %s11, %s589
        $region72: #{pretrained_backbone_forward.2} parent=31 // pred_fallthru
          _
        // Predicated region
        $region73: #{pretrained_backbone_forward.2} parent=31 // pred_check
          %p591 = pneg %p353
        $region74: #{pretrained_backbone_forward.2} parent=31 // pred_check_branch
          %593 = sbr.rel (%p591) target = $region76
        $region75: #{pretrained_backbone_forward.2} parent=31 // pred_region
          %s594 = sand.u32 %s343, 1
          %s595 = scalar_lea.sflag [#allocation9], %s594
          %s596 = sand.u32 %s343, 1
          %s597 = smul.addr %s596, 1024
          %s598 = scalar_lea.vmem [#allocation8], %s597
          %s600 = ssub.s32 16384, 16384
          %601 = vsyncadd %s595, %s600
          %s602 = smul.addr %s31, 256
          %s603 = smul.addr %s602, 64
          %s604 = scalar_lea.hbm %s12, %s603
          %s605 = sshll.u32 %s598, 4
          %s606 = int_to_ptr.vmem [resolvable:$true] %s605
          %611 = dma.hbm_to_vmem [thread:$0]  %s604, 16384, %s606, %s595, 128, 128, 8
        $region76: #{pretrained_backbone_forward.2} parent=31 // pred_fallthru
          _
        // Predicated region
        $region77: #{pretrained_backbone_forward.2} parent=31 // pred_check
          %p612 = pneg %p379
        $region78: #{pretrained_backbone_forward.2} parent=31 // pred_check_branch
          %614 = sbr.rel (%p612) target = $region80
        $region79: #{pretrained_backbone_forward.2} parent=31 // pred_region
          %p615 = scmp.lt.s32.totalorder %s31, 1
          %s616 = scalar_select %p615, %s31, 1
          %s617 = smul.addr %s616, 2
          %s618 = scalar_lea.vmem %s13, %s617
        $region80: #{pretrained_backbone_forward.2} parent=31 // pred_fallthru
          _
      $region32: #{pretrained_backbone_forward.2} parent=5 // pred_fallthru
        _
      %p619 = scmp.le.s32.totalorder 1, %s31
      %p620 = scmp.lt.s32.totalorder %s31, 3
      %p621 = pnand %p619, %p620
      %p622 = pneg %p621
      // Predicated region
      $region81: #{pretrained_backbone_forward.2} parent=5 // pred_check
        _
      $region82: #{pretrained_backbone_forward.2} parent=5 // pred_check_branch
        %624 = sbr.rel (%p621) target = $region84
      $region83: #{pretrained_backbone_forward.2} parent=5 // pred_region
        %s625 = ssub.s32 %s31, 1
        %s626 = sand.u32 %s138, 1
        %s627 = scalar_lea.sflag [#allocation4], %s626
        %s628 = sand.u32 %s138, 1
        %s629 = smul.addr %s628, 768
        %s630 = scalar_lea.vmem [#allocation3], %s629
        // Predicated region
        $region85: #{pretrained_backbone_forward.2} parent=83 // pred_check
          %p631 = pneg %p151
        $region86: #{pretrained_backbone_forward.2} parent=83 // pred_check_branch
          %633 = sbr.rel (%p631) target = $region88
        $region87: #{pretrained_backbone_forward.2} parent=83 // pred_region
          %634 = dma.done %s627, 12288
        $region88: #{pretrained_backbone_forward.2} parent=83 // pred_fallthru
          _
        %s635 = sand.u32 %s36, 1
        %s636 = scalar_lea.sflag [#allocation6], %s635
        %s637 = sand.u32 %s190, 1
        %s638 = smul.addr %s637, 256
        %s639 = scalar_lea.vmem [#allocation5], %s638
        // Predicated region
        $region89: #{pretrained_backbone_forward.2} parent=83 // pred_check
          %p640 = pneg %p203
        $region90: #{pretrained_backbone_forward.2} parent=83 // pred_check_branch
          %642 = sbr.rel (%p640) target = $region92
        $region91: #{pretrained_backbone_forward.2} parent=83 // pred_region
          %643 = dma.done %s636, 4096
        $region92: #{pretrained_backbone_forward.2} parent=83 // pred_fallthru
          _
        %s644 = sand.u32 %s36, 1
        %s645 = scalar_lea.sflag [#allocation6], %s644
        %s646 = sand.u32 %s294, 1
        %s647 = smul.addr %s646, 1024
        %s648 = scalar_lea.vmem [#allocation7], %s647
        // Predicated region
        $region93: #{pretrained_backbone_forward.2} parent=83 // pred_check
          %p649 = pneg %p307
        $region94: #{pretrained_backbone_forward.2} parent=83 // pred_check_branch
          %651 = sbr.rel (%p649) target = $region96
        $region95: #{pretrained_backbone_forward.2} parent=83 // pred_region
          %652 = dma.done %s645, 16384
        $region96: #{pretrained_backbone_forward.2} parent=83 // pred_fallthru
          _
        %s653 = sand.u32 %s346, 1
        %s654 = scalar_lea.sflag [#allocation9], %s653
        %s655 = sand.u32 %s346, 1
        %s656 = smul.addr %s655, 1024
        %s657 = scalar_lea.vmem [#allocation8], %s656
        // Predicated region
        $region97: #{pretrained_backbone_forward.2} parent=83 // pred_check
          %p658 = pneg %p359
        $region98: #{pretrained_backbone_forward.2} parent=83 // pred_check_branch
          %660 = sbr.rel (%p658) target = $region100
        $region99: #{pretrained_backbone_forward.2} parent=83 // pred_region
          %661 = dma.done %s654, 16384
        $region100: #{pretrained_backbone_forward.2} parent=83 // pred_fallthru
          _
        %p662 = pneg %p52
        %p663 = pneg %p49
        %p664 = pneg %p73
        %p665 = pneg %p70
        %p666 = scmp.lt.s32.totalorder %s36, 1
        %s667 = scalar_select %p666, %s36, 1
        %s668 = smul.addr %s667, 2
        %s669 = scalar_lea.vmem %s2, %s668
        %p670 = pneg %p99
        %p671 = pneg %p96
        %p672 = scmp.lt.s32.totalorder %s36, 1
        %s673 = scalar_select %p672, %s36, 1
        %s674 = smul.addr %s673, 2
        %s675 = scalar_lea.vmem %s3, %s674
        %p676 = pneg %p125
        %p677 = pneg %p122
        %s678 = sand.u32 %s138, 1
        %s679 = scalar_lea.sflag [#allocation4], %s678
        %s680 = sand.u32 %s138, 1
        %s681 = smul.addr %s680, 768
        %s682 = scalar_lea.vmem [#allocation3], %s681
        %p683 = pneg %p151
        %p684 = pneg %p148
        %p685 = scmp.lt.s32.totalorder %s36, 1
        %s686 = scalar_select %p685, %s36, 1
        %s687 = smul.addr %s686, 6
        %s688 = scalar_lea.vmem %s5, %s687
        %p689 = pneg %p177
        %p690 = pneg %p174
        %s691 = sand.u32 %s36, 1
        %s692 = scalar_lea.sflag [#allocation6], %s691
        %s693 = sand.u32 %s190, 1
        %s694 = smul.addr %s693, 256
        %s695 = scalar_lea.vmem [#allocation5], %s694
        %p696 = pneg %p203
        %p697 = pneg %p200
        %p698 = scmp.lt.s32.totalorder %s36, 1
        %s699 = scalar_select %p698, %s36, 1
        %s700 = smul.addr %s699, 2
        %s701 = scalar_lea.vmem %s7, %s700
        %p702 = pneg %p229
        %p703 = pneg %p226
        %p704 = scmp.lt.s32.totalorder %s36, 1
        %s705 = scalar_select %p704, %s36, 1
        %s706 = smul.addr %s705, 2
        %s707 = scalar_lea.vmem %s8, %s706
        %p708 = pneg %p255
        %p709 = pneg %p252
        %p710 = scmp.lt.s32.totalorder %s36, 1
        %s711 = scalar_select %p710, %s36, 1
        %s712 = smul.addr %s711, 2
        %s713 = scalar_lea.vmem %s9, %s712
        %p714 = pneg %p281
        %p715 = pneg %p278
        %s716 = sand.u32 %s36, 1
        %s717 = scalar_lea.sflag [#allocation6], %s716
        %s718 = sand.u32 %s294, 1
        %s719 = smul.addr %s718, 1024
        %s720 = scalar_lea.vmem [#allocation7], %s719
        %p721 = pneg %p307
        %p722 = pneg %p304
        %p723 = scmp.lt.s32.totalorder %s36, 1
        %s724 = scalar_select %p723, %s36, 1
        %s725 = smul.addr %s724, 8
        %s726 = scalar_lea.vmem %s11, %s725
        %p727 = pneg %p333
        %p728 = pneg %p330
        %s729 = sand.u32 %s346, 1
        %s730 = scalar_lea.sflag [#allocation9], %s729
        %s731 = sand.u32 %s346, 1
        %s732 = smul.addr %s731, 1024
        %s733 = scalar_lea.vmem [#allocation8], %s732
        %p734 = pneg %p359
        %p735 = pneg %p356
        %p736 = scmp.lt.s32.totalorder %s36, 1
        %s737 = scalar_select %p736, %s36, 1
        %s738 = smul.addr %s737, 2
        %s739 = scalar_lea.vmem %s13, %s738
        %p740 = pneg %p385
        %p741 = pneg %p382
        %p742 = pneg %p406
        %p743 = pneg %p403
        %p744 = pneg %p427
        %p745 = pneg %p424
        %p746 = pneg %p448
        %p747 = pneg %p445
        %p748 = scmp.lt.s32.totalorder %s36, 1
        %s749 = scalar_select %p748, %s36, 1
        %s750 = smul.addr %s749, 2
        %s751 = scalar_lea.vmem %s2, %s750
        %p752 = scmp.lt.s32.totalorder %s36, 1
        %s753 = scalar_select %p752, %s36, 1
        %s754 = smul.addr %s753, 2
        %s755 = scalar_lea.vmem %s3, %s754
        %p756 = scmp.lt.s32.totalorder %s36, 1
        %s757 = scalar_select %p756, %s36, 1
        %s758 = smul.addr %s757, 6
        %s759 = scalar_lea.vmem %s5, %s758
        %p760 = scmp.lt.s32.totalorder %s36, 1
        %s761 = scalar_select %p760, %s36, 1
        %s762 = smul.addr %s761, 2
        %s763 = scalar_lea.vmem %s7, %s762
        %p764 = scmp.lt.s32.totalorder %s36, 1
        %s765 = scalar_select %p764, %s36, 1
        %s766 = smul.addr %s765, 2
        %s767 = scalar_lea.vmem %s8, %s766
        %p768 = scmp.lt.s32.totalorder %s36, 1
        %s769 = scalar_select %p768, %s36, 1
        %s770 = smul.addr %s769, 2
        %s771 = scalar_lea.vmem %s9, %s770
        %p772 = scmp.lt.s32.totalorder %s36, 1
        %s773 = scalar_select %p772, %s36, 1
        %s774 = smul.addr %s773, 8
        %s775 = scalar_lea.vmem %s11, %s774
        %p776 = scmp.lt.s32.totalorder %s36, 1
        %s777 = scalar_select %p776, %s36, 1
        %s778 = smul.addr %s777, 2
        %s779 = scalar_lea.vmem %s13, %s778
        %p781 = scmp.eq.s32.totalorder %s36, 0
        // Predicated region
        $region101: #{pretrained_backbone_forward.2} parent=83 // pred_check
          %p782 = pneg %p781
        $region102: #{pretrained_backbone_forward.2} parent=83 // pred_check_branch
          %784 = sbr.rel (%p782) target = $region104
        $region103: #{pretrained_backbone_forward.2} parent=83 // pred_region
          %v785 = vld [vmem:[%s0] sm:$0xff]
          %v786 = vld [vmem:[%s0 + $0x8] sm:$0xff]
          %v787 = vld [vmem:[%s0 + $0x10] sm:$0xff]
          %v788 = vld [vmem:[%s0 + $0x18] sm:$0xff]
          %789 = vst [vmem:[#allocation2] sm:$0xff] %v785
          %790 = vst [vmem:[#allocation2 + $0x8] sm:$0xff] %v786
          %791 = vst [vmem:[#allocation2 + $0x10] sm:$0xff] %v787
          %792 = vst [vmem:[#allocation2 + $0x18] sm:$0xff] %v788
        $region104: #{pretrained_backbone_forward.2} parent=83 // pred_fallthru
          _
        %v793 = vld [vmem:[#allocation2] sm:$0xff]
        %v794 = vld [vmem:[#allocation2 + $0x8] sm:$0xff]
        %v795 = vld [vmem:[#allocation2 + $0x10] sm:$0xff]
        %v796 = vld [vmem:[#allocation2 + $0x18] sm:$0xff]
        %v797 = vld [vmem:[%s751] sm:$0x3]
        %v798 = vld [vmem:[%s755] sm:$0x3]
        %v799 = vadd.f32 %v793, %v794
        %800 = vadd.xlane.f32.xlu0 %v799
        %v801 = vpop.xlane.xlu0 %800
        %v802 = vadd.f32 %v795, %v796
        %803 = vadd.xlane.f32.xlu0 %v802
        %v804 = vpop.xlane.xlu0 %803
        %v805 = vrcp.pop 256.0
        %v806 = vmul.f32 %v801, %v805
        %v807 = vmul.f32 %v804, %v805
        %v808 = vsub.f32 %v793, %v806
        %v809 = vsub.f32 %v794, %v806
        %v810 = vsub.f32 %v795, %v807
        %v811 = vsub.f32 %v796, %v807
        %v812 = vmul.f32 %v808, %v808
        %v813 = vmul.f32 %v809, %v809
        %v814 = vmul.f32 %v810, %v810
        %v815 = vmul.f32 %v811, %v811
        %v816 = vadd.f32 %v812, %v813
        %817 = vadd.xlane.f32.xlu0 %v816
        %v818 = vpop.xlane.xlu0 %817
        %v819 = vadd.f32 %v814, %v815
        %820 = vadd.xlane.f32.xlu0 %v819
        %v821 = vpop.xlane.xlu0 %820
        %v822 = vmul.f32 %v818, %v805
        %v823 = vmul.f32 %v821, %v805
        %v824 = vadd.f32 %v822, 1e-05
        %v825 = vadd.f32 %v823, 1e-05
        %v826 = vrsqrt.pop %v824
        %v827 = vrsqrt.pop %v825
        %v828 = vmul.f32 %v808, %v826
        %v829 = vmul.f32 %v809, %v826
        %v830 = vmul.f32 %v810, %v827
        %v831 = vmul.f32 %v811, %v827
        %v833 = vlaneseq
        %v834 = vshrl.u32 %v833, 7
        %v835 = vsub.s32 0, %v834
        %v836 = vrot.slane %v797, %v835
        %v837 = vlaneseq
        %v838 = vshrl.u32 %v837, 7
        %v839 = vsub.s32 1, %v838
        %v840 = vrot.slane %v797, %v839
        %v843 = vmul.f32 %v828, %v836
        %v844 = vmul.f32 %v829, %v840
        %v845 = vmul.f32 %v830, %v836
        %v846 = vmul.f32 %v831, %v840
        %v848 = vlaneseq
        %v849 = vshrl.u32 %v848, 7
        %v850 = vsub.s32 0, %v849
        %v851 = vrot.slane %v798, %v850
        %v852 = vlaneseq
        %v853 = vshrl.u32 %v852, 7
        %v854 = vsub.s32 1, %v853
        %v855 = vrot.slane %v798, %v854
        %v858 = vadd.f32 %v843, %v851
        %v859 = vadd.f32 %v844, %v855
        %v860 = vadd.f32 %v845, %v851
        %v861 = vadd.f32 %v846, %v855
        %v862 = vpack.c.bf16 %v860, %v858
        %v863 = vpack.c.bf16 %v861, %v859
        %v864 = vld [vmem:[%s630] sm:$0xff]
        %v865 = vld [vmem:[%s630 + $0x8] sm:$0xff]
        %v866 = vld [vmem:[%s630 + $0x10] sm:$0xff]
        %v867 = vld [vmem:[%s630 + $0x18] sm:$0xff]
        %v868 = vld [vmem:[%s630 + $0x20] sm:$0xff]
        %v869 = vld [vmem:[%s630 + $0x28] sm:$0xff]
        %v870 = vld [vmem:[%s630 + $0x30] sm:$0xff]
        %v871 = vld [vmem:[%s630 + $0x38] sm:$0xff]
        %v872 = vld [vmem:[%s630 + $0x40] sm:$0xff]
        %v873 = vld [vmem:[%s630 + $0x48] sm:$0xff]
        %v874 = vld [vmem:[%s630 + $0x50] sm:$0xff]
        %v875 = vld [vmem:[%s630 + $0x58] sm:$0xff]
        %v876 = vld [vmem:[%s630 + $0x60] sm:$0xff]
        %v877 = vld [vmem:[%s630 + $0x68] sm:$0xff]
        %v878 = vld [vmem:[%s630 + $0x70] sm:$0xff]
        %v879 = vld [vmem:[%s630 + $0x78] sm:$0xff]
        %v880 = vld [vmem:[%s630 + $0x80] sm:$0xff]
        %v881 = vld [vmem:[%s630 + $0x88] sm:$0xff]
        %v882 = vld [vmem:[%s630 + $0x90] sm:$0xff]
        %v883 = vld [vmem:[%s630 + $0x98] sm:$0xff]
        %v884 = vld [vmem:[%s630 + $0xa0] sm:$0xff]
        %v885 = vld [vmem:[%s630 + $0xa8] sm:$0xff]
        %v886 = vld [vmem:[%s630 + $0xb0] sm:$0xff]
        %v887 = vld [vmem:[%s630 + $0xb8] sm:$0xff]
        %v888 = vld [vmem:[%s630 + $0xc0] sm:$0xff]
        %v889 = vld [vmem:[%s630 + $0xc8] sm:$0xff]
        %v890 = vld [vmem:[%s630 + $0xd0] sm:$0xff]
        %v891 = vld [vmem:[%s630 + $0xd8] sm:$0xff]
        %v892 = vld [vmem:[%s630 + $0xe0] sm:$0xff]
        %v893 = vld [vmem:[%s630 + $0xe8] sm:$0xff]
        %v894 = vld [vmem:[%s630 + $0xf0] sm:$0xff]
        %v895 = vld [vmem:[%s630 + $0xf8] sm:$0xff]
        %v896 = vld [vmem:[%s630 + $0x100] sm:$0xff]
        %v897 = vld [vmem:[%s630 + $0x108] sm:$0xff]
        %v898 = vld [vmem:[%s630 + $0x110] sm:$0xff]
        %v899 = vld [vmem:[%s630 + $0x118] sm:$0xff]
        %v900 = vld [vmem:[%s630 + $0x120] sm:$0xff]
        %v901 = vld [vmem:[%s630 + $0x128] sm:$0xff]
        %v902 = vld [vmem:[%s630 + $0x130] sm:$0xff]
        %v903 = vld [vmem:[%s630 + $0x138] sm:$0xff]
        %v904 = vld [vmem:[%s630 + $0x140] sm:$0xff]
        %v905 = vld [vmem:[%s630 + $0x148] sm:$0xff]
        %v906 = vld [vmem:[%s630 + $0x150] sm:$0xff]
        %v907 = vld [vmem:[%s630 + $0x158] sm:$0xff]
        %v908 = vld [vmem:[%s630 + $0x160] sm:$0xff]
        %v909 = vld [vmem:[%s630 + $0x168] sm:$0xff]
        %v910 = vld [vmem:[%s630 + $0x170] sm:$0xff]
        %v911 = vld [vmem:[%s630 + $0x178] sm:$0xff]
        %v912 = vld [vmem:[%s630 + $0x180] sm:$0xff]
        %v913 = vld [vmem:[%s630 + $0x188] sm:$0xff]
        %v914 = vld [vmem:[%s630 + $0x190] sm:$0xff]
        %v915 = vld [vmem:[%s630 + $0x198] sm:$0xff]
        %v916 = vld [vmem:[%s630 + $0x1a0] sm:$0xff]
        %v917 = vld [vmem:[%s630 + $0x1a8] sm:$0xff]
        %v918 = vld [vmem:[%s630 + $0x1b0] sm:$0xff]
        %v919 = vld [vmem:[%s630 + $0x1b8] sm:$0xff]
        %v920 = vld [vmem:[%s630 + $0x1c0] sm:$0xff]
        %v921 = vld [vmem:[%s630 + $0x1c8] sm:$0xff]
        %v922 = vld [vmem:[%s630 + $0x1d0] sm:$0xff]
        %v923 = vld [vmem:[%s630 + $0x1d8] sm:$0xff]
        %v924 = vld [vmem:[%s630 + $0x1e0] sm:$0xff]
        %v925 = vld [vmem:[%s630 + $0x1e8] sm:$0xff]
        %v926 = vld [vmem:[%s630 + $0x1f0] sm:$0xff]
        %v927 = vld [vmem:[%s630 + $0x1f8] sm:$0xff]
        %v928 = vld [vmem:[%s630 + $0x200] sm:$0xff]
        %v929 = vld [vmem:[%s630 + $0x208] sm:$0xff]
        %v930 = vld [vmem:[%s630 + $0x210] sm:$0xff]
        %v931 = vld [vmem:[%s630 + $0x218] sm:$0xff]
        %v932 = vld [vmem:[%s630 + $0x220] sm:$0xff]
        %v933 = vld [vmem:[%s630 + $0x228] sm:$0xff]
        %v934 = vld [vmem:[%s630 + $0x230] sm:$0xff]
        %v935 = vld [vmem:[%s630 + $0x238] sm:$0xff]
        %v936 = vld [vmem:[%s630 + $0x240] sm:$0xff]
        %v937 = vld [vmem:[%s630 + $0x248] sm:$0xff]
        %v938 = vld [vmem:[%s630 + $0x250] sm:$0xff]
        %v939 = vld [vmem:[%s630 + $0x258] sm:$0xff]
        %v940 = vld [vmem:[%s630 + $0x260] sm:$0xff]
        %v941 = vld [vmem:[%s630 + $0x268] sm:$0xff]
        %v942 = vld [vmem:[%s630 + $0x270] sm:$0xff]
        %v943 = vld [vmem:[%s630 + $0x278] sm:$0xff]
        %v944 = vld [vmem:[%s630 + $0x280] sm:$0xff]
        %v945 = vld [vmem:[%s630 + $0x288] sm:$0xff]
        %v946 = vld [vmem:[%s630 + $0x290] sm:$0xff]
        %v947 = vld [vmem:[%s630 + $0x298] sm:$0xff]
        %v948 = vld [vmem:[%s630 + $0x2a0] sm:$0xff]
        %v949 = vld [vmem:[%s630 + $0x2a8] sm:$0xff]
        %v950 = vld [vmem:[%s630 + $0x2b0] sm:$0xff]
        %v951 = vld [vmem:[%s630 + $0x2b8] sm:$0xff]
        %v952 = vld [vmem:[%s630 + $0x2c0] sm:$0xff]
        %v953 = vld [vmem:[%s630 + $0x2c8] sm:$0xff]
        %v954 = vld [vmem:[%s630 + $0x2d0] sm:$0xff]
        %v955 = vld [vmem:[%s630 + $0x2d8] sm:$0xff]
        %v956 = vld [vmem:[%s630 + $0x2e0] sm:$0xff]
        %v957 = vld [vmem:[%s630 + $0x2e8] sm:$0xff]
        %v958 = vld [vmem:[%s630 + $0x2f0] sm:$0xff]
        %v959 = vld [vmem:[%s630 + $0x2f8] sm:$0xff]
        %v960 = vld [vmem:[%s759] sm:$0x3f]
        %v962 = vlaneseq
        %v963 = vshrl.u32 %v962, 7
        %v964 = vsub.s32 0, %v963
        %v965 = vrot.slane %v960, %v964
        %v966 = vlaneseq
        %v967 = vshrl.u32 %v966, 7
        %v968 = vsub.s32 1, %v967
        %v969 = vrot.slane %v960, %v968
        %v970 = vlaneseq
        %v971 = vshrl.u32 %v970, 7
        %v972 = vsub.s32 2, %v971
        %v973 = vrot.slane %v960, %v972
        %v974 = vlaneseq
        %v975 = vshrl.u32 %v974, 7
        %v976 = vsub.s32 3, %v975
        %v977 = vrot.slane %v960, %v976
        %v978 = vlaneseq
        %v979 = vshrl.u32 %v978, 7
        %v980 = vsub.s32 4, %v979
        %v981 = vrot.slane %v960, %v980
        %v982 = vlaneseq
        %v983 = vshrl.u32 %v982, 7
        %v984 = vsub.s32 5, %v983
        %v985 = vrot.slane %v960, %v984
        %v1088 = vunpack.c.l.b16 %v864
        %v1089 = vunpack.c.h.b16 %v864
        %v1090 = vunpack.c.l.b16 %v865
        %v1091 = vunpack.c.h.b16 %v865
        %v1092 = vunpack.c.l.b16 %v866
        %v1093 = vunpack.c.h.b16 %v866
        %v1094 = vunpack.c.l.b16 %v867
        %v1095 = vunpack.c.h.b16 %v867
        %v1096 = vunpack.c.l.b16 %v868
        %v1097 = vunpack.c.h.b16 %v868
        %v1098 = vunpack.c.l.b16 %v869
        %v1099 = vunpack.c.h.b16 %v869
        %v1100 = vunpack.c.l.b16 %v870
        %v1101 = vunpack.c.h.b16 %v870
        %v1102 = vunpack.c.l.b16 %v871
        %v1103 = vunpack.c.h.b16 %v871
        %v1104 = vunpack.c.l.b16 %v872
        %v1105 = vunpack.c.h.b16 %v872
        %v1106 = vunpack.c.l.b16 %v873
        %v1107 = vunpack.c.h.b16 %v873
        %v1108 = vunpack.c.l.b16 %v874
        %v1109 = vunpack.c.h.b16 %v874
        %v1110 = vunpack.c.l.b16 %v875
        %v1111 = vunpack.c.h.b16 %v875
        %v1112 = vunpack.c.l.b16 %v876
        %v1113 = vunpack.c.h.b16 %v876
        %v1114 = vunpack.c.l.b16 %v877
        %v1115 = vunpack.c.h.b16 %v877
        %v1116 = vunpack.c.l.b16 %v878
        %v1117 = vunpack.c.h.b16 %v878
        %v1118 = vunpack.c.l.b16 %v879
        %v1119 = vunpack.c.h.b16 %v879
        %v1120 = vunpack.c.l.b16 %v880
        %v1121 = vunpack.c.h.b16 %v880
        %v1122 = vunpack.c.l.b16 %v881
        %v1123 = vunpack.c.h.b16 %v881
        %v1124 = vunpack.c.l.b16 %v882
        %v1125 = vunpack.c.h.b16 %v882
        %v1126 = vunpack.c.l.b16 %v883
        %v1127 = vunpack.c.h.b16 %v883
        %v1128 = vunpack.c.l.b16 %v884
        %v1129 = vunpack.c.h.b16 %v884
        %v1130 = vunpack.c.l.b16 %v885
        %v1131 = vunpack.c.h.b16 %v885
        %v1132 = vunpack.c.l.b16 %v886
        %v1133 = vunpack.c.h.b16 %v886
        %v1134 = vunpack.c.l.b16 %v887
        %v1135 = vunpack.c.h.b16 %v887
        %v1136 = vunpack.c.l.b16 %v888
        %v1137 = vunpack.c.h.b16 %v888
        %v1138 = vunpack.c.l.b16 %v889
        %v1139 = vunpack.c.h.b16 %v889
        %v1140 = vunpack.c.l.b16 %v890
        %v1141 = vunpack.c.h.b16 %v890
        %v1142 = vunpack.c.l.b16 %v891
        %v1143 = vunpack.c.h.b16 %v891
        %v1144 = vunpack.c.l.b16 %v892
        %v1145 = vunpack.c.h.b16 %v892
        %v1146 = vunpack.c.l.b16 %v893
        %v1147 = vunpack.c.h.b16 %v893
        %v1148 = vunpack.c.l.b16 %v894
        %v1149 = vunpack.c.h.b16 %v894
        %v1150 = vunpack.c.l.b16 %v895
        %v1151 = vunpack.c.h.b16 %v895
        %v1152 = vunpack.c.l.b16 %v896
        %v1153 = vunpack.c.h.b16 %v896
        %v1154 = vunpack.c.l.b16 %v897
        %v1155 = vunpack.c.h.b16 %v897
        %v1156 = vunpack.c.l.b16 %v898
        %v1157 = vunpack.c.h.b16 %v898
        %v1158 = vunpack.c.l.b16 %v899
        %v1159 = vunpack.c.h.b16 %v899
        %v1160 = vunpack.c.l.b16 %v900
        %v1161 = vunpack.c.h.b16 %v900
        %v1162 = vunpack.c.l.b16 %v901
        %v1163 = vunpack.c.h.b16 %v901
        %v1164 = vunpack.c.l.b16 %v902
        %v1165 = vunpack.c.h.b16 %v902
        %v1166 = vunpack.c.l.b16 %v903
        %v1167 = vunpack.c.h.b16 %v903
        %v1168 = vunpack.c.l.b16 %v904
        %v1169 = vunpack.c.h.b16 %v904
        %v1170 = vunpack.c.l.b16 %v905
        %v1171 = vunpack.c.h.b16 %v905
        %v1172 = vunpack.c.l.b16 %v906
        %v1173 = vunpack.c.h.b16 %v906
        %v1174 = vunpack.c.l.b16 %v907
        %v1175 = vunpack.c.h.b16 %v907
        %v1176 = vunpack.c.l.b16 %v908
        %v1177 = vunpack.c.h.b16 %v908
        %v1178 = vunpack.c.l.b16 %v909
        %v1179 = vunpack.c.h.b16 %v909
        %v1180 = vunpack.c.l.b16 %v910
        %v1181 = vunpack.c.h.b16 %v910
        %v1182 = vunpack.c.l.b16 %v911
        %v1183 = vunpack.c.h.b16 %v911
        %v1184 = vunpack.c.l.b16 %v912
        %v1185 = vunpack.c.h.b16 %v912
        %v1186 = vunpack.c.l.b16 %v913
        %v1187 = vunpack.c.h.b16 %v913
        %v1188 = vunpack.c.l.b16 %v914
        %v1189 = vunpack.c.h.b16 %v914
        %v1190 = vunpack.c.l.b16 %v915
        %v1191 = vunpack.c.h.b16 %v915
        %v1192 = vunpack.c.l.b16 %v916
        %v1193 = vunpack.c.h.b16 %v916
        %v1194 = vunpack.c.l.b16 %v917
        %v1195 = vunpack.c.h.b16 %v917
        %v1196 = vunpack.c.l.b16 %v918
        %v1197 = vunpack.c.h.b16 %v918
        %v1198 = vunpack.c.l.b16 %v919
        %v1199 = vunpack.c.h.b16 %v919
        %v1200 = vunpack.c.l.b16 %v920
        %v1201 = vunpack.c.h.b16 %v920
        %v1202 = vunpack.c.l.b16 %v921
        %v1203 = vunpack.c.h.b16 %v921
        %v1204 = vunpack.c.l.b16 %v922
        %v1205 = vunpack.c.h.b16 %v922
        %v1206 = vunpack.c.l.b16 %v923
        %v1207 = vunpack.c.h.b16 %v923
        %v1208 = vunpack.c.l.b16 %v924
        %v1209 = vunpack.c.h.b16 %v924
        %v1210 = vunpack.c.l.b16 %v925
        %v1211 = vunpack.c.h.b16 %v925
        %v1212 = vunpack.c.l.b16 %v926
        %v1213 = vunpack.c.h.b16 %v926
        %v1214 = vunpack.c.l.b16 %v927
        %v1215 = vunpack.c.h.b16 %v927
        %v1216 = vunpack.c.l.b16 %v928
        %v1217 = vunpack.c.h.b16 %v928
        %v1218 = vunpack.c.l.b16 %v929
        %v1219 = vunpack.c.h.b16 %v929
        %v1220 = vunpack.c.l.b16 %v930
        %v1221 = vunpack.c.h.b16 %v930
        %v1222 = vunpack.c.l.b16 %v931
        %v1223 = vunpack.c.h.b16 %v931
        %v1224 = vunpack.c.l.b16 %v932
        %v1225 = vunpack.c.h.b16 %v932
        %v1226 = vunpack.c.l.b16 %v933
        %v1227 = vunpack.c.h.b16 %v933
        %v1228 = vunpack.c.l.b16 %v934
        %v1229 = vunpack.c.h.b16 %v934
        %v1230 = vunpack.c.l.b16 %v935
        %v1231 = vunpack.c.h.b16 %v935
        %v1232 = vunpack.c.l.b16 %v936
        %v1233 = vunpack.c.h.b16 %v936
        %v1234 = vunpack.c.l.b16 %v937
        %v1235 = vunpack.c.h.b16 %v937
        %v1236 = vunpack.c.l.b16 %v938
        %v1237 = vunpack.c.h.b16 %v938
        %v1238 = vunpack.c.l.b16 %v939
        %v1239 = vunpack.c.h.b16 %v939
        %v1240 = vunpack.c.l.b16 %v940
        %v1241 = vunpack.c.h.b16 %v940
        %v1242 = vunpack.c.l.b16 %v941
        %v1243 = vunpack.c.h.b16 %v941
        %v1244 = vunpack.c.l.b16 %v942
        %v1245 = vunpack.c.h.b16 %v942
        %v1246 = vunpack.c.l.b16 %v943
        %v1247 = vunpack.c.h.b16 %v943
        %v1248 = vunpack.c.l.b16 %v944
        %v1249 = vunpack.c.h.b16 %v944
        %v1250 = vunpack.c.l.b16 %v945
        %v1251 = vunpack.c.h.b16 %v945
        %v1252 = vunpack.c.l.b16 %v946
        %v1253 = vunpack.c.h.b16 %v946
        %v1254 = vunpack.c.l.b16 %v947
        %v1255 = vunpack.c.h.b16 %v947
        %v1256 = vunpack.c.l.b16 %v948
        %v1257 = vunpack.c.h.b16 %v948
        %v1258 = vunpack.c.l.b16 %v949
        %v1259 = vunpack.c.h.b16 %v949
        %v1260 = vunpack.c.l.b16 %v950
        %v1261 = vunpack.c.h.b16 %v950
        %v1262 = vunpack.c.l.b16 %v951
        %v1263 = vunpack.c.h.b16 %v951
        %v1264 = vunpack.c.l.b16 %v952
        %v1265 = vunpack.c.h.b16 %v952
        %v1266 = vunpack.c.l.b16 %v953
        %v1267 = vunpack.c.h.b16 %v953
        %v1268 = vunpack.c.l.b16 %v954
        %v1269 = vunpack.c.h.b16 %v954
        %v1270 = vunpack.c.l.b16 %v955
        %v1271 = vunpack.c.h.b16 %v955
        %v1272 = vunpack.c.l.b16 %v956
        %v1273 = vunpack.c.h.b16 %v956
        %v1274 = vunpack.c.l.b16 %v957
        %v1275 = vunpack.c.h.b16 %v957
        %v1276 = vunpack.c.l.b16 %v958
        %v1277 = vunpack.c.h.b16 %v958
        %v1278 = vunpack.c.l.b16 %v959
        %v1279 = vunpack.c.h.b16 %v959
        %v1280 = vpack.c.b16 %v1094, %v1088
        %v1281 = vpack.c.b16 %v1095, %v1089
        %v1282 = vpack.c.b16 %v1096, %v1090
        %v1283 = vpack.c.b16 %v1097, %v1091
        %v1284 = vpack.c.b16 %v1098, %v1092
        %v1285 = vpack.c.b16 %v1099, %v1093
        %v1286 = vpack.c.b16 %v1106, %v1100
        %v1287 = vpack.c.b16 %v1107, %v1101
        %v1288 = vpack.c.b16 %v1108, %v1102
        %v1289 = vpack.c.b16 %v1109, %v1103
        %v1290 = vpack.c.b16 %v1110, %v1104
        %v1291 = vpack.c.b16 %v1111, %v1105
        %v1292 = vpack.c.b16 %v1118, %v1112
        %v1293 = vpack.c.b16 %v1119, %v1113
        %v1294 = vpack.c.b16 %v1120, %v1114
        %v1295 = vpack.c.b16 %v1121, %v1115
        %v1296 = vpack.c.b16 %v1122, %v1116
        %v1297 = vpack.c.b16 %v1123, %v1117
        %v1298 = vpack.c.b16 %v1130, %v1124
        %v1299 = vpack.c.b16 %v1131, %v1125
        %v1300 = vpack.c.b16 %v1132, %v1126
        %v1301 = vpack.c.b16 %v1133, %v1127
        %v1302 = vpack.c.b16 %v1134, %v1128
        %v1303 = vpack.c.b16 %v1135, %v1129
        %v1304 = vpack.c.b16 %v1142, %v1136
        %v1305 = vpack.c.b16 %v1143, %v1137
        %v1306 = vpack.c.b16 %v1144, %v1138
        %v1307 = vpack.c.b16 %v1145, %v1139
        %v1308 = vpack.c.b16 %v1146, %v1140
        %v1309 = vpack.c.b16 %v1147, %v1141
        %v1310 = vpack.c.b16 %v1154, %v1148
        %v1311 = vpack.c.b16 %v1155, %v1149
        %v1312 = vpack.c.b16 %v1156, %v1150
        %v1313 = vpack.c.b16 %v1157, %v1151
        %v1314 = vpack.c.b16 %v1158, %v1152
        %v1315 = vpack.c.b16 %v1159, %v1153
        %v1316 = vpack.c.b16 %v1166, %v1160
        %v1317 = vpack.c.b16 %v1167, %v1161
        %v1318 = vpack.c.b16 %v1168, %v1162
        %v1319 = vpack.c.b16 %v1169, %v1163
        %v1320 = vpack.c.b16 %v1170, %v1164
        %v1321 = vpack.c.b16 %v1171, %v1165
        %v1322 = vpack.c.b16 %v1178, %v1172
        %v1323 = vpack.c.b16 %v1179, %v1173
        %v1324 = vpack.c.b16 %v1180, %v1174
        %v1325 = vpack.c.b16 %v1181, %v1175
        %v1326 = vpack.c.b16 %v1182, %v1176
        %v1327 = vpack.c.b16 %v1183, %v1177
        %v1328 = vpack.c.b16 %v1190, %v1184
        %v1329 = vpack.c.b16 %v1191, %v1185
        %v1330 = vpack.c.b16 %v1192, %v1186
        %v1331 = vpack.c.b16 %v1193, %v1187
        %v1332 = vpack.c.b16 %v1194, %v1188
        %v1333 = vpack.c.b16 %v1195, %v1189
        %v1334 = vpack.c.b16 %v1202, %v1196
        %v1335 = vpack.c.b16 %v1203, %v1197
        %v1336 = vpack.c.b16 %v1204, %v1198
        %v1337 = vpack.c.b16 %v1205, %v1199
        %v1338 = vpack.c.b16 %v1206, %v1200
        %v1339 = vpack.c.b16 %v1207, %v1201
        %v1340 = vpack.c.b16 %v1214, %v1208
        %v1341 = vpack.c.b16 %v1215, %v1209
        %v1342 = vpack.c.b16 %v1216, %v1210
        %v1343 = vpack.c.b16 %v1217, %v1211
        %v1344 = vpack.c.b16 %v1218, %v1212
        %v1345 = vpack.c.b16 %v1219, %v1213
        %v1346 = vpack.c.b16 %v1226, %v1220
        %v1347 = vpack.c.b16 %v1227, %v1221
        %v1348 = vpack.c.b16 %v1228, %v1222
        %v1349 = vpack.c.b16 %v1229, %v1223
        %v1350 = vpack.c.b16 %v1230, %v1224
        %v1351 = vpack.c.b16 %v1231, %v1225
        %v1352 = vpack.c.b16 %v1238, %v1232
        %v1353 = vpack.c.b16 %v1239, %v1233
        %v1354 = vpack.c.b16 %v1240, %v1234
        %v1355 = vpack.c.b16 %v1241, %v1235
        %v1356 = vpack.c.b16 %v1242, %v1236
        %v1357 = vpack.c.b16 %v1243, %v1237
        %v1358 = vpack.c.b16 %v1250, %v1244
        %v1359 = vpack.c.b16 %v1251, %v1245
        %v1360 = vpack.c.b16 %v1252, %v1246
        %v1361 = vpack.c.b16 %v1253, %v1247
        %v1362 = vpack.c.b16 %v1254, %v1248
        %v1363 = vpack.c.b16 %v1255, %v1249
        %v1364 = vpack.c.b16 %v1262, %v1256
        %v1365 = vpack.c.b16 %v1263, %v1257
        %v1366 = vpack.c.b16 %v1264, %v1258
        %v1367 = vpack.c.b16 %v1265, %v1259
        %v1368 = vpack.c.b16 %v1266, %v1260
        %v1369 = vpack.c.b16 %v1267, %v1261
        %v1370 = vpack.c.b16 %v1274, %v1268
        %v1371 = vpack.c.b16 %v1275, %v1269
        %v1372 = vpack.c.b16 %v1276, %v1270
        %v1373 = vpack.c.b16 %v1277, %v1271
        %v1374 = vpack.c.b16 %v1278, %v1272
        %v1375 = vpack.c.b16 %v1279, %v1273
        %1472 = vmatprep.subr.bf16.mxu0 %v1323
        %1473 = vmatpush1.bf16.msra.mxu0 %v1322
        %1474 = vmatprep.subr.bf16.mxu0 %v1317
        %1475 = vmatpush1.bf16.msra.mxu0 %v1316
        %1476 = vmatprep.subr.bf16.mxu0 %v1311
        %1477 = vmatpush1.bf16.msra.mxu0 %v1310
        %1478 = vmatprep.subr.bf16.mxu0 %v1305
        %1479 = vmatpush1.bf16.msra.mxu0 %v1304
        %1480 = vmatprep.subr.bf16.mxu0 %v1299
        %1481 = vmatpush1.bf16.msra.mxu0 %v1298
        %1482 = vmatprep.subr.bf16.mxu0 %v1293
        %1483 = vmatpush1.bf16.msra.mxu0 %v1292
        %1484 = vmatprep.subr.bf16.mxu0 %v1287
        %1485 = vmatpush1.bf16.msra.mxu0 %v1286
        %1486 = vmatprep.subr.bf16.mxu0 %v1281
        %1487 = vmatpush1.bf16.msra.mxu0 %v1280
        %1488 = vmatprep.subr.bf16.mxu0 %v1371
        %1489 = vmatpush2.bf16.msra.mxu0 %v1370
        %1490 = vmatprep.subr.bf16.mxu0 %v1365
        %1491 = vmatpush2.bf16.msra.mxu0 %v1364
        %1492 = vmatprep.subr.bf16.mxu0 %v1359
        %1493 = vmatpush2.bf16.msra.mxu0 %v1358
        %1494 = vmatprep.subr.bf16.mxu0 %v1353
        %1495 = vmatpush2.bf16.msra.mxu0 %v1352
        %1496 = vmatprep.subr.bf16.mxu0 %v1347
        %1497 = vmatpush2.bf16.msra.mxu0 %v1346
        %1498 = vmatprep.subr.bf16.mxu0 %v1341
        %1499 = vmatpush2.bf16.msra.mxu0 %v1340
        %1500 = vmatprep.subr.bf16.mxu0 %v1335
        %1501 = vmatpush2.bf16.msra.mxu0 %v1334
        %1502 = vmatprep.subr.bf16.mxu0 %v1329
        %1503 = vmatpush2.bf16.msra.mxu0 %v1328
        %1504 = vmatprep.mubr.bf16.mxu0 %v863
        %1505 = vmatmul.mubr.bf16.gmra.mxu0 %v862
        %v1506 = vpop.f32.mrf.mxu0
        %v1507 = vadd.f32 %v965, %v1506
        %v1508 = vpop.f32.mrf.mxu0
        %v1509 = vadd.f32 %v969, %v1508
        %v1510 = vpop.f32.mrf.mxu0
        %v1511 = vadd.f32 %v965, %v1510
        %v1512 = vpop.f32.mrf.mxu0
        %v1513 = vadd.f32 %v969, %v1512
        %1514 = vdwg.mxu0
        %1515 = vmatprep.subr.bf16.mxu0 %v1325
        %1516 = vmatpush1.bf16.msra.mxu0 %v1324
        %1517 = vmatprep.subr.bf16.mxu0 %v1319
        %1518 = vmatpush1.bf16.msra.mxu0 %v1318
        %1519 = vmatprep.subr.bf16.mxu0 %v1313
        %1520 = vmatpush1.bf16.msra.mxu0 %v1312
        %1521 = vmatprep.subr.bf16.mxu0 %v1307
        %1522 = vmatpush1.bf16.msra.mxu0 %v1306
        %1523 = vmatprep.subr.bf16.mxu0 %v1301
        %1524 = vmatpush1.bf16.msra.mxu0 %v1300
        %1525 = vmatprep.subr.bf16.mxu0 %v1295
        %1526 = vmatpush1.bf16.msra.mxu0 %v1294
        %1527 = vmatprep.subr.bf16.mxu0 %v1289
        %1528 = vmatpush1.bf16.msra.mxu0 %v1288
        %1529 = vmatprep.subr.bf16.mxu0 %v1283
        %1530 = vmatpush1.bf16.msra.mxu0 %v1282
        %1531 = vmatprep.subr.bf16.mxu0 %v1373
        %1532 = vmatpush2.bf16.msra.mxu0 %v1372
        %1533 = vmatprep.subr.bf16.mxu0 %v1367
        %1534 = vmatpush2.bf16.msra.mxu0 %v1366
        %1535 = vmatprep.subr.bf16.mxu0 %v1361
        %1536 = vmatpush2.bf16.msra.mxu0 %v1360
        %1537 = vmatprep.subr.bf16.mxu0 %v1355
        %1538 = vmatpush2.bf16.msra.mxu0 %v1354
        %1539 = vmatprep.subr.bf16.mxu0 %v1349
        %1540 = vmatpush2.bf16.msra.mxu0 %v1348
        %1541 = vmatprep.subr.bf16.mxu0 %v1343
        %1542 = vmatpush2.bf16.msra.mxu0 %v1342
        %1543 = vmatprep.subr.bf16.mxu0 %v1337
        %1544 = vmatpush2.bf16.msra.mxu0 %v1336
        %1545 = vmatprep.subr.bf16.mxu0 %v1331
        %1546 = vmatpush2.bf16.msra.mxu0 %v1330
        %1547 = vmatprep.mubr.bf16.mxu0 %v863
        %1548 = vmatmul.mubr.bf16.gmra.mxu0 %v862
        %v1549 = vpop.f32.mrf.mxu0
        %v1550 = vadd.f32 %v973, %v1549
        %v1551 = vpop.f32.mrf.mxu0
        %v1552 = vadd.f32 %v977, %v1551
        %v1553 = vpop.f32.mrf.mxu0
        %v1554 = vadd.f32 %v973, %v1553
        %v1555 = vpop.f32.mrf.mxu0
        %v1556 = vadd.f32 %v977, %v1555
        %1557 = vdwg.mxu0
        %1558 = vmatprep.subr.bf16.mxu0 %v1327
        %1559 = vmatpush1.bf16.msra.mxu0 %v1326
        %1560 = vmatprep.subr.bf16.mxu0 %v1321
        %1561 = vmatpush1.bf16.msra.mxu0 %v1320
        %1562 = vmatprep.subr.bf16.mxu0 %v1315
        %1563 = vmatpush1.bf16.msra.mxu0 %v1314
        %1564 = vmatprep.subr.bf16.mxu0 %v1309
        %1565 = vmatpush1.bf16.msra.mxu0 %v1308
        %1566 = vmatprep.subr.bf16.mxu0 %v1303
        %1567 = vmatpush1.bf16.msra.mxu0 %v1302
        %1568 = vmatprep.subr.bf16.mxu0 %v1297
        %1569 = vmatpush1.bf16.msra.mxu0 %v1296
        %1570 = vmatprep.subr.bf16.mxu0 %v1291
        %1571 = vmatpush1.bf16.msra.mxu0 %v1290
        %1572 = vmatprep.subr.bf16.mxu0 %v1285
        %1573 = vmatpush1.bf16.msra.mxu0 %v1284
        %1574 = vmatprep.subr.bf16.mxu0 %v1375
        %1575 = vmatpush2.bf16.msra.mxu0 %v1374
        %1576 = vmatprep.subr.bf16.mxu0 %v1369
        %1577 = vmatpush2.bf16.msra.mxu0 %v1368
        %1578 = vmatprep.subr.bf16.mxu0 %v1363
        %1579 = vmatpush2.bf16.msra.mxu0 %v1362
        %1580 = vmatprep.subr.bf16.mxu0 %v1357
        %1581 = vmatpush2.bf16.msra.mxu0 %v1356
        %1582 = vmatprep.subr.bf16.mxu0 %v1351
        %1583 = vmatpush2.bf16.msra.mxu0 %v1350
        %1584 = vmatprep.subr.bf16.mxu0 %v1345
        %1585 = vmatpush2.bf16.msra.mxu0 %v1344
        %1586 = vmatprep.subr.bf16.mxu0 %v1339
        %1587 = vmatpush2.bf16.msra.mxu0 %v1338
        %1588 = vmatprep.subr.bf16.mxu0 %v1333
        %1589 = vmatpush2.bf16.msra.mxu0 %v1332
        %1590 = vmatprep.mubr.bf16.mxu0 %v863
        %1591 = vmatmul.mubr.bf16.gmra.mxu0 %v862
        %v1592 = vpop.f32.mrf.mxu0
        %v1593 = vadd.f32 %v981, %v1592
        %v1594 = vpop.f32.mrf.mxu0
        %v1595 = vadd.f32 %v985, %v1594
        %v1596 = vpop.f32.mrf.mxu0
        %v1597 = vadd.f32 %v981, %v1596
        %v1598 = vpop.f32.mrf.mxu0
        %v1599 = vadd.f32 %v985, %v1598
        %1600 = vdwg.mxu0
        %v1601 = vld [vmem:[%s1] sm:$0xff]
        %v1602 = vpack.c.bf16 %v1507, %v1507
        %v1603 = vpack.c.bf16 %v1511, %v1511
        %v1604 = vpack.c.bf16 %v1550, %v1550
        %v1605 = vpack.c.bf16 %v1554, %v1554
        %v1606 = vpack.c.bf16 %v1593, %v1593
        %v1607 = vpack.c.bf16 %v1597, %v1597
        %1608 = vmatprep.subr.bf16.mxu0 0
        %1609 = vmatpush1.bf16.xpose.msra.mxu0 0
        %1610 = vmatprep.subr.bf16.mxu0 0
        %1611 = vmatpush1.bf16.xpose.msra.mxu0 0
        %1612 = vmatprep.subr.bf16.mxu0 0
        %1613 = vmatpush1.bf16.xpose.msra.mxu0 0
        %1614 = vmatprep.subr.bf16.mxu0 0
        %1615 = vmatpush1.bf16.xpose.msra.mxu0 0
        %1616 = vmatprep.subr.bf16.mxu0 0
        %1617 = vmatpush1.bf16.xpose.msra.mxu0 0
        %1618 = vmatprep.subr.bf16.mxu0 0
        %1619 = vmatpush1.bf16.xpose.msra.mxu0 0
        %1620 = vmatprep.subr.bf16.mxu0 0
        %1621 = vmatpush1.bf16.xpose.msra.mxu0 0
        %1622 = vmatprep.subr.bf16.mxu0 0
        %1623 = vmatpush1.bf16.xpose.msra.mxu0 %v1604
        %1624 = vmatprep.subr.bf16.mxu0 0
        %1625 = vmatpush2.bf16.xpose.msra.mxu0 0
        %1626 = vmatprep.subr.bf16.mxu0 0
        %1627 = vmatpush2.bf16.xpose.msra.mxu0 0
        %1628 = vmatprep.subr.bf16.mxu0 0
        %1629 = vmatpush2.bf16.xpose.msra.mxu0 0
        %1630 = vmatprep.subr.bf16.mxu0 0
        %1631 = vmatpush2.bf16.xpose.msra.mxu0 0
        %1632 = vmatprep.subr.bf16.mxu0 0
        %1633 = vmatpush2.bf16.xpose.msra.mxu0 0
        %1634 = vmatprep.subr.bf16.mxu0 0
        %1635 = vmatpush2.bf16.xpose.msra.mxu0 0
        %1636 = vmatprep.subr.bf16.mxu0 0
        %1637 = vmatpush2.bf16.xpose.msra.mxu0 0
        %1638 = vmatprep.subr.bf16.mxu0 0
        %1639 = vmatpush2.bf16.xpose.msra.mxu0 0
        %1640 = vmatprep.mubr.bf16.mxu0 0
        %1641 = vmatmul.mubr.bf16.gmra.mxu0 %v1602
        %v1642 = vpop.f32.mrf.mxu0
        %v1643 = vadd.f32 0.0, %v1642
        %v1644 = vpop.f32.mrf.mxu0
        %v1645 = vpop.f32.mrf.mxu0
        %v1646 = vpop.f32.mrf.mxu0
        %1647 = vdwg.mxu0
        %1648 = vmatprep.subr.bf16.mxu0 0
        %1649 = vmatpush1.bf16.xpose.msra.mxu0 0
        %1650 = vmatprep.subr.bf16.mxu0 0
        %1651 = vmatpush1.bf16.xpose.msra.mxu0 0
        %1652 = vmatprep.subr.bf16.mxu0 0
        %1653 = vmatpush1.bf16.xpose.msra.mxu0 0
        %1654 = vmatprep.subr.bf16.mxu0 0
        %1655 = vmatpush1.bf16.xpose.msra.mxu0 0
        %1656 = vmatprep.subr.bf16.mxu0 0
        %1657 = vmatpush1.bf16.xpose.msra.mxu0 0
        %1658 = vmatprep.subr.bf16.mxu0 0
        %1659 = vmatpush1.bf16.xpose.msra.mxu0 0
        %1660 = vmatprep.subr.bf16.mxu0 0
        %1661 = vmatpush1.bf16.xpose.msra.mxu0 0
        %1662 = vmatprep.subr.bf16.mxu0 0
        %1663 = vmatpush1.bf16.xpose.msra.mxu0 %v1605
        %1664 = vmatprep.subr.bf16.mxu0 0
        %1665 = vmatpush2.bf16.xpose.msra.mxu0 0
        %1666 = vmatprep.subr.bf16.mxu0 0
        %1667 = vmatpush2.bf16.xpose.msra.mxu0 0
        %1668 = vmatprep.subr.bf16.mxu0 0
        %1669 = vmatpush2.bf16.xpose.msra.mxu0 0
        %1670 = vmatprep.subr.bf16.mxu0 0
        %1671 = vmatpush2.bf16.xpose.msra.mxu0 0
        %1672 = vmatprep.subr.bf16.mxu0 0
        %1673 = vmatpush2.bf16.xpose.msra.mxu0 0
        %1674 = vmatprep.subr.bf16.mxu0 0
        %1675 = vmatpush2.bf16.xpose.msra.mxu0 0
        %1676 = vmatprep.subr.bf16.mxu0 0
        %1677 = vmatpush2.bf16.xpose.msra.mxu0 0
        %1678 = vmatprep.subr.bf16.mxu0 0
        %1679 = vmatpush2.bf16.xpose.msra.mxu0 0
        %1680 = vmatprep.mubr.bf16.mxu0 0
        %1681 = vmatmul.mubr.bf16.gmra.mxu0 %v1603
        %v1682 = vpop.f32.mrf.mxu0
        %v1683 = vadd.f32 0.0, %v1682
        %v1684 = vpop.f32.mrf.mxu0
        %v1685 = vpop.f32.mrf.mxu0
        %v1686 = vpop.f32.mrf.mxu0
        %1687 = vdwg.mxu0
        %v1688 = vmul.f32 %v1643, 0.088388346
        %v1689 = vmul.f32 %v1683, 0.088388346
        %v1690 = vadd.f32 %v1688, %v1601
        %v1691 = vadd.f32 %v1689, %v1601
        %vm1692 = vcmask 64512
        %v1693 = vsel %vm1692, %v1690, -inf
        %1694 = vmax.xlane.f32.xlu0 %v1693
        %v1695 = vpop.xlane.xlu0 %1694
        %v1696 = vsel %vm1692, %v1691, -inf
        %1697 = vmax.xlane.f32.xlu0 %v1696
        %v1698 = vpop.xlane.xlu0 %1697
        %v1699 = vsub.f32 %v1690, %v1695
        %v1700 = vsub.f32 %v1691, %v1698
        %v1701 = vmul.f32 %v1699, 1.442695
        %v1702 = vpow.pop %v1701
        %v1703 = vmul.f32 %v1700, 1.442695
        %v1704 = vpow.pop %v1703
        %v1705 = vsel %vm1692, %v1702, 0.0
        %1706 = vadd.xlane.f32.xlu0 %v1705
        %v1707 = vpop.xlane.xlu0 %1706
        %v1708 = vsel %vm1692, %v1704, 0.0
        %1709 = vadd.xlane.f32.xlu0 %v1708
        %v1710 = vpop.xlane.xlu0 %1709
        %v1711 = vpack.c.bf16 %v1702, %v1702
        %v1712 = vpack.c.bf16 %v1704, %v1704
        %v1714 = vsel %vm1692, %v1711, 0
        %vm1716 = vcmask 1043456
        %v1718 = vsel %vm1716, %v1606, 0
        %1720 = vmatprep.subr.bf16.mxu0 0
        %1721 = vmatpush1.bf16.msra.mxu0 0
        %1722 = vmatprep.subr.bf16.mxu0 0
        %1723 = vmatpush1.bf16.msra.mxu0 0
        %1724 = vmatprep.subr.bf16.mxu0 0
        %1725 = vmatpush1.bf16.msra.mxu0 0
        %1726 = vmatprep.subr.bf16.mxu0 0
        %1727 = vmatpush1.bf16.msra.mxu0 0
        %1728 = vmatprep.subr.bf16.mxu0 0
        %1729 = vmatpush1.bf16.msra.mxu0 0
        %1730 = vmatprep.subr.bf16.mxu0 0
        %1731 = vmatpush1.bf16.msra.mxu0 0
        %1732 = vmatprep.subr.bf16.mxu0 0
        %1733 = vmatpush1.bf16.msra.mxu0 0
        %1734 = vmatprep.subr.bf16.mxu0 0
        %1735 = vmatpush1.bf16.msra.mxu0 %v1718
        %1736 = vmatprep.subr.bf16.mxu0 0
        %1737 = vmatpush2.bf16.msra.mxu0 0
        %1738 = vmatprep.subr.bf16.mxu0 0
        %1739 = vmatpush2.bf16.msra.mxu0 0
        %1740 = vmatprep.subr.bf16.mxu0 0
        %1741 = vmatpush2.bf16.msra.mxu0 0
        %1742 = vmatprep.subr.bf16.mxu0 0
        %1743 = vmatpush2.bf16.msra.mxu0 0
        %1744 = vmatprep.subr.bf16.mxu0 0
        %1745 = vmatpush2.bf16.msra.mxu0 0
        %1746 = vmatprep.subr.bf16.mxu0 0
        %1747 = vmatpush2.bf16.msra.mxu0 0
        %1748 = vmatprep.subr.bf16.mxu0 0
        %1749 = vmatpush2.bf16.msra.mxu0 0
        %1750 = vmatprep.subr.bf16.mxu0 0
        %1751 = vmatpush2.bf16.msra.mxu0 0
        %1752 = vmatprep.mubr.bf16.mxu0 0
        %1753 = vmatmul.mubr.bf16.gmra.mxu0 %v1714
        %v1754 = vpop.f32.mrf.mxu0
        %v1755 = vadd.f32 0.0, %v1754
        %v1756 = vpop.f32.mrf.mxu0
        %v1757 = vpop.f32.mrf.mxu0
        %v1758 = vpop.f32.mrf.mxu0
        %1759 = vdwg.mxu0
        %v1761 = vsel %vm1692, %v1712, 0
        %v1764 = vsel %vm1716, %v1607, 0
        %1766 = vmatprep.subr.bf16.mxu0 0
        %1767 = vmatpush1.bf16.msra.mxu0 0
        %1768 = vmatprep.subr.bf16.mxu0 0
        %1769 = vmatpush1.bf16.msra.mxu0 0
        %1770 = vmatprep.subr.bf16.mxu0 0
        %1771 = vmatpush1.bf16.msra.mxu0 0
        %1772 = vmatprep.subr.bf16.mxu0 0
        %1773 = vmatpush1.bf16.msra.mxu0 0
        %1774 = vmatprep.subr.bf16.mxu0 0
        %1775 = vmatpush1.bf16.msra.mxu0 0
        %1776 = vmatprep.subr.bf16.mxu0 0
        %1777 = vmatpush1.bf16.msra.mxu0 0
        %1778 = vmatprep.subr.bf16.mxu0 0
        %1779 = vmatpush1.bf16.msra.mxu0 0
        %1780 = vmatprep.subr.bf16.mxu0 0
        %1781 = vmatpush1.bf16.msra.mxu0 %v1764
        %1782 = vmatprep.subr.bf16.mxu0 0
        %1783 = vmatpush2.bf16.msra.mxu0 0
        %1784 = vmatprep.subr.bf16.mxu0 0
        %1785 = vmatpush2.bf16.msra.mxu0 0
        %1786 = vmatprep.subr.bf16.mxu0 0
        %1787 = vmatpush2.bf16.msra.mxu0 0
        %1788 = vmatprep.subr.bf16.mxu0 0
        %1789 = vmatpush2.bf16.msra.mxu0 0
        %1790 = vmatprep.subr.bf16.mxu0 0
        %1791 = vmatpush2.bf16.msra.mxu0 0
        %1792 = vmatprep.subr.bf16.mxu0 0
        %1793 = vmatpush2.bf16.msra.mxu0 0
        %1794 = vmatprep.subr.bf16.mxu0 0
        %1795 = vmatpush2.bf16.msra.mxu0 0
        %1796 = vmatprep.subr.bf16.mxu0 0
        %1797 = vmatpush2.bf16.msra.mxu0 0
        %1798 = vmatprep.mubr.bf16.mxu0 0
        %1799 = vmatmul.mubr.bf16.gmra.mxu0 %v1761
        %v1800 = vpop.f32.mrf.mxu0
        %v1801 = vadd.f32 0.0, %v1800
        %v1802 = vpop.f32.mrf.mxu0
        %v1803 = vpop.f32.mrf.mxu0
        %v1804 = vpop.f32.mrf.mxu0
        %1805 = vdwg.mxu0
        %v1806 = vrcp.pop %v1707
        %v1807 = vrcp.pop %v1710
        %v1808 = vmul.f32 %v1755, %v1806
        %v1809 = vmul.f32 %v1801, %v1807
        %v1810 = vpack.c.bf16 %v1509, %v1509
        %v1811 = vpack.c.bf16 %v1513, %v1513
        %v1812 = vpack.c.bf16 %v1552, %v1552
        %v1813 = vpack.c.bf16 %v1556, %v1556
        %v1814 = vpack.c.bf16 %v1595, %v1595
        %v1815 = vpack.c.bf16 %v1599, %v1599
        %1816 = vmatprep.subr.bf16.mxu0 0
        %1817 = vmatpush1.bf16.xpose.msra.mxu0 0
        %1818 = vmatprep.subr.bf16.mxu0 0
        %1819 = vmatpush1.bf16.xpose.msra.mxu0 0
        %1820 = vmatprep.subr.bf16.mxu0 0
        %1821 = vmatpush1.bf16.xpose.msra.mxu0 0
        %1822 = vmatprep.subr.bf16.mxu0 0
        %1823 = vmatpush1.bf16.xpose.msra.mxu0 0
        %1824 = vmatprep.subr.bf16.mxu0 0
        %1825 = vmatpush1.bf16.xpose.msra.mxu0 0
        %1826 = vmatprep.subr.bf16.mxu0 0
        %1827 = vmatpush1.bf16.xpose.msra.mxu0 0
        %1828 = vmatprep.subr.bf16.mxu0 0
        %1829 = vmatpush1.bf16.xpose.msra.mxu0 0
        %1830 = vmatprep.subr.bf16.mxu0 0
        %1831 = vmatpush1.bf16.xpose.msra.mxu0 %v1812
        %1832 = vmatprep.subr.bf16.mxu0 0
        %1833 = vmatpush2.bf16.xpose.msra.mxu0 0
        %1834 = vmatprep.subr.bf16.mxu0 0
        %1835 = vmatpush2.bf16.xpose.msra.mxu0 0
        %1836 = vmatprep.subr.bf16.mxu0 0
        %1837 = vmatpush2.bf16.xpose.msra.mxu0 0
        %1838 = vmatprep.subr.bf16.mxu0 0
        %1839 = vmatpush2.bf16.xpose.msra.mxu0 0
        %1840 = vmatprep.subr.bf16.mxu0 0
        %1841 = vmatpush2.bf16.xpose.msra.mxu0 0
        %1842 = vmatprep.subr.bf16.mxu0 0
        %1843 = vmatpush2.bf16.xpose.msra.mxu0 0
        %1844 = vmatprep.subr.bf16.mxu0 0
        %1845 = vmatpush2.bf16.xpose.msra.mxu0 0
        %1846 = vmatprep.subr.bf16.mxu0 0
        %1847 = vmatpush2.bf16.xpose.msra.mxu0 0
        %1848 = vmatprep.mubr.bf16.mxu0 0
        %1849 = vmatmul.mubr.bf16.gmra.mxu0 %v1810
        %v1850 = vpop.f32.mrf.mxu0
        %v1851 = vadd.f32 0.0, %v1850
        %v1852 = vpop.f32.mrf.mxu0
        %v1853 = vpop.f32.mrf.mxu0
        %v1854 = vpop.f32.mrf.mxu0
        %1855 = vdwg.mxu0
        %1856 = vmatprep.subr.bf16.mxu0 0
        %1857 = vmatpush1.bf16.xpose.msra.mxu0 0
        %1858 = vmatprep.subr.bf16.mxu0 0
        %1859 = vmatpush1.bf16.xpose.msra.mxu0 0
        %1860 = vmatprep.subr.bf16.mxu0 0
        %1861 = vmatpush1.bf16.xpose.msra.mxu0 0
        %1862 = vmatprep.subr.bf16.mxu0 0
        %1863 = vmatpush1.bf16.xpose.msra.mxu0 0
        %1864 = vmatprep.subr.bf16.mxu0 0
        %1865 = vmatpush1.bf16.xpose.msra.mxu0 0
        %1866 = vmatprep.subr.bf16.mxu0 0
        %1867 = vmatpush1.bf16.xpose.msra.mxu0 0
        %1868 = vmatprep.subr.bf16.mxu0 0
        %1869 = vmatpush1.bf16.xpose.msra.mxu0 0
        %1870 = vmatprep.subr.bf16.mxu0 0
        %1871 = vmatpush1.bf16.xpose.msra.mxu0 %v1813
        %1872 = vmatprep.subr.bf16.mxu0 0
        %1873 = vmatpush2.bf16.xpose.msra.mxu0 0
        %1874 = vmatprep.subr.bf16.mxu0 0
        %1875 = vmatpush2.bf16.xpose.msra.mxu0 0
        %1876 = vmatprep.subr.bf16.mxu0 0
        %1877 = vmatpush2.bf16.xpose.msra.mxu0 0
        %1878 = vmatprep.subr.bf16.mxu0 0
        %1879 = vmatpush2.bf16.xpose.msra.mxu0 0
        %1880 = vmatprep.subr.bf16.mxu0 0
        %1881 = vmatpush2.bf16.xpose.msra.mxu0 0
        %1882 = vmatprep.subr.bf16.mxu0 0
        %1883 = vmatpush2.bf16.xpose.msra.mxu0 0
        %1884 = vmatprep.subr.bf16.mxu0 0
        %1885 = vmatpush2.bf16.xpose.msra.mxu0 0
        %1886 = vmatprep.subr.bf16.mxu0 0
        %1887 = vmatpush2.bf16.xpose.msra.mxu0 0
        %1888 = vmatprep.mubr.bf16.mxu0 0
        %1889 = vmatmul.mubr.bf16.gmra.mxu0 %v1811
        %v1890 = vpop.f32.mrf.mxu0
        %v1891 = vadd.f32 0.0, %v1890
        %v1892 = vpop.f32.mrf.mxu0
        %v1893 = vpop.f32.mrf.mxu0
        %v1894 = vpop.f32.mrf.mxu0
        %1895 = vdwg.mxu0
        %v1896 = vmul.f32 %v1851, 0.088388346
        %v1897 = vmul.f32 %v1891, 0.088388346
        %v1898 = vadd.f32 %v1896, %v1601
        %v1899 = vadd.f32 %v1897, %v1601
        %v1900 = vsel %vm1692, %v1898, -inf
        %1901 = vmax.xlane.f32.xlu0 %v1900
        %v1902 = vpop.xlane.xlu0 %1901
        %v1903 = vsel %vm1692, %v1899, -inf
        %1904 = vmax.xlane.f32.xlu0 %v1903
        %v1905 = vpop.xlane.xlu0 %1904
        %v1906 = vsub.f32 %v1898, %v1902
        %v1907 = vsub.f32 %v1899, %v1905
        %v1908 = vmul.f32 %v1906, 1.442695
        %v1909 = vpow.pop %v1908
        %v1910 = vmul.f32 %v1907, 1.442695
        %v1911 = vpow.pop %v1910
        %v1912 = vsel %vm1692, %v1909, 0.0
        %1913 = vadd.xlane.f32.xlu0 %v1912
        %v1914 = vpop.xlane.xlu0 %1913
        %v1915 = vsel %vm1692, %v1911, 0.0
        %1916 = vadd.xlane.f32.xlu0 %v1915
        %v1917 = vpop.xlane.xlu0 %1916
        %v1918 = vpack.c.bf16 %v1909, %v1909
        %v1919 = vpack.c.bf16 %v1911, %v1911
        %v1921 = vsel %vm1692, %v1918, 0
        %v1924 = vsel %vm1716, %v1814, 0
        %1926 = vmatprep.subr.bf16.mxu0 0
        %1927 = vmatpush1.bf16.msra.mxu0 0
        %1928 = vmatprep.subr.bf16.mxu0 0
        %1929 = vmatpush1.bf16.msra.mxu0 0
        %1930 = vmatprep.subr.bf16.mxu0 0
        %1931 = vmatpush1.bf16.msra.mxu0 0
        %1932 = vmatprep.subr.bf16.mxu0 0
        %1933 = vmatpush1.bf16.msra.mxu0 0
        %1934 = vmatprep.subr.bf16.mxu0 0
        %1935 = vmatpush1.bf16.msra.mxu0 0
        %1936 = vmatprep.subr.bf16.mxu0 0
        %1937 = vmatpush1.bf16.msra.mxu0 0
        %1938 = vmatprep.subr.bf16.mxu0 0
        %1939 = vmatpush1.bf16.msra.mxu0 0
        %1940 = vmatprep.subr.bf16.mxu0 0
        %1941 = vmatpush1.bf16.msra.mxu0 %v1924
        %1942 = vmatprep.subr.bf16.mxu0 0
        %1943 = vmatpush2.bf16.msra.mxu0 0
        %1944 = vmatprep.subr.bf16.mxu0 0
        %1945 = vmatpush2.bf16.msra.mxu0 0
        %1946 = vmatprep.subr.bf16.mxu0 0
        %1947 = vmatpush2.bf16.msra.mxu0 0
        %1948 = vmatprep.subr.bf16.mxu0 0
        %1949 = vmatpush2.bf16.msra.mxu0 0
        %1950 = vmatprep.subr.bf16.mxu0 0
        %1951 = vmatpush2.bf16.msra.mxu0 0
        %1952 = vmatprep.subr.bf16.mxu0 0
        %1953 = vmatpush2.bf16.msra.mxu0 0
        %1954 = vmatprep.subr.bf16.mxu0 0
        %1955 = vmatpush2.bf16.msra.mxu0 0
        %1956 = vmatprep.subr.bf16.mxu0 0
        %1957 = vmatpush2.bf16.msra.mxu0 0
        %1958 = vmatprep.mubr.bf16.mxu0 0
        %1959 = vmatmul.mubr.bf16.gmra.mxu0 %v1921
        %v1960 = vpop.f32.mrf.mxu0
        %v1961 = vadd.f32 0.0, %v1960
        %v1962 = vpop.f32.mrf.mxu0
        %v1963 = vpop.f32.mrf.mxu0
        %v1964 = vpop.f32.mrf.mxu0
        %1965 = vdwg.mxu0
        %v1967 = vsel %vm1692, %v1919, 0
        %v1970 = vsel %vm1716, %v1815, 0
        %1972 = vmatprep.subr.bf16.mxu0 0
        %1973 = vmatpush1.bf16.msra.mxu0 0
        %1974 = vmatprep.subr.bf16.mxu0 0
        %1975 = vmatpush1.bf16.msra.mxu0 0
        %1976 = vmatprep.subr.bf16.mxu0 0
        %1977 = vmatpush1.bf16.msra.mxu0 0
        %1978 = vmatprep.subr.bf16.mxu0 0
        %1979 = vmatpush1.bf16.msra.mxu0 0
        %1980 = vmatprep.subr.bf16.mxu0 0
        %1981 = vmatpush1.bf16.msra.mxu0 0
        %1982 = vmatprep.subr.bf16.mxu0 0
        %1983 = vmatpush1.bf16.msra.mxu0 0
        %1984 = vmatprep.subr.bf16.mxu0 0
        %1985 = vmatpush1.bf16.msra.mxu0 0
        %1986 = vmatprep.subr.bf16.mxu0 0
        %1987 = vmatpush1.bf16.msra.mxu0 %v1970
        %1988 = vmatprep.subr.bf16.mxu0 0
        %1989 = vmatpush2.bf16.msra.mxu0 0
        %1990 = vmatprep.subr.bf16.mxu0 0
        %1991 = vmatpush2.bf16.msra.mxu0 0
        %1992 = vmatprep.subr.bf16.mxu0 0
        %1993 = vmatpush2.bf16.msra.mxu0 0
        %1994 = vmatprep.subr.bf16.mxu0 0
        %1995 = vmatpush2.bf16.msra.mxu0 0
        %1996 = vmatprep.subr.bf16.mxu0 0
        %1997 = vmatpush2.bf16.msra.mxu0 0
        %1998 = vmatprep.subr.bf16.mxu0 0
        %1999 = vmatpush2.bf16.msra.mxu0 0
        %2000 = vmatprep.subr.bf16.mxu0 0
        %2001 = vmatpush2.bf16.msra.mxu0 0
        %2002 = vmatprep.subr.bf16.mxu0 0
        %2003 = vmatpush2.bf16.msra.mxu0 0
        %2004 = vmatprep.mubr.bf16.mxu0 0
        %2005 = vmatmul.mubr.bf16.gmra.mxu0 %v1967
        %v2006 = vpop.f32.mrf.mxu0
        %v2007 = vadd.f32 0.0, %v2006
        %v2008 = vpop.f32.mrf.mxu0
        %v2009 = vpop.f32.mrf.mxu0
        %v2010 = vpop.f32.mrf.mxu0
        %2011 = vdwg.mxu0
        %v2012 = vrcp.pop %v1914
        %v2013 = vrcp.pop %v1917
        %v2014 = vmul.f32 %v1961, %v2012
        %v2015 = vmul.f32 %v2007, %v2013
        %v2016 = vpack.c.bf16 %v1809, %v1808
        %v2017 = vpack.c.bf16 %v2015, %v2014
        %v2018 = vld [vmem:[%s639] sm:$0xff]
        %v2019 = vld [vmem:[%s639 + $0x8] sm:$0xff]
        %v2020 = vld [vmem:[%s639 + $0x10] sm:$0xff]
        %v2021 = vld [vmem:[%s639 + $0x18] sm:$0xff]
        %v2022 = vld [vmem:[%s639 + $0x20] sm:$0xff]
        %v2023 = vld [vmem:[%s639 + $0x28] sm:$0xff]
        %v2024 = vld [vmem:[%s639 + $0x30] sm:$0xff]
        %v2025 = vld [vmem:[%s639 + $0x38] sm:$0xff]
        %v2026 = vld [vmem:[%s639 + $0x40] sm:$0xff]
        %v2027 = vld [vmem:[%s639 + $0x48] sm:$0xff]
        %v2028 = vld [vmem:[%s639 + $0x50] sm:$0xff]
        %v2029 = vld [vmem:[%s639 + $0x58] sm:$0xff]
        %v2030 = vld [vmem:[%s639 + $0x60] sm:$0xff]
        %v2031 = vld [vmem:[%s639 + $0x68] sm:$0xff]
        %v2032 = vld [vmem:[%s639 + $0x70] sm:$0xff]
        %v2033 = vld [vmem:[%s639 + $0x78] sm:$0xff]
        %v2034 = vld [vmem:[%s639 + $0x80] sm:$0xff]
        %v2035 = vld [vmem:[%s639 + $0x88] sm:$0xff]
        %v2036 = vld [vmem:[%s639 + $0x90] sm:$0xff]
        %v2037 = vld [vmem:[%s639 + $0x98] sm:$0xff]
        %v2038 = vld [vmem:[%s639 + $0xa0] sm:$0xff]
        %v2039 = vld [vmem:[%s639 + $0xa8] sm:$0xff]
        %v2040 = vld [vmem:[%s639 + $0xb0] sm:$0xff]
        %v2041 = vld [vmem:[%s639 + $0xb8] sm:$0xff]
        %v2042 = vld [vmem:[%s639 + $0xc0] sm:$0xff]
        %v2043 = vld [vmem:[%s639 + $0xc8] sm:$0xff]
        %v2044 = vld [vmem:[%s639 + $0xd0] sm:$0xff]
        %v2045 = vld [vmem:[%s639 + $0xd8] sm:$0xff]
        %v2046 = vld [vmem:[%s639 + $0xe0] sm:$0xff]
        %v2047 = vld [vmem:[%s639 + $0xe8] sm:$0xff]
        %v2048 = vld [vmem:[%s639 + $0xf0] sm:$0xff]
        %v2049 = vld [vmem:[%s639 + $0xf8] sm:$0xff]
        %v2050 = vld [vmem:[%s763] sm:$0x3]
        %v2052 = vlaneseq
        %v2053 = vshrl.u32 %v2052, 7
        %v2054 = vsub.s32 0, %v2053
        %v2055 = vrot.slane %v2050, %v2054
        %v2056 = vlaneseq
        %v2057 = vshrl.u32 %v2056, 7
        %v2058 = vsub.s32 1, %v2057
        %v2059 = vrot.slane %v2050, %v2058
        %v2094 = vunpack.c.l.b16 %v2018
        %v2095 = vunpack.c.h.b16 %v2018
        %v2096 = vunpack.c.l.b16 %v2019
        %v2097 = vunpack.c.h.b16 %v2019
        %v2098 = vunpack.c.l.b16 %v2020
        %v2099 = vunpack.c.h.b16 %v2020
        %v2100 = vunpack.c.l.b16 %v2021
        %v2101 = vunpack.c.h.b16 %v2021
        %v2102 = vunpack.c.l.b16 %v2022
        %v2103 = vunpack.c.h.b16 %v2022
        %v2104 = vunpack.c.l.b16 %v2023
        %v2105 = vunpack.c.h.b16 %v2023
        %v2106 = vunpack.c.l.b16 %v2024
        %v2107 = vunpack.c.h.b16 %v2024
        %v2108 = vunpack.c.l.b16 %v2025
        %v2109 = vunpack.c.h.b16 %v2025
        %v2110 = vunpack.c.l.b16 %v2026
        %v2111 = vunpack.c.h.b16 %v2026
        %v2112 = vunpack.c.l.b16 %v2027
        %v2113 = vunpack.c.h.b16 %v2027
        %v2114 = vunpack.c.l.b16 %v2028
        %v2115 = vunpack.c.h.b16 %v2028
        %v2116 = vunpack.c.l.b16 %v2029
        %v2117 = vunpack.c.h.b16 %v2029
        %v2118 = vunpack.c.l.b16 %v2030
        %v2119 = vunpack.c.h.b16 %v2030
        %v2120 = vunpack.c.l.b16 %v2031
        %v2121 = vunpack.c.h.b16 %v2031
        %v2122 = vunpack.c.l.b16 %v2032
        %v2123 = vunpack.c.h.b16 %v2032
        %v2124 = vunpack.c.l.b16 %v2033
        %v2125 = vunpack.c.h.b16 %v2033
        %v2126 = vunpack.c.l.b16 %v2034
        %v2127 = vunpack.c.h.b16 %v2034
        %v2128 = vunpack.c.l.b16 %v2035
        %v2129 = vunpack.c.h.b16 %v2035
        %v2130 = vunpack.c.l.b16 %v2036
        %v2131 = vunpack.c.h.b16 %v2036
        %v2132 = vunpack.c.l.b16 %v2037
        %v2133 = vunpack.c.h.b16 %v2037
        %v2134 = vunpack.c.l.b16 %v2038
        %v2135 = vunpack.c.h.b16 %v2038
        %v2136 = vunpack.c.l.b16 %v2039
        %v2137 = vunpack.c.h.b16 %v2039
        %v2138 = vunpack.c.l.b16 %v2040
        %v2139 = vunpack.c.h.b16 %v2040
        %v2140 = vunpack.c.l.b16 %v2041
        %v2141 = vunpack.c.h.b16 %v2041
        %v2142 = vunpack.c.l.b16 %v2042
        %v2143 = vunpack.c.h.b16 %v2042
        %v2144 = vunpack.c.l.b16 %v2043
        %v2145 = vunpack.c.h.b16 %v2043
        %v2146 = vunpack.c.l.b16 %v2044
        %v2147 = vunpack.c.h.b16 %v2044
        %v2148 = vunpack.c.l.b16 %v2045
        %v2149 = vunpack.c.h.b16 %v2045
        %v2150 = vunpack.c.l.b16 %v2046
        %v2151 = vunpack.c.h.b16 %v2046
        %v2152 = vunpack.c.l.b16 %v2047
        %v2153 = vunpack.c.h.b16 %v2047
        %v2154 = vunpack.c.l.b16 %v2048
        %v2155 = vunpack.c.h.b16 %v2048
        %v2156 = vunpack.c.l.b16 %v2049
        %v2157 = vunpack.c.h.b16 %v2049
        %v2158 = vpack.c.b16 %v2096, %v2094
        %v2159 = vpack.c.b16 %v2097, %v2095
        %v2160 = vpack.c.b16 %v2100, %v2098
        %v2161 = vpack.c.b16 %v2101, %v2099
        %v2162 = vpack.c.b16 %v2104, %v2102
        %v2163 = vpack.c.b16 %v2105, %v2103
        %v2164 = vpack.c.b16 %v2108, %v2106
        %v2165 = vpack.c.b16 %v2109, %v2107
        %v2166 = vpack.c.b16 %v2112, %v2110
        %v2167 = vpack.c.b16 %v2113, %v2111
        %v2168 = vpack.c.b16 %v2116, %v2114
        %v2169 = vpack.c.b16 %v2117, %v2115
        %v2170 = vpack.c.b16 %v2120, %v2118
        %v2171 = vpack.c.b16 %v2121, %v2119
        %v2172 = vpack.c.b16 %v2124, %v2122
        %v2173 = vpack.c.b16 %v2125, %v2123
        %v2174 = vpack.c.b16 %v2128, %v2126
        %v2175 = vpack.c.b16 %v2129, %v2127
        %v2176 = vpack.c.b16 %v2132, %v2130
        %v2177 = vpack.c.b16 %v2133, %v2131
        %v2178 = vpack.c.b16 %v2136, %v2134
        %v2179 = vpack.c.b16 %v2137, %v2135
        %v2180 = vpack.c.b16 %v2140, %v2138
        %v2181 = vpack.c.b16 %v2141, %v2139
        %v2182 = vpack.c.b16 %v2144, %v2142
        %v2183 = vpack.c.b16 %v2145, %v2143
        %v2184 = vpack.c.b16 %v2148, %v2146
        %v2185 = vpack.c.b16 %v2149, %v2147
        %v2186 = vpack.c.b16 %v2152, %v2150
        %v2187 = vpack.c.b16 %v2153, %v2151
        %v2188 = vpack.c.b16 %v2156, %v2154
        %v2189 = vpack.c.b16 %v2157, %v2155
        %2222 = vmatprep.subr.bf16.mxu0 %v2173
        %2223 = vmatpush1.bf16.msra.mxu0 %v2172
        %2224 = vmatprep.subr.bf16.mxu0 %v2171
        %2225 = vmatpush1.bf16.msra.mxu0 %v2170
        %2226 = vmatprep.subr.bf16.mxu0 %v2169
        %2227 = vmatpush1.bf16.msra.mxu0 %v2168
        %2228 = vmatprep.subr.bf16.mxu0 %v2167
        %2229 = vmatpush1.bf16.msra.mxu0 %v2166
        %2230 = vmatprep.subr.bf16.mxu0 %v2165
        %2231 = vmatpush1.bf16.msra.mxu0 %v2164
        %2232 = vmatprep.subr.bf16.mxu0 %v2163
        %2233 = vmatpush1.bf16.msra.mxu0 %v2162
        %2234 = vmatprep.subr.bf16.mxu0 %v2161
        %2235 = vmatpush1.bf16.msra.mxu0 %v2160
        %2236 = vmatprep.subr.bf16.mxu0 %v2159
        %2237 = vmatpush1.bf16.msra.mxu0 %v2158
        %2238 = vmatprep.subr.bf16.mxu0 %v2189
        %2239 = vmatpush2.bf16.msra.mxu0 %v2188
        %2240 = vmatprep.subr.bf16.mxu0 %v2187
        %2241 = vmatpush2.bf16.msra.mxu0 %v2186
        %2242 = vmatprep.subr.bf16.mxu0 %v2185
        %2243 = vmatpush2.bf16.msra.mxu0 %v2184
        %2244 = vmatprep.subr.bf16.mxu0 %v2183
        %2245 = vmatpush2.bf16.msra.mxu0 %v2182
        %2246 = vmatprep.subr.bf16.mxu0 %v2181
        %2247 = vmatpush2.bf16.msra.mxu0 %v2180
        %2248 = vmatprep.subr.bf16.mxu0 %v2179
        %2249 = vmatpush2.bf16.msra.mxu0 %v2178
        %2250 = vmatprep.subr.bf16.mxu0 %v2177
        %2251 = vmatpush2.bf16.msra.mxu0 %v2176
        %2252 = vmatprep.subr.bf16.mxu0 %v2175
        %2253 = vmatpush2.bf16.msra.mxu0 %v2174
        %2254 = vmatprep.mubr.bf16.mxu0 %v2017
        %2255 = vmatmul.mubr.bf16.gmra.mxu0 %v2016
        %v2256 = vpop.f32.mrf.mxu0
        %v2257 = vadd.f32 %v2055, %v2256
        %v2258 = vpop.f32.mrf.mxu0
        %v2259 = vadd.f32 %v2059, %v2258
        %v2260 = vpop.f32.mrf.mxu0
        %v2261 = vadd.f32 %v2055, %v2260
        %v2262 = vpop.f32.mrf.mxu0
        %v2263 = vadd.f32 %v2059, %v2262
        %2264 = vdwg.mxu0
        %v2265 = vadd.f32 %v793, %v2257
        %v2266 = vadd.f32 %v794, %v2259
        %v2267 = vadd.f32 %v795, %v2261
        %v2268 = vadd.f32 %v796, %v2263
        %v2269 = vld [vmem:[%s767] sm:$0x3]
        %v2270 = vld [vmem:[%s771] sm:$0x3]
        %v2271 = vadd.f32 %v2265, %v2266
        %2272 = vadd.xlane.f32.xlu0 %v2271
        %v2273 = vpop.xlane.xlu0 %2272
        %v2274 = vadd.f32 %v2267, %v2268
        %2275 = vadd.xlane.f32.xlu0 %v2274
        %v2276 = vpop.xlane.xlu0 %2275
        %v2277 = vmul.f32 %v2273, %v805
        %v2278 = vmul.f32 %v2276, %v805
        %v2279 = vsub.f32 %v2265, %v2277
        %v2280 = vsub.f32 %v2266, %v2277
        %v2281 = vsub.f32 %v2267, %v2278
        %v2282 = vsub.f32 %v2268, %v2278
        %v2283 = vmul.f32 %v2279, %v2279
        %v2284 = vmul.f32 %v2280, %v2280
        %v2285 = vmul.f32 %v2281, %v2281
        %v2286 = vmul.f32 %v2282, %v2282
        %v2287 = vadd.f32 %v2283, %v2284
        %2288 = vadd.xlane.f32.xlu0 %v2287
        %v2289 = vpop.xlane.xlu0 %2288
        %v2290 = vadd.f32 %v2285, %v2286
        %2291 = vadd.xlane.f32.xlu0 %v2290
        %v2292 = vpop.xlane.xlu0 %2291
        %v2293 = vmul.f32 %v2289, %v805
        %v2294 = vmul.f32 %v2292, %v805
        %v2295 = vadd.f32 %v2293, 1e-05
        %v2296 = vadd.f32 %v2294, 1e-05
        %v2297 = vrsqrt.pop %v2295
        %v2298 = vrsqrt.pop %v2296
        %v2299 = vmul.f32 %v2279, %v2297
        %v2300 = vmul.f32 %v2280, %v2297
        %v2301 = vmul.f32 %v2281, %v2298
        %v2302 = vmul.f32 %v2282, %v2298
        %v2304 = vlaneseq
        %v2305 = vshrl.u32 %v2304, 7
        %v2306 = vsub.s32 0, %v2305
        %v2307 = vrot.slane %v2269, %v2306
        %v2308 = vlaneseq
        %v2309 = vshrl.u32 %v2308, 7
        %v2310 = vsub.s32 1, %v2309
        %v2311 = vrot.slane %v2269, %v2310
        %v2314 = vmul.f32 %v2299, %v2307
        %v2315 = vmul.f32 %v2300, %v2311
        %v2316 = vmul.f32 %v2301, %v2307
        %v2317 = vmul.f32 %v2302, %v2311
        %v2319 = vlaneseq
        %v2320 = vshrl.u32 %v2319, 7
        %v2321 = vsub.s32 0, %v2320
        %v2322 = vrot.slane %v2270, %v2321
        %v2323 = vlaneseq
        %v2324 = vshrl.u32 %v2323, 7
        %v2325 = vsub.s32 1, %v2324
        %v2326 = vrot.slane %v2270, %v2325
        %v2329 = vadd.f32 %v2314, %v2322
        %v2330 = vadd.f32 %v2315, %v2326
        %v2331 = vadd.f32 %v2316, %v2322
        %v2332 = vadd.f32 %v2317, %v2326
        %v2333 = vpack.c.bf16 %v2331, %v2329
        %v2334 = vpack.c.bf16 %v2332, %v2330
        %v2335 = vld [vmem:[%s648] sm:$0xff]
        %v2336 = vld [vmem:[%s648 + $0x8] sm:$0xff]
        %v2337 = vld [vmem:[%s648 + $0x10] sm:$0xff]
        %v2338 = vld [vmem:[%s648 + $0x18] sm:$0xff]
        %v2339 = vld [vmem:[%s648 + $0x20] sm:$0xff]
        %v2340 = vld [vmem:[%s648 + $0x28] sm:$0xff]
        %v2341 = vld [vmem:[%s648 + $0x30] sm:$0xff]
        %v2342 = vld [vmem:[%s648 + $0x38] sm:$0xff]
        %v2343 = vld [vmem:[%s648 + $0x40] sm:$0xff]
        %v2344 = vld [vmem:[%s648 + $0x48] sm:$0xff]
        %v2345 = vld [vmem:[%s648 + $0x50] sm:$0xff]
        %v2346 = vld [vmem:[%s648 + $0x58] sm:$0xff]
        %v2347 = vld [vmem:[%s648 + $0x60] sm:$0xff]
        %v2348 = vld [vmem:[%s648 + $0x68] sm:$0xff]
        %v2349 = vld [vmem:[%s648 + $0x70] sm:$0xff]
        %v2350 = vld [vmem:[%s648 + $0x78] sm:$0xff]
        %v2351 = vld [vmem:[%s648 + $0x80] sm:$0xff]
        %v2352 = vld [vmem:[%s648 + $0x88] sm:$0xff]
        %v2353 = vld [vmem:[%s648 + $0x90] sm:$0xff]
        %v2354 = vld [vmem:[%s648 + $0x98] sm:$0xff]
        %v2355 = vld [vmem:[%s648 + $0xa0] sm:$0xff]
        %v2356 = vld [vmem:[%s648 + $0xa8] sm:$0xff]
        %v2357 = vld [vmem:[%s648 + $0xb0] sm:$0xff]
        %v2358 = vld [vmem:[%s648 + $0xb8] sm:$0xff]
        %v2359 = vld [vmem:[%s648 + $0xc0] sm:$0xff]
        %v2360 = vld [vmem:[%s648 + $0xc8] sm:$0xff]
        %v2361 = vld [vmem:[%s648 + $0xd0] sm:$0xff]
        %v2362 = vld [vmem:[%s648 + $0xd8] sm:$0xff]
        %v2363 = vld [vmem:[%s648 + $0xe0] sm:$0xff]
        %v2364 = vld [vmem:[%s648 + $0xe8] sm:$0xff]
        %v2365 = vld [vmem:[%s648 + $0xf0] sm:$0xff]
        %v2366 = vld [vmem:[%s648 + $0xf8] sm:$0xff]
        %v2367 = vld [vmem:[%s648 + $0x100] sm:$0xff]
        %v2368 = vld [vmem:[%s648 + $0x108] sm:$0xff]
        %v2369 = vld [vmem:[%s648 + $0x110] sm:$0xff]
        %v2370 = vld [vmem:[%s648 + $0x118] sm:$0xff]
        %v2371 = vld [vmem:[%s648 + $0x120] sm:$0xff]
        %v2372 = vld [vmem:[%s648 + $0x128] sm:$0xff]
        %v2373 = vld [vmem:[%s648 + $0x130] sm:$0xff]
        %v2374 = vld [vmem:[%s648 + $0x138] sm:$0xff]
        %v2375 = vld [vmem:[%s648 + $0x140] sm:$0xff]
        %v2376 = vld [vmem:[%s648 + $0x148] sm:$0xff]
        %v2377 = vld [vmem:[%s648 + $0x150] sm:$0xff]
        %v2378 = vld [vmem:[%s648 + $0x158] sm:$0xff]
        %v2379 = vld [vmem:[%s648 + $0x160] sm:$0xff]
        %v2380 = vld [vmem:[%s648 + $0x168] sm:$0xff]
        %v2381 = vld [vmem:[%s648 + $0x170] sm:$0xff]
        %v2382 = vld [vmem:[%s648 + $0x178] sm:$0xff]
        %v2383 = vld [vmem:[%s648 + $0x180] sm:$0xff]
        %v2384 = vld [vmem:[%s648 + $0x188] sm:$0xff]
        %v2385 = vld [vmem:[%s648 + $0x190] sm:$0xff]
        %v2386 = vld [vmem:[%s648 + $0x198] sm:$0xff]
        %v2387 = vld [vmem:[%s648 + $0x1a0] sm:$0xff]
        %v2388 = vld [vmem:[%s648 + $0x1a8] sm:$0xff]
        %v2389 = vld [vmem:[%s648 + $0x1b0] sm:$0xff]
        %v2390 = vld [vmem:[%s648 + $0x1b8] sm:$0xff]
        %v2391 = vld [vmem:[%s648 + $0x1c0] sm:$0xff]
        %v2392 = vld [vmem:[%s648 + $0x1c8] sm:$0xff]
        %v2393 = vld [vmem:[%s648 + $0x1d0] sm:$0xff]
        %v2394 = vld [vmem:[%s648 + $0x1d8] sm:$0xff]
        %v2395 = vld [vmem:[%s648 + $0x1e0] sm:$0xff]
        %v2396 = vld [vmem:[%s648 + $0x1e8] sm:$0xff]
        %v2397 = vld [vmem:[%s648 + $0x1f0] sm:$0xff]
        %v2398 = vld [vmem:[%s648 + $0x1f8] sm:$0xff]
        %v2399 = vld [vmem:[%s648 + $0x200] sm:$0xff]
        %v2400 = vld [vmem:[%s648 + $0x208] sm:$0xff]
        %v2401 = vld [vmem:[%s648 + $0x210] sm:$0xff]
        %v2402 = vld [vmem:[%s648 + $0x218] sm:$0xff]
        %v2403 = vld [vmem:[%s648 + $0x220] sm:$0xff]
        %v2404 = vld [vmem:[%s648 + $0x228] sm:$0xff]
        %v2405 = vld [vmem:[%s648 + $0x230] sm:$0xff]
        %v2406 = vld [vmem:[%s648 + $0x238] sm:$0xff]
        %v2407 = vld [vmem:[%s648 + $0x240] sm:$0xff]
        %v2408 = vld [vmem:[%s648 + $0x248] sm:$0xff]
        %v2409 = vld [vmem:[%s648 + $0x250] sm:$0xff]
        %v2410 = vld [vmem:[%s648 + $0x258] sm:$0xff]
        %v2411 = vld [vmem:[%s648 + $0x260] sm:$0xff]
        %v2412 = vld [vmem:[%s648 + $0x268] sm:$0xff]
        %v2413 = vld [vmem:[%s648 + $0x270] sm:$0xff]
        %v2414 = vld [vmem:[%s648 + $0x278] sm:$0xff]
        %v2415 = vld [vmem:[%s648 + $0x280] sm:$0xff]
        %v2416 = vld [vmem:[%s648 + $0x288] sm:$0xff]
        %v2417 = vld [vmem:[%s648 + $0x290] sm:$0xff]
        %v2418 = vld [vmem:[%s648 + $0x298] sm:$0xff]
        %v2419 = vld [vmem:[%s648 + $0x2a0] sm:$0xff]
        %v2420 = vld [vmem:[%s648 + $0x2a8] sm:$0xff]
        %v2421 = vld [vmem:[%s648 + $0x2b0] sm:$0xff]
        %v2422 = vld [vmem:[%s648 + $0x2b8] sm:$0xff]
        %v2423 = vld [vmem:[%s648 + $0x2c0] sm:$0xff]
        %v2424 = vld [vmem:[%s648 + $0x2c8] sm:$0xff]
        %v2425 = vld [vmem:[%s648 + $0x2d0] sm:$0xff]
        %v2426 = vld [vmem:[%s648 + $0x2d8] sm:$0xff]
        %v2427 = vld [vmem:[%s648 + $0x2e0] sm:$0xff]
        %v2428 = vld [vmem:[%s648 + $0x2e8] sm:$0xff]
        %v2429 = vld [vmem:[%s648 + $0x2f0] sm:$0xff]
        %v2430 = vld [vmem:[%s648 + $0x2f8] sm:$0xff]
        %v2431 = vld [vmem:[%s648 + $0x300] sm:$0xff]
        %v2432 = vld [vmem:[%s648 + $0x308] sm:$0xff]
        %v2433 = vld [vmem:[%s648 + $0x310] sm:$0xff]
        %v2434 = vld [vmem:[%s648 + $0x318] sm:$0xff]
        %v2435 = vld [vmem:[%s648 + $0x320] sm:$0xff]
        %v2436 = vld [vmem:[%s648 + $0x328] sm:$0xff]
        %v2437 = vld [vmem:[%s648 + $0x330] sm:$0xff]
        %v2438 = vld [vmem:[%s648 + $0x338] sm:$0xff]
        %v2439 = vld [vmem:[%s648 + $0x340] sm:$0xff]
        %v2440 = vld [vmem:[%s648 + $0x348] sm:$0xff]
        %v2441 = vld [vmem:[%s648 + $0x350] sm:$0xff]
        %v2442 = vld [vmem:[%s648 + $0x358] sm:$0xff]
        %v2443 = vld [vmem:[%s648 + $0x360] sm:$0xff]
        %v2444 = vld [vmem:[%s648 + $0x368] sm:$0xff]
        %v2445 = vld [vmem:[%s648 + $0x370] sm:$0xff]
        %v2446 = vld [vmem:[%s648 + $0x378] sm:$0xff]
        %v2447 = vld [vmem:[%s648 + $0x380] sm:$0xff]
        %v2448 = vld [vmem:[%s648 + $0x388] sm:$0xff]
        %v2449 = vld [vmem:[%s648 + $0x390] sm:$0xff]
        %v2450 = vld [vmem:[%s648 + $0x398] sm:$0xff]
        %v2451 = vld [vmem:[%s648 + $0x3a0] sm:$0xff]
        %v2452 = vld [vmem:[%s648 + $0x3a8] sm:$0xff]
        %v2453 = vld [vmem:[%s648 + $0x3b0] sm:$0xff]
        %v2454 = vld [vmem:[%s648 + $0x3b8] sm:$0xff]
        %v2455 = vld [vmem:[%s648 + $0x3c0] sm:$0xff]
        %v2456 = vld [vmem:[%s648 + $0x3c8] sm:$0xff]
        %v2457 = vld [vmem:[%s648 + $0x3d0] sm:$0xff]
        %v2458 = vld [vmem:[%s648 + $0x3d8] sm:$0xff]
        %v2459 = vld [vmem:[%s648 + $0x3e0] sm:$0xff]
        %v2460 = vld [vmem:[%s648 + $0x3e8] sm:$0xff]
        %v2461 = vld [vmem:[%s648 + $0x3f0] sm:$0xff]
        %v2462 = vld [vmem:[%s648 + $0x3f8] sm:$0xff]
        %v2463 = vld [vmem:[%s775] sm:$0xff]
        %v2465 = vlaneseq
        %v2466 = vshrl.u32 %v2465, 7
        %v2467 = vsub.s32 0, %v2466
        %v2468 = vrot.slane %v2463, %v2467
        %v2469 = vlaneseq
        %v2470 = vshrl.u32 %v2469, 7
        %v2471 = vsub.s32 1, %v2470
        %v2472 = vrot.slane %v2463, %v2471
        %v2473 = vlaneseq
        %v2474 = vshrl.u32 %v2473, 7
        %v2475 = vsub.s32 2, %v2474
        %v2476 = vrot.slane %v2463, %v2475
        %v2477 = vlaneseq
        %v2478 = vshrl.u32 %v2477, 7
        %v2479 = vsub.s32 3, %v2478
        %v2480 = vrot.slane %v2463, %v2479
        %v2481 = vlaneseq
        %v2482 = vshrl.u32 %v2481, 7
        %v2483 = vsub.s32 4, %v2482
        %v2484 = vrot.slane %v2463, %v2483
        %v2485 = vlaneseq
        %v2486 = vshrl.u32 %v2485, 7
        %v2487 = vsub.s32 5, %v2486
        %v2488 = vrot.slane %v2463, %v2487
        %v2489 = vlaneseq
        %v2490 = vshrl.u32 %v2489, 7
        %v2491 = vsub.s32 6, %v2490
        %v2492 = vrot.slane %v2463, %v2491
        %v2493 = vlaneseq
        %v2494 = vshrl.u32 %v2493, 7
        %v2495 = vsub.s32 7, %v2494
        %v2496 = vrot.slane %v2463, %v2495
        %v2633 = vunpack.c.l.b16 %v2335
        %v2634 = vunpack.c.h.b16 %v2335
        %v2635 = vunpack.c.l.b16 %v2336
        %v2636 = vunpack.c.h.b16 %v2336
        %v2637 = vunpack.c.l.b16 %v2337
        %v2638 = vunpack.c.h.b16 %v2337
        %v2639 = vunpack.c.l.b16 %v2338
        %v2640 = vunpack.c.h.b16 %v2338
        %v2641 = vunpack.c.l.b16 %v2339
        %v2642 = vunpack.c.h.b16 %v2339
        %v2643 = vunpack.c.l.b16 %v2340
        %v2644 = vunpack.c.h.b16 %v2340
        %v2645 = vunpack.c.l.b16 %v2341
        %v2646 = vunpack.c.h.b16 %v2341
        %v2647 = vunpack.c.l.b16 %v2342
        %v2648 = vunpack.c.h.b16 %v2342
        %v2649 = vunpack.c.l.b16 %v2343
        %v2650 = vunpack.c.h.b16 %v2343
        %v2651 = vunpack.c.l.b16 %v2344
        %v2652 = vunpack.c.h.b16 %v2344
        %v2653 = vunpack.c.l.b16 %v2345
        %v2654 = vunpack.c.h.b16 %v2345
        %v2655 = vunpack.c.l.b16 %v2346
        %v2656 = vunpack.c.h.b16 %v2346
        %v2657 = vunpack.c.l.b16 %v2347
        %v2658 = vunpack.c.h.b16 %v2347
        %v2659 = vunpack.c.l.b16 %v2348
        %v2660 = vunpack.c.h.b16 %v2348
        %v2661 = vunpack.c.l.b16 %v2349
        %v2662 = vunpack.c.h.b16 %v2349
        %v2663 = vunpack.c.l.b16 %v2350
        %v2664 = vunpack.c.h.b16 %v2350
        %v2665 = vunpack.c.l.b16 %v2351
        %v2666 = vunpack.c.h.b16 %v2351
        %v2667 = vunpack.c.l.b16 %v2352
        %v2668 = vunpack.c.h.b16 %v2352
        %v2669 = vunpack.c.l.b16 %v2353
        %v2670 = vunpack.c.h.b16 %v2353
        %v2671 = vunpack.c.l.b16 %v2354
        %v2672 = vunpack.c.h.b16 %v2354
        %v2673 = vunpack.c.l.b16 %v2355
        %v2674 = vunpack.c.h.b16 %v2355
        %v2675 = vunpack.c.l.b16 %v2356
        %v2676 = vunpack.c.h.b16 %v2356
        %v2677 = vunpack.c.l.b16 %v2357
        %v2678 = vunpack.c.h.b16 %v2357
        %v2679 = vunpack.c.l.b16 %v2358
        %v2680 = vunpack.c.h.b16 %v2358
        %v2681 = vunpack.c.l.b16 %v2359
        %v2682 = vunpack.c.h.b16 %v2359
        %v2683 = vunpack.c.l.b16 %v2360
        %v2684 = vunpack.c.h.b16 %v2360
        %v2685 = vunpack.c.l.b16 %v2361
        %v2686 = vunpack.c.h.b16 %v2361
        %v2687 = vunpack.c.l.b16 %v2362
        %v2688 = vunpack.c.h.b16 %v2362
        %v2689 = vunpack.c.l.b16 %v2363
        %v2690 = vunpack.c.h.b16 %v2363
        %v2691 = vunpack.c.l.b16 %v2364
        %v2692 = vunpack.c.h.b16 %v2364
        %v2693 = vunpack.c.l.b16 %v2365
        %v2694 = vunpack.c.h.b16 %v2365
        %v2695 = vunpack.c.l.b16 %v2366
        %v2696 = vunpack.c.h.b16 %v2366
        %v2697 = vunpack.c.l.b16 %v2367
        %v2698 = vunpack.c.h.b16 %v2367
        %v2699 = vunpack.c.l.b16 %v2368
        %v2700 = vunpack.c.h.b16 %v2368
        %v2701 = vunpack.c.l.b16 %v2369
        %v2702 = vunpack.c.h.b16 %v2369
        %v2703 = vunpack.c.l.b16 %v2370
        %v2704 = vunpack.c.h.b16 %v2370
        %v2705 = vunpack.c.l.b16 %v2371
        %v2706 = vunpack.c.h.b16 %v2371
        %v2707 = vunpack.c.l.b16 %v2372
        %v2708 = vunpack.c.h.b16 %v2372
        %v2709 = vunpack.c.l.b16 %v2373
        %v2710 = vunpack.c.h.b16 %v2373
        %v2711 = vunpack.c.l.b16 %v2374
        %v2712 = vunpack.c.h.b16 %v2374
        %v2713 = vunpack.c.l.b16 %v2375
        %v2714 = vunpack.c.h.b16 %v2375
        %v2715 = vunpack.c.l.b16 %v2376
        %v2716 = vunpack.c.h.b16 %v2376
        %v2717 = vunpack.c.l.b16 %v2377
        %v2718 = vunpack.c.h.b16 %v2377
        %v2719 = vunpack.c.l.b16 %v2378
        %v2720 = vunpack.c.h.b16 %v2378
        %v2721 = vunpack.c.l.b16 %v2379
        %v2722 = vunpack.c.h.b16 %v2379
        %v2723 = vunpack.c.l.b16 %v2380
        %v2724 = vunpack.c.h.b16 %v2380
        %v2725 = vunpack.c.l.b16 %v2381
        %v2726 = vunpack.c.h.b16 %v2381
        %v2727 = vunpack.c.l.b16 %v2382
        %v2728 = vunpack.c.h.b16 %v2382
        %v2729 = vunpack.c.l.b16 %v2383
        %v2730 = vunpack.c.h.b16 %v2383
        %v2731 = vunpack.c.l.b16 %v2384
        %v2732 = vunpack.c.h.b16 %v2384
        %v2733 = vunpack.c.l.b16 %v2385
        %v2734 = vunpack.c.h.b16 %v2385
        %v2735 = vunpack.c.l.b16 %v2386
        %v2736 = vunpack.c.h.b16 %v2386
        %v2737 = vunpack.c.l.b16 %v2387
        %v2738 = vunpack.c.h.b16 %v2387
        %v2739 = vunpack.c.l.b16 %v2388
        %v2740 = vunpack.c.h.b16 %v2388
        %v2741 = vunpack.c.l.b16 %v2389
        %v2742 = vunpack.c.h.b16 %v2389
        %v2743 = vunpack.c.l.b16 %v2390
        %v2744 = vunpack.c.h.b16 %v2390
        %v2745 = vunpack.c.l.b16 %v2391
        %v2746 = vunpack.c.h.b16 %v2391
        %v2747 = vunpack.c.l.b16 %v2392
        %v2748 = vunpack.c.h.b16 %v2392
        %v2749 = vunpack.c.l.b16 %v2393
        %v2750 = vunpack.c.h.b16 %v2393
        %v2751 = vunpack.c.l.b16 %v2394
        %v2752 = vunpack.c.h.b16 %v2394
        %v2753 = vunpack.c.l.b16 %v2395
        %v2754 = vunpack.c.h.b16 %v2395
        %v2755 = vunpack.c.l.b16 %v2396
        %v2756 = vunpack.c.h.b16 %v2396
        %v2757 = vunpack.c.l.b16 %v2397
        %v2758 = vunpack.c.h.b16 %v2397
        %v2759 = vunpack.c.l.b16 %v2398
        %v2760 = vunpack.c.h.b16 %v2398
        %v2761 = vunpack.c.l.b16 %v2399
        %v2762 = vunpack.c.h.b16 %v2399
        %v2763 = vunpack.c.l.b16 %v2400
        %v2764 = vunpack.c.h.b16 %v2400
        %v2765 = vunpack.c.l.b16 %v2401
        %v2766 = vunpack.c.h.b16 %v2401
        %v2767 = vunpack.c.l.b16 %v2402
        %v2768 = vunpack.c.h.b16 %v2402
        %v2769 = vunpack.c.l.b16 %v2403
        %v2770 = vunpack.c.h.b16 %v2403
        %v2771 = vunpack.c.l.b16 %v2404
        %v2772 = vunpack.c.h.b16 %v2404
        %v2773 = vunpack.c.l.b16 %v2405
        %v2774 = vunpack.c.h.b16 %v2405
        %v2775 = vunpack.c.l.b16 %v2406
        %v2776 = vunpack.c.h.b16 %v2406
        %v2777 = vunpack.c.l.b16 %v2407
        %v2778 = vunpack.c.h.b16 %v2407
        %v2779 = vunpack.c.l.b16 %v2408
        %v2780 = vunpack.c.h.b16 %v2408
        %v2781 = vunpack.c.l.b16 %v2409
        %v2782 = vunpack.c.h.b16 %v2409
        %v2783 = vunpack.c.l.b16 %v2410
        %v2784 = vunpack.c.h.b16 %v2410
        %v2785 = vunpack.c.l.b16 %v2411
        %v2786 = vunpack.c.h.b16 %v2411
        %v2787 = vunpack.c.l.b16 %v2412
        %v2788 = vunpack.c.h.b16 %v2412
        %v2789 = vunpack.c.l.b16 %v2413
        %v2790 = vunpack.c.h.b16 %v2413
        %v2791 = vunpack.c.l.b16 %v2414
        %v2792 = vunpack.c.h.b16 %v2414
        %v2793 = vunpack.c.l.b16 %v2415
        %v2794 = vunpack.c.h.b16 %v2415
        %v2795 = vunpack.c.l.b16 %v2416
        %v2796 = vunpack.c.h.b16 %v2416
        %v2797 = vunpack.c.l.b16 %v2417
        %v2798 = vunpack.c.h.b16 %v2417
        %v2799 = vunpack.c.l.b16 %v2418
        %v2800 = vunpack.c.h.b16 %v2418
        %v2801 = vunpack.c.l.b16 %v2419
        %v2802 = vunpack.c.h.b16 %v2419
        %v2803 = vunpack.c.l.b16 %v2420
        %v2804 = vunpack.c.h.b16 %v2420
        %v2805 = vunpack.c.l.b16 %v2421
        %v2806 = vunpack.c.h.b16 %v2421
        %v2807 = vunpack.c.l.b16 %v2422
        %v2808 = vunpack.c.h.b16 %v2422
        %v2809 = vunpack.c.l.b16 %v2423
        %v2810 = vunpack.c.h.b16 %v2423
        %v2811 = vunpack.c.l.b16 %v2424
        %v2812 = vunpack.c.h.b16 %v2424
        %v2813 = vunpack.c.l.b16 %v2425
        %v2814 = vunpack.c.h.b16 %v2425
        %v2815 = vunpack.c.l.b16 %v2426
        %v2816 = vunpack.c.h.b16 %v2426
        %v2817 = vunpack.c.l.b16 %v2427
        %v2818 = vunpack.c.h.b16 %v2427
        %v2819 = vunpack.c.l.b16 %v2428
        %v2820 = vunpack.c.h.b16 %v2428
        %v2821 = vunpack.c.l.b16 %v2429
        %v2822 = vunpack.c.h.b16 %v2429
        %v2823 = vunpack.c.l.b16 %v2430
        %v2824 = vunpack.c.h.b16 %v2430
        %v2825 = vunpack.c.l.b16 %v2431
        %v2826 = vunpack.c.h.b16 %v2431
        %v2827 = vunpack.c.l.b16 %v2432
        %v2828 = vunpack.c.h.b16 %v2432
        %v2829 = vunpack.c.l.b16 %v2433
        %v2830 = vunpack.c.h.b16 %v2433
        %v2831 = vunpack.c.l.b16 %v2434
        %v2832 = vunpack.c.h.b16 %v2434
        %v2833 = vunpack.c.l.b16 %v2435
        %v2834 = vunpack.c.h.b16 %v2435
        %v2835 = vunpack.c.l.b16 %v2436
        %v2836 = vunpack.c.h.b16 %v2436
        %v2837 = vunpack.c.l.b16 %v2437
        %v2838 = vunpack.c.h.b16 %v2437
        %v2839 = vunpack.c.l.b16 %v2438
        %v2840 = vunpack.c.h.b16 %v2438
        %v2841 = vunpack.c.l.b16 %v2439
        %v2842 = vunpack.c.h.b16 %v2439
        %v2843 = vunpack.c.l.b16 %v2440
        %v2844 = vunpack.c.h.b16 %v2440
        %v2845 = vunpack.c.l.b16 %v2441
        %v2846 = vunpack.c.h.b16 %v2441
        %v2847 = vunpack.c.l.b16 %v2442
        %v2848 = vunpack.c.h.b16 %v2442
        %v2849 = vunpack.c.l.b16 %v2443
        %v2850 = vunpack.c.h.b16 %v2443
        %v2851 = vunpack.c.l.b16 %v2444
        %v2852 = vunpack.c.h.b16 %v2444
        %v2853 = vunpack.c.l.b16 %v2445
        %v2854 = vunpack.c.h.b16 %v2445
        %v2855 = vunpack.c.l.b16 %v2446
        %v2856 = vunpack.c.h.b16 %v2446
        %v2857 = vunpack.c.l.b16 %v2447
        %v2858 = vunpack.c.h.b16 %v2447
        %v2859 = vunpack.c.l.b16 %v2448
        %v2860 = vunpack.c.h.b16 %v2448
        %v2861 = vunpack.c.l.b16 %v2449
        %v2862 = vunpack.c.h.b16 %v2449
        %v2863 = vunpack.c.l.b16 %v2450
        %v2864 = vunpack.c.h.b16 %v2450
        %v2865 = vunpack.c.l.b16 %v2451
        %v2866 = vunpack.c.h.b16 %v2451
        %v2867 = vunpack.c.l.b16 %v2452
        %v2868 = vunpack.c.h.b16 %v2452
        %v2869 = vunpack.c.l.b16 %v2453
        %v2870 = vunpack.c.h.b16 %v2453
        %v2871 = vunpack.c.l.b16 %v2454
        %v2872 = vunpack.c.h.b16 %v2454
        %v2873 = vunpack.c.l.b16 %v2455
        %v2874 = vunpack.c.h.b16 %v2455
        %v2875 = vunpack.c.l.b16 %v2456
        %v2876 = vunpack.c.h.b16 %v2456
        %v2877 = vunpack.c.l.b16 %v2457
        %v2878 = vunpack.c.h.b16 %v2457
        %v2879 = vunpack.c.l.b16 %v2458
        %v2880 = vunpack.c.h.b16 %v2458
        %v2881 = vunpack.c.l.b16 %v2459
        %v2882 = vunpack.c.h.b16 %v2459
        %v2883 = vunpack.c.l.b16 %v2460
        %v2884 = vunpack.c.h.b16 %v2460
        %v2885 = vunpack.c.l.b16 %v2461
        %v2886 = vunpack.c.h.b16 %v2461
        %v2887 = vunpack.c.l.b16 %v2462
        %v2888 = vunpack.c.h.b16 %v2462
        %v2889 = vpack.c.b16 %v2641, %v2633
        %v2890 = vpack.c.b16 %v2642, %v2634
        %v2891 = vpack.c.b16 %v2643, %v2635
        %v2892 = vpack.c.b16 %v2644, %v2636
        %v2893 = vpack.c.b16 %v2645, %v2637
        %v2894 = vpack.c.b16 %v2646, %v2638
        %v2895 = vpack.c.b16 %v2647, %v2639
        %v2896 = vpack.c.b16 %v2648, %v2640
        %v2897 = vpack.c.b16 %v2657, %v2649
        %v2898 = vpack.c.b16 %v2658, %v2650
        %v2899 = vpack.c.b16 %v2659, %v2651
        %v2900 = vpack.c.b16 %v2660, %v2652
        %v2901 = vpack.c.b16 %v2661, %v2653
        %v2902 = vpack.c.b16 %v2662, %v2654
        %v2903 = vpack.c.b16 %v2663, %v2655
        %v2904 = vpack.c.b16 %v2664, %v2656
        %v2905 = vpack.c.b16 %v2673, %v2665
        %v2906 = vpack.c.b16 %v2674, %v2666
        %v2907 = vpack.c.b16 %v2675, %v2667
        %v2908 = vpack.c.b16 %v2676, %v2668
        %v2909 = vpack.c.b16 %v2677, %v2669
        %v2910 = vpack.c.b16 %v2678, %v2670
        %v2911 = vpack.c.b16 %v2679, %v2671
        %v2912 = vpack.c.b16 %v2680, %v2672
        %v2913 = vpack.c.b16 %v2689, %v2681
        %v2914 = vpack.c.b16 %v2690, %v2682
        %v2915 = vpack.c.b16 %v2691, %v2683
        %v2916 = vpack.c.b16 %v2692, %v2684
        %v2917 = vpack.c.b16 %v2693, %v2685
        %v2918 = vpack.c.b16 %v2694, %v2686
        %v2919 = vpack.c.b16 %v2695, %v2687
        %v2920 = vpack.c.b16 %v2696, %v2688
        %v2921 = vpack.c.b16 %v2705, %v2697
        %v2922 = vpack.c.b16 %v2706, %v2698
        %v2923 = vpack.c.b16 %v2707, %v2699
        %v2924 = vpack.c.b16 %v2708, %v2700
        %v2925 = vpack.c.b16 %v2709, %v2701
        %v2926 = vpack.c.b16 %v2710, %v2702
        %v2927 = vpack.c.b16 %v2711, %v2703
        %v2928 = vpack.c.b16 %v2712, %v2704
        %v2929 = vpack.c.b16 %v2721, %v2713
        %v2930 = vpack.c.b16 %v2722, %v2714
        %v2931 = vpack.c.b16 %v2723, %v2715
        %v2932 = vpack.c.b16 %v2724, %v2716
        %v2933 = vpack.c.b16 %v2725, %v2717
        %v2934 = vpack.c.b16 %v2726, %v2718
        %v2935 = vpack.c.b16 %v2727, %v2719
        %v2936 = vpack.c.b16 %v2728, %v2720
        %v2937 = vpack.c.b16 %v2737, %v2729
        %v2938 = vpack.c.b16 %v2738, %v2730
        %v2939 = vpack.c.b16 %v2739, %v2731
        %v2940 = vpack.c.b16 %v2740, %v2732
        %v2941 = vpack.c.b16 %v2741, %v2733
        %v2942 = vpack.c.b16 %v2742, %v2734
        %v2943 = vpack.c.b16 %v2743, %v2735
        %v2944 = vpack.c.b16 %v2744, %v2736
        %v2945 = vpack.c.b16 %v2753, %v2745
        %v2946 = vpack.c.b16 %v2754, %v2746
        %v2947 = vpack.c.b16 %v2755, %v2747
        %v2948 = vpack.c.b16 %v2756, %v2748
        %v2949 = vpack.c.b16 %v2757, %v2749
        %v2950 = vpack.c.b16 %v2758, %v2750
        %v2951 = vpack.c.b16 %v2759, %v2751
        %v2952 = vpack.c.b16 %v2760, %v2752
        %v2953 = vpack.c.b16 %v2769, %v2761
        %v2954 = vpack.c.b16 %v2770, %v2762
        %v2955 = vpack.c.b16 %v2771, %v2763
        %v2956 = vpack.c.b16 %v2772, %v2764
        %v2957 = vpack.c.b16 %v2773, %v2765
        %v2958 = vpack.c.b16 %v2774, %v2766
        %v2959 = vpack.c.b16 %v2775, %v2767
        %v2960 = vpack.c.b16 %v2776, %v2768
        %v2961 = vpack.c.b16 %v2785, %v2777
        %v2962 = vpack.c.b16 %v2786, %v2778
        %v2963 = vpack.c.b16 %v2787, %v2779
        %v2964 = vpack.c.b16 %v2788, %v2780
        %v2965 = vpack.c.b16 %v2789, %v2781
        %v2966 = vpack.c.b16 %v2790, %v2782
        %v2967 = vpack.c.b16 %v2791, %v2783
        %v2968 = vpack.c.b16 %v2792, %v2784
        %v2969 = vpack.c.b16 %v2801, %v2793
        %v2970 = vpack.c.b16 %v2802, %v2794
        %v2971 = vpack.c.b16 %v2803, %v2795
        %v2972 = vpack.c.b16 %v2804, %v2796
        %v2973 = vpack.c.b16 %v2805, %v2797
        %v2974 = vpack.c.b16 %v2806, %v2798
        %v2975 = vpack.c.b16 %v2807, %v2799
        %v2976 = vpack.c.b16 %v2808, %v2800
        %v2977 = vpack.c.b16 %v2817, %v2809
        %v2978 = vpack.c.b16 %v2818, %v2810
        %v2979 = vpack.c.b16 %v2819, %v2811
        %v2980 = vpack.c.b16 %v2820, %v2812
        %v2981 = vpack.c.b16 %v2821, %v2813
        %v2982 = vpack.c.b16 %v2822, %v2814
        %v2983 = vpack.c.b16 %v2823, %v2815
        %v2984 = vpack.c.b16 %v2824, %v2816
        %v2985 = vpack.c.b16 %v2833, %v2825
        %v2986 = vpack.c.b16 %v2834, %v2826
        %v2987 = vpack.c.b16 %v2835, %v2827
        %v2988 = vpack.c.b16 %v2836, %v2828
        %v2989 = vpack.c.b16 %v2837, %v2829
        %v2990 = vpack.c.b16 %v2838, %v2830
        %v2991 = vpack.c.b16 %v2839, %v2831
        %v2992 = vpack.c.b16 %v2840, %v2832
        %v2993 = vpack.c.b16 %v2849, %v2841
        %v2994 = vpack.c.b16 %v2850, %v2842
        %v2995 = vpack.c.b16 %v2851, %v2843
        %v2996 = vpack.c.b16 %v2852, %v2844
        %v2997 = vpack.c.b16 %v2853, %v2845
        %v2998 = vpack.c.b16 %v2854, %v2846
        %v2999 = vpack.c.b16 %v2855, %v2847
        %v3000 = vpack.c.b16 %v2856, %v2848
        %v3001 = vpack.c.b16 %v2865, %v2857
        %v3002 = vpack.c.b16 %v2866, %v2858
        %v3003 = vpack.c.b16 %v2867, %v2859
        %v3004 = vpack.c.b16 %v2868, %v2860
        %v3005 = vpack.c.b16 %v2869, %v2861
        %v3006 = vpack.c.b16 %v2870, %v2862
        %v3007 = vpack.c.b16 %v2871, %v2863
        %v3008 = vpack.c.b16 %v2872, %v2864
        %v3009 = vpack.c.b16 %v2881, %v2873
        %v3010 = vpack.c.b16 %v2882, %v2874
        %v3011 = vpack.c.b16 %v2883, %v2875
        %v3012 = vpack.c.b16 %v2884, %v2876
        %v3013 = vpack.c.b16 %v2885, %v2877
        %v3014 = vpack.c.b16 %v2886, %v2878
        %v3015 = vpack.c.b16 %v2887, %v2879
        %v3016 = vpack.c.b16 %v2888, %v2880
        %3145 = vmatprep.subr.bf16.mxu0 %v2946
        %3146 = vmatpush1.bf16.msra.mxu0 %v2945
        %3147 = vmatprep.subr.bf16.mxu0 %v2938
        %3148 = vmatpush1.bf16.msra.mxu0 %v2937
        %3149 = vmatprep.subr.bf16.mxu0 %v2930
        %3150 = vmatpush1.bf16.msra.mxu0 %v2929
        %3151 = vmatprep.subr.bf16.mxu0 %v2922
        %3152 = vmatpush1.bf16.msra.mxu0 %v2921
        %3153 = vmatprep.subr.bf16.mxu0 %v2914
        %3154 = vmatpush1.bf16.msra.mxu0 %v2913
        %3155 = vmatprep.subr.bf16.mxu0 %v2906
        %3156 = vmatpush1.bf16.msra.mxu0 %v2905
        %3157 = vmatprep.subr.bf16.mxu0 %v2898
        %3158 = vmatpush1.bf16.msra.mxu0 %v2897
        %3159 = vmatprep.subr.bf16.mxu0 %v2890
        %3160 = vmatpush1.bf16.msra.mxu0 %v2889
        %3161 = vmatprep.subr.bf16.mxu0 %v3010
        %3162 = vmatpush2.bf16.msra.mxu0 %v3009
        %3163 = vmatprep.subr.bf16.mxu0 %v3002
        %3164 = vmatpush2.bf16.msra.mxu0 %v3001
        %3165 = vmatprep.subr.bf16.mxu0 %v2994
        %3166 = vmatpush2.bf16.msra.mxu0 %v2993
        %3167 = vmatprep.subr.bf16.mxu0 %v2986
        %3168 = vmatpush2.bf16.msra.mxu0 %v2985
        %3169 = vmatprep.subr.bf16.mxu0 %v2978
        %3170 = vmatpush2.bf16.msra.mxu0 %v2977
        %3171 = vmatprep.subr.bf16.mxu0 %v2970
        %3172 = vmatpush2.bf16.msra.mxu0 %v2969
        %3173 = vmatprep.subr.bf16.mxu0 %v2962
        %3174 = vmatpush2.bf16.msra.mxu0 %v2961
        %3175 = vmatprep.subr.bf16.mxu0 %v2954
        %3176 = vmatpush2.bf16.msra.mxu0 %v2953
        %3177 = vmatprep.mubr.bf16.mxu0 %v2334
        %3178 = vmatmul.mubr.bf16.gmra.mxu0 %v2333
        %v3179 = vpop.f32.mrf.mxu0
        %v3180 = vadd.f32 %v2468, %v3179
        %v3181 = vpop.f32.mrf.mxu0
        %v3182 = vadd.f32 %v2472, %v3181
        %v3183 = vpop.f32.mrf.mxu0
        %v3184 = vadd.f32 %v2468, %v3183
        %v3185 = vpop.f32.mrf.mxu0
        %v3186 = vadd.f32 %v2472, %v3185
        %3187 = vdwg.mxu0
        %3188 = vmatprep.subr.bf16.mxu0 %v2948
        %3189 = vmatpush1.bf16.msra.mxu0 %v2947
        %3190 = vmatprep.subr.bf16.mxu0 %v2940
        %3191 = vmatpush1.bf16.msra.mxu0 %v2939
        %3192 = vmatprep.subr.bf16.mxu0 %v2932
        %3193 = vmatpush1.bf16.msra.mxu0 %v2931
        %3194 = vmatprep.subr.bf16.mxu0 %v2924
        %3195 = vmatpush1.bf16.msra.mxu0 %v2923
        %3196 = vmatprep.subr.bf16.mxu0 %v2916
        %3197 = vmatpush1.bf16.msra.mxu0 %v2915
        %3198 = vmatprep.subr.bf16.mxu0 %v2908
        %3199 = vmatpush1.bf16.msra.mxu0 %v2907
        %3200 = vmatprep.subr.bf16.mxu0 %v2900
        %3201 = vmatpush1.bf16.msra.mxu0 %v2899
        %3202 = vmatprep.subr.bf16.mxu0 %v2892
        %3203 = vmatpush1.bf16.msra.mxu0 %v2891
        %3204 = vmatprep.subr.bf16.mxu0 %v3012
        %3205 = vmatpush2.bf16.msra.mxu0 %v3011
        %3206 = vmatprep.subr.bf16.mxu0 %v3004
        %3207 = vmatpush2.bf16.msra.mxu0 %v3003
        %3208 = vmatprep.subr.bf16.mxu0 %v2996
        %3209 = vmatpush2.bf16.msra.mxu0 %v2995
        %3210 = vmatprep.subr.bf16.mxu0 %v2988
        %3211 = vmatpush2.bf16.msra.mxu0 %v2987
        %3212 = vmatprep.subr.bf16.mxu0 %v2980
        %3213 = vmatpush2.bf16.msra.mxu0 %v2979
        %3214 = vmatprep.subr.bf16.mxu0 %v2972
        %3215 = vmatpush2.bf16.msra.mxu0 %v2971
        %3216 = vmatprep.subr.bf16.mxu0 %v2964
        %3217 = vmatpush2.bf16.msra.mxu0 %v2963
        %3218 = vmatprep.subr.bf16.mxu0 %v2956
        %3219 = vmatpush2.bf16.msra.mxu0 %v2955
        %3220 = vmatprep.mubr.bf16.mxu0 %v2334
        %3221 = vmatmul.mubr.bf16.gmra.mxu0 %v2333
        %v3222 = vpop.f32.mrf.mxu0
        %v3223 = vadd.f32 %v2476, %v3222
        %v3224 = vpop.f32.mrf.mxu0
        %v3225 = vadd.f32 %v2480, %v3224
        %v3226 = vpop.f32.mrf.mxu0
        %v3227 = vadd.f32 %v2476, %v3226
        %v3228 = vpop.f32.mrf.mxu0
        %v3229 = vadd.f32 %v2480, %v3228
        %3230 = vdwg.mxu0
        %3231 = vmatprep.subr.bf16.mxu0 %v2950
        %3232 = vmatpush1.bf16.msra.mxu0 %v2949
        %3233 = vmatprep.subr.bf16.mxu0 %v2942
        %3234 = vmatpush1.bf16.msra.mxu0 %v2941
        %3235 = vmatprep.subr.bf16.mxu0 %v2934
        %3236 = vmatpush1.bf16.msra.mxu0 %v2933
        %3237 = vmatprep.subr.bf16.mxu0 %v2926
        %3238 = vmatpush1.bf16.msra.mxu0 %v2925
        %3239 = vmatprep.subr.bf16.mxu0 %v2918
        %3240 = vmatpush1.bf16.msra.mxu0 %v2917
        %3241 = vmatprep.subr.bf16.mxu0 %v2910
        %3242 = vmatpush1.bf16.msra.mxu0 %v2909
        %3243 = vmatprep.subr.bf16.mxu0 %v2902
        %3244 = vmatpush1.bf16.msra.mxu0 %v2901
        %3245 = vmatprep.subr.bf16.mxu0 %v2894
        %3246 = vmatpush1.bf16.msra.mxu0 %v2893
        %3247 = vmatprep.subr.bf16.mxu0 %v3014
        %3248 = vmatpush2.bf16.msra.mxu0 %v3013
        %3249 = vmatprep.subr.bf16.mxu0 %v3006
        %3250 = vmatpush2.bf16.msra.mxu0 %v3005
        %3251 = vmatprep.subr.bf16.mxu0 %v2998
        %3252 = vmatpush2.bf16.msra.mxu0 %v2997
        %3253 = vmatprep.subr.bf16.mxu0 %v2990
        %3254 = vmatpush2.bf16.msra.mxu0 %v2989
        %3255 = vmatprep.subr.bf16.mxu0 %v2982
        %3256 = vmatpush2.bf16.msra.mxu0 %v2981
        %3257 = vmatprep.subr.bf16.mxu0 %v2974
        %3258 = vmatpush2.bf16.msra.mxu0 %v2973
        %3259 = vmatprep.subr.bf16.mxu0 %v2966
        %3260 = vmatpush2.bf16.msra.mxu0 %v2965
        %3261 = vmatprep.subr.bf16.mxu0 %v2958
        %3262 = vmatpush2.bf16.msra.mxu0 %v2957
        %3263 = vmatprep.mubr.bf16.mxu0 %v2334
        %3264 = vmatmul.mubr.bf16.gmra.mxu0 %v2333
        %v3265 = vpop.f32.mrf.mxu0
        %v3266 = vadd.f32 %v2484, %v3265
        %v3267 = vpop.f32.mrf.mxu0
        %v3268 = vadd.f32 %v2488, %v3267
        %v3269 = vpop.f32.mrf.mxu0
        %v3270 = vadd.f32 %v2484, %v3269
        %v3271 = vpop.f32.mrf.mxu0
        %v3272 = vadd.f32 %v2488, %v3271
        %3273 = vdwg.mxu0
        %3274 = vmatprep.subr.bf16.mxu0 %v2952
        %3275 = vmatpush1.bf16.msra.mxu0 %v2951
        %3276 = vmatprep.subr.bf16.mxu0 %v2944
        %3277 = vmatpush1.bf16.msra.mxu0 %v2943
        %3278 = vmatprep.subr.bf16.mxu0 %v2936
        %3279 = vmatpush1.bf16.msra.mxu0 %v2935
        %3280 = vmatprep.subr.bf16.mxu0 %v2928
        %3281 = vmatpush1.bf16.msra.mxu0 %v2927
        %3282 = vmatprep.subr.bf16.mxu0 %v2920
        %3283 = vmatpush1.bf16.msra.mxu0 %v2919
        %3284 = vmatprep.subr.bf16.mxu0 %v2912
        %3285 = vmatpush1.bf16.msra.mxu0 %v2911
        %3286 = vmatprep.subr.bf16.mxu0 %v2904
        %3287 = vmatpush1.bf16.msra.mxu0 %v2903
        %3288 = vmatprep.subr.bf16.mxu0 %v2896
        %3289 = vmatpush1.bf16.msra.mxu0 %v2895
        %3290 = vmatprep.subr.bf16.mxu0 %v3016
        %3291 = vmatpush2.bf16.msra.mxu0 %v3015
        %3292 = vmatprep.subr.bf16.mxu0 %v3008
        %3293 = vmatpush2.bf16.msra.mxu0 %v3007
        %3294 = vmatprep.subr.bf16.mxu0 %v3000
        %3295 = vmatpush2.bf16.msra.mxu0 %v2999
        %3296 = vmatprep.subr.bf16.mxu0 %v2992
        %3297 = vmatpush2.bf16.msra.mxu0 %v2991
        %3298 = vmatprep.subr.bf16.mxu0 %v2984
        %3299 = vmatpush2.bf16.msra.mxu0 %v2983
        %3300 = vmatprep.subr.bf16.mxu0 %v2976
        %3301 = vmatpush2.bf16.msra.mxu0 %v2975
        %3302 = vmatprep.subr.bf16.mxu0 %v2968
        %3303 = vmatpush2.bf16.msra.mxu0 %v2967
        %3304 = vmatprep.subr.bf16.mxu0 %v2960
        %3305 = vmatpush2.bf16.msra.mxu0 %v2959
        %3306 = vmatprep.mubr.bf16.mxu0 %v2334
        %3307 = vmatmul.mubr.bf16.gmra.mxu0 %v2333
        %v3308 = vpop.f32.mrf.mxu0
        %v3309 = vadd.f32 %v2492, %v3308
        %v3310 = vpop.f32.mrf.mxu0
        %v3311 = vadd.f32 %v2496, %v3310
        %v3312 = vpop.f32.mrf.mxu0
        %v3313 = vadd.f32 %v2492, %v3312
        %v3314 = vpop.f32.mrf.mxu0
        %v3315 = vadd.f32 %v2496, %v3314
        %3316 = vdwg.mxu0
        %v3317 = vmax.f32 %v3180, 0.0
        %v3318 = vmax.f32 %v3182, 0.0
        %v3319 = vmax.f32 %v3223, 0.0
        %v3320 = vmax.f32 %v3225, 0.0
        %v3321 = vmax.f32 %v3266, 0.0
        %v3322 = vmax.f32 %v3268, 0.0
        %v3323 = vmax.f32 %v3309, 0.0
        %v3324 = vmax.f32 %v3311, 0.0
        %v3325 = vmax.f32 %v3184, 0.0
        %v3326 = vmax.f32 %v3186, 0.0
        %v3327 = vmax.f32 %v3227, 0.0
        %v3328 = vmax.f32 %v3229, 0.0
        %v3329 = vmax.f32 %v3270, 0.0
        %v3330 = vmax.f32 %v3272, 0.0
        %v3331 = vmax.f32 %v3313, 0.0
        %v3332 = vmax.f32 %v3315, 0.0
        %v3333 = vpack.c.bf16 %v3325, %v3317
        %v3334 = vpack.c.bf16 %v3326, %v3318
        %v3335 = vpack.c.bf16 %v3327, %v3319
        %v3336 = vpack.c.bf16 %v3328, %v3320
        %v3337 = vpack.c.bf16 %v3329, %v3321
        %v3338 = vpack.c.bf16 %v3330, %v3322
        %v3339 = vpack.c.bf16 %v3331, %v3323
        %v3340 = vpack.c.bf16 %v3332, %v3324
        %v3341 = vld [vmem:[%s657] sm:$0xff]
        %v3342 = vld [vmem:[%s657 + $0x8] sm:$0xff]
        %v3343 = vld [vmem:[%s657 + $0x10] sm:$0xff]
        %v3344 = vld [vmem:[%s657 + $0x18] sm:$0xff]
        %v3345 = vld [vmem:[%s657 + $0x20] sm:$0xff]
        %v3346 = vld [vmem:[%s657 + $0x28] sm:$0xff]
        %v3347 = vld [vmem:[%s657 + $0x30] sm:$0xff]
        %v3348 = vld [vmem:[%s657 + $0x38] sm:$0xff]
        %v3349 = vld [vmem:[%s657 + $0x40] sm:$0xff]
        %v3350 = vld [vmem:[%s657 + $0x48] sm:$0xff]
        %v3351 = vld [vmem:[%s657 + $0x50] sm:$0xff]
        %v3352 = vld [vmem:[%s657 + $0x58] sm:$0xff]
        %v3353 = vld [vmem:[%s657 + $0x60] sm:$0xff]
        %v3354 = vld [vmem:[%s657 + $0x68] sm:$0xff]
        %v3355 = vld [vmem:[%s657 + $0x70] sm:$0xff]
        %v3356 = vld [vmem:[%s657 + $0x78] sm:$0xff]
        %v3357 = vld [vmem:[%s657 + $0x80] sm:$0xff]
        %v3358 = vld [vmem:[%s657 + $0x88] sm:$0xff]
        %v3359 = vld [vmem:[%s657 + $0x90] sm:$0xff]
        %v3360 = vld [vmem:[%s657 + $0x98] sm:$0xff]
        %v3361 = vld [vmem:[%s657 + $0xa0] sm:$0xff]
        %v3362 = vld [vmem:[%s657 + $0xa8] sm:$0xff]
        %v3363 = vld [vmem:[%s657 + $0xb0] sm:$0xff]
        %v3364 = vld [vmem:[%s657 + $0xb8] sm:$0xff]
        %v3365 = vld [vmem:[%s657 + $0xc0] sm:$0xff]
        %v3366 = vld [vmem:[%s657 + $0xc8] sm:$0xff]
        %v3367 = vld [vmem:[%s657 + $0xd0] sm:$0xff]
        %v3368 = vld [vmem:[%s657 + $0xd8] sm:$0xff]
        %v3369 = vld [vmem:[%s657 + $0xe0] sm:$0xff]
        %v3370 = vld [vmem:[%s657 + $0xe8] sm:$0xff]
        %v3371 = vld [vmem:[%s657 + $0xf0] sm:$0xff]
        %v3372 = vld [vmem:[%s657 + $0xf8] sm:$0xff]
        %v3373 = vld [vmem:[%s657 + $0x100] sm:$0xff]
        %v3374 = vld [vmem:[%s657 + $0x108] sm:$0xff]
        %v3375 = vld [vmem:[%s657 + $0x110] sm:$0xff]
        %v3376 = vld [vmem:[%s657 + $0x118] sm:$0xff]
        %v3377 = vld [vmem:[%s657 + $0x120] sm:$0xff]
        %v3378 = vld [vmem:[%s657 + $0x128] sm:$0xff]
        %v3379 = vld [vmem:[%s657 + $0x130] sm:$0xff]
        %v3380 = vld [vmem:[%s657 + $0x138] sm:$0xff]
        %v3381 = vld [vmem:[%s657 + $0x140] sm:$0xff]
        %v3382 = vld [vmem:[%s657 + $0x148] sm:$0xff]
        %v3383 = vld [vmem:[%s657 + $0x150] sm:$0xff]
        %v3384 = vld [vmem:[%s657 + $0x158] sm:$0xff]
        %v3385 = vld [vmem:[%s657 + $0x160] sm:$0xff]
        %v3386 = vld [vmem:[%s657 + $0x168] sm:$0xff]
        %v3387 = vld [vmem:[%s657 + $0x170] sm:$0xff]
        %v3388 = vld [vmem:[%s657 + $0x178] sm:$0xff]
        %v3389 = vld [vmem:[%s657 + $0x180] sm:$0xff]
        %v3390 = vld [vmem:[%s657 + $0x188] sm:$0xff]
        %v3391 = vld [vmem:[%s657 + $0x190] sm:$0xff]
        %v3392 = vld [vmem:[%s657 + $0x198] sm:$0xff]
        %v3393 = vld [vmem:[%s657 + $0x1a0] sm:$0xff]
        %v3394 = vld [vmem:[%s657 + $0x1a8] sm:$0xff]
        %v3395 = vld [vmem:[%s657 + $0x1b0] sm:$0xff]
        %v3396 = vld [vmem:[%s657 + $0x1b8] sm:$0xff]
        %v3397 = vld [vmem:[%s657 + $0x1c0] sm:$0xff]
        %v3398 = vld [vmem:[%s657 + $0x1c8] sm:$0xff]
        %v3399 = vld [vmem:[%s657 + $0x1d0] sm:$0xff]
        %v3400 = vld [vmem:[%s657 + $0x1d8] sm:$0xff]
        %v3401 = vld [vmem:[%s657 + $0x1e0] sm:$0xff]
        %v3402 = vld [vmem:[%s657 + $0x1e8] sm:$0xff]
        %v3403 = vld [vmem:[%s657 + $0x1f0] sm:$0xff]
        %v3404 = vld [vmem:[%s657 + $0x1f8] sm:$0xff]
        %v3405 = vld [vmem:[%s657 + $0x200] sm:$0xff]
        %v3406 = vld [vmem:[%s657 + $0x208] sm:$0xff]
        %v3407 = vld [vmem:[%s657 + $0x210] sm:$0xff]
        %v3408 = vld [vmem:[%s657 + $0x218] sm:$0xff]
        %v3409 = vld [vmem:[%s657 + $0x220] sm:$0xff]
        %v3410 = vld [vmem:[%s657 + $0x228] sm:$0xff]
        %v3411 = vld [vmem:[%s657 + $0x230] sm:$0xff]
        %v3412 = vld [vmem:[%s657 + $0x238] sm:$0xff]
        %v3413 = vld [vmem:[%s657 + $0x240] sm:$0xff]
        %v3414 = vld [vmem:[%s657 + $0x248] sm:$0xff]
        %v3415 = vld [vmem:[%s657 + $0x250] sm:$0xff]
        %v3416 = vld [vmem:[%s657 + $0x258] sm:$0xff]
        %v3417 = vld [vmem:[%s657 + $0x260] sm:$0xff]
        %v3418 = vld [vmem:[%s657 + $0x268] sm:$0xff]
        %v3419 = vld [vmem:[%s657 + $0x270] sm:$0xff]
        %v3420 = vld [vmem:[%s657 + $0x278] sm:$0xff]
        %v3421 = vld [vmem:[%s657 + $0x280] sm:$0xff]
        %v3422 = vld [vmem:[%s657 + $0x288] sm:$0xff]
        %v3423 = vld [vmem:[%s657 + $0x290] sm:$0xff]
        %v3424 = vld [vmem:[%s657 + $0x298] sm:$0xff]
        %v3425 = vld [vmem:[%s657 + $0x2a0] sm:$0xff]
        %v3426 = vld [vmem:[%s657 + $0x2a8] sm:$0xff]
        %v3427 = vld [vmem:[%s657 + $0x2b0] sm:$0xff]
        %v3428 = vld [vmem:[%s657 + $0x2b8] sm:$0xff]
        %v3429 = vld [vmem:[%s657 + $0x2c0] sm:$0xff]
        %v3430 = vld [vmem:[%s657 + $0x2c8] sm:$0xff]
        %v3431 = vld [vmem:[%s657 + $0x2d0] sm:$0xff]
        %v3432 = vld [vmem:[%s657 + $0x2d8] sm:$0xff]
        %v3433 = vld [vmem:[%s657 + $0x2e0] sm:$0xff]
        %v3434 = vld [vmem:[%s657 + $0x2e8] sm:$0xff]
        %v3435 = vld [vmem:[%s657 + $0x2f0] sm:$0xff]
        %v3436 = vld [vmem:[%s657 + $0x2f8] sm:$0xff]
        %v3437 = vld [vmem:[%s657 + $0x300] sm:$0xff]
        %v3438 = vld [vmem:[%s657 + $0x308] sm:$0xff]
        %v3439 = vld [vmem:[%s657 + $0x310] sm:$0xff]
        %v3440 = vld [vmem:[%s657 + $0x318] sm:$0xff]
        %v3441 = vld [vmem:[%s657 + $0x320] sm:$0xff]
        %v3442 = vld [vmem:[%s657 + $0x328] sm:$0xff]
        %v3443 = vld [vmem:[%s657 + $0x330] sm:$0xff]
        %v3444 = vld [vmem:[%s657 + $0x338] sm:$0xff]
        %v3445 = vld [vmem:[%s657 + $0x340] sm:$0xff]
        %v3446 = vld [vmem:[%s657 + $0x348] sm:$0xff]
        %v3447 = vld [vmem:[%s657 + $0x350] sm:$0xff]
        %v3448 = vld [vmem:[%s657 + $0x358] sm:$0xff]
        %v3449 = vld [vmem:[%s657 + $0x360] sm:$0xff]
        %v3450 = vld [vmem:[%s657 + $0x368] sm:$0xff]
        %v3451 = vld [vmem:[%s657 + $0x370] sm:$0xff]
        %v3452 = vld [vmem:[%s657 + $0x378] sm:$0xff]
        %v3453 = vld [vmem:[%s657 + $0x380] sm:$0xff]
        %v3454 = vld [vmem:[%s657 + $0x388] sm:$0xff]
        %v3455 = vld [vmem:[%s657 + $0x390] sm:$0xff]
        %v3456 = vld [vmem:[%s657 + $0x398] sm:$0xff]
        %v3457 = vld [vmem:[%s657 + $0x3a0] sm:$0xff]
        %v3458 = vld [vmem:[%s657 + $0x3a8] sm:$0xff]
        %v3459 = vld [vmem:[%s657 + $0x3b0] sm:$0xff]
        %v3460 = vld [vmem:[%s657 + $0x3b8] sm:$0xff]
        %v3461 = vld [vmem:[%s657 + $0x3c0] sm:$0xff]
        %v3462 = vld [vmem:[%s657 + $0x3c8] sm:$0xff]
        %v3463 = vld [vmem:[%s657 + $0x3d0] sm:$0xff]
        %v3464 = vld [vmem:[%s657 + $0x3d8] sm:$0xff]
        %v3465 = vld [vmem:[%s657 + $0x3e0] sm:$0xff]
        %v3466 = vld [vmem:[%s657 + $0x3e8] sm:$0xff]
        %v3467 = vld [vmem:[%s657 + $0x3f0] sm:$0xff]
        %v3468 = vld [vmem:[%s657 + $0x3f8] sm:$0xff]
        %v3469 = vld [vmem:[%s779] sm:$0x3]
        %v3471 = vlaneseq
        %v3472 = vshrl.u32 %v3471, 7
        %v3473 = vsub.s32 0, %v3472
        %v3474 = vrot.slane %v3469, %v3473
        %v3475 = vlaneseq
        %v3476 = vshrl.u32 %v3475, 7
        %v3477 = vsub.s32 1, %v3476
        %v3478 = vrot.slane %v3469, %v3477
        %v3609 = vunpack.c.l.b16 %v3341
        %v3610 = vunpack.c.h.b16 %v3341
        %v3611 = vunpack.c.l.b16 %v3342
        %v3612 = vunpack.c.h.b16 %v3342
        %v3613 = vunpack.c.l.b16 %v3343
        %v3614 = vunpack.c.h.b16 %v3343
        %v3615 = vunpack.c.l.b16 %v3344
        %v3616 = vunpack.c.h.b16 %v3344
        %v3617 = vunpack.c.l.b16 %v3345
        %v3618 = vunpack.c.h.b16 %v3345
        %v3619 = vunpack.c.l.b16 %v3346
        %v3620 = vunpack.c.h.b16 %v3346
        %v3621 = vunpack.c.l.b16 %v3347
        %v3622 = vunpack.c.h.b16 %v3347
        %v3623 = vunpack.c.l.b16 %v3348
        %v3624 = vunpack.c.h.b16 %v3348
        %v3625 = vunpack.c.l.b16 %v3349
        %v3626 = vunpack.c.h.b16 %v3349
        %v3627 = vunpack.c.l.b16 %v3350
        %v3628 = vunpack.c.h.b16 %v3350
        %v3629 = vunpack.c.l.b16 %v3351
        %v3630 = vunpack.c.h.b16 %v3351
        %v3631 = vunpack.c.l.b16 %v3352
        %v3632 = vunpack.c.h.b16 %v3352
        %v3633 = vunpack.c.l.b16 %v3353
        %v3634 = vunpack.c.h.b16 %v3353
        %v3635 = vunpack.c.l.b16 %v3354
        %v3636 = vunpack.c.h.b16 %v3354
        %v3637 = vunpack.c.l.b16 %v3355
        %v3638 = vunpack.c.h.b16 %v3355
        %v3639 = vunpack.c.l.b16 %v3356
        %v3640 = vunpack.c.h.b16 %v3356
        %v3641 = vunpack.c.l.b16 %v3357
        %v3642 = vunpack.c.h.b16 %v3357
        %v3643 = vunpack.c.l.b16 %v3358
        %v3644 = vunpack.c.h.b16 %v3358
        %v3645 = vunpack.c.l.b16 %v3359
        %v3646 = vunpack.c.h.b16 %v3359
        %v3647 = vunpack.c.l.b16 %v3360
        %v3648 = vunpack.c.h.b16 %v3360
        %v3649 = vunpack.c.l.b16 %v3361
        %v3650 = vunpack.c.h.b16 %v3361
        %v3651 = vunpack.c.l.b16 %v3362
        %v3652 = vunpack.c.h.b16 %v3362
        %v3653 = vunpack.c.l.b16 %v3363
        %v3654 = vunpack.c.h.b16 %v3363
        %v3655 = vunpack.c.l.b16 %v3364
        %v3656 = vunpack.c.h.b16 %v3364
        %v3657 = vunpack.c.l.b16 %v3365
        %v3658 = vunpack.c.h.b16 %v3365
        %v3659 = vunpack.c.l.b16 %v3366
        %v3660 = vunpack.c.h.b16 %v3366
        %v3661 = vunpack.c.l.b16 %v3367
        %v3662 = vunpack.c.h.b16 %v3367
        %v3663 = vunpack.c.l.b16 %v3368
        %v3664 = vunpack.c.h.b16 %v3368
        %v3665 = vunpack.c.l.b16 %v3369
        %v3666 = vunpack.c.h.b16 %v3369
        %v3667 = vunpack.c.l.b16 %v3370
        %v3668 = vunpack.c.h.b16 %v3370
        %v3669 = vunpack.c.l.b16 %v3371
        %v3670 = vunpack.c.h.b16 %v3371
        %v3671 = vunpack.c.l.b16 %v3372
        %v3672 = vunpack.c.h.b16 %v3372
        %v3673 = vunpack.c.l.b16 %v3373
        %v3674 = vunpack.c.h.b16 %v3373
        %v3675 = vunpack.c.l.b16 %v3374
        %v3676 = vunpack.c.h.b16 %v3374
        %v3677 = vunpack.c.l.b16 %v3375
        %v3678 = vunpack.c.h.b16 %v3375
        %v3679 = vunpack.c.l.b16 %v3376
        %v3680 = vunpack.c.h.b16 %v3376
        %v3681 = vunpack.c.l.b16 %v3377
        %v3682 = vunpack.c.h.b16 %v3377
        %v3683 = vunpack.c.l.b16 %v3378
        %v3684 = vunpack.c.h.b16 %v3378
        %v3685 = vunpack.c.l.b16 %v3379
        %v3686 = vunpack.c.h.b16 %v3379
        %v3687 = vunpack.c.l.b16 %v3380
        %v3688 = vunpack.c.h.b16 %v3380
        %v3689 = vunpack.c.l.b16 %v3381
        %v3690 = vunpack.c.h.b16 %v3381
        %v3691 = vunpack.c.l.b16 %v3382
        %v3692 = vunpack.c.h.b16 %v3382
        %v3693 = vunpack.c.l.b16 %v3383
        %v3694 = vunpack.c.h.b16 %v3383
        %v3695 = vunpack.c.l.b16 %v3384
        %v3696 = vunpack.c.h.b16 %v3384
        %v3697 = vunpack.c.l.b16 %v3385
        %v3698 = vunpack.c.h.b16 %v3385
        %v3699 = vunpack.c.l.b16 %v3386
        %v3700 = vunpack.c.h.b16 %v3386
        %v3701 = vunpack.c.l.b16 %v3387
        %v3702 = vunpack.c.h.b16 %v3387
        %v3703 = vunpack.c.l.b16 %v3388
        %v3704 = vunpack.c.h.b16 %v3388
        %v3705 = vunpack.c.l.b16 %v3389
        %v3706 = vunpack.c.h.b16 %v3389
        %v3707 = vunpack.c.l.b16 %v3390
        %v3708 = vunpack.c.h.b16 %v3390
        %v3709 = vunpack.c.l.b16 %v3391
        %v3710 = vunpack.c.h.b16 %v3391
        %v3711 = vunpack.c.l.b16 %v3392
        %v3712 = vunpack.c.h.b16 %v3392
        %v3713 = vunpack.c.l.b16 %v3393
        %v3714 = vunpack.c.h.b16 %v3393
        %v3715 = vunpack.c.l.b16 %v3394
        %v3716 = vunpack.c.h.b16 %v3394
        %v3717 = vunpack.c.l.b16 %v3395
        %v3718 = vunpack.c.h.b16 %v3395
        %v3719 = vunpack.c.l.b16 %v3396
        %v3720 = vunpack.c.h.b16 %v3396
        %v3721 = vunpack.c.l.b16 %v3397
        %v3722 = vunpack.c.h.b16 %v3397
        %v3723 = vunpack.c.l.b16 %v3398
        %v3724 = vunpack.c.h.b16 %v3398
        %v3725 = vunpack.c.l.b16 %v3399
        %v3726 = vunpack.c.h.b16 %v3399
        %v3727 = vunpack.c.l.b16 %v3400
        %v3728 = vunpack.c.h.b16 %v3400
        %v3729 = vunpack.c.l.b16 %v3401
        %v3730 = vunpack.c.h.b16 %v3401
        %v3731 = vunpack.c.l.b16 %v3402
        %v3732 = vunpack.c.h.b16 %v3402
        %v3733 = vunpack.c.l.b16 %v3403
        %v3734 = vunpack.c.h.b16 %v3403
        %v3735 = vunpack.c.l.b16 %v3404
        %v3736 = vunpack.c.h.b16 %v3404
        %v3737 = vunpack.c.l.b16 %v3405
        %v3738 = vunpack.c.h.b16 %v3405
        %v3739 = vunpack.c.l.b16 %v3406
        %v3740 = vunpack.c.h.b16 %v3406
        %v3741 = vunpack.c.l.b16 %v3407
        %v3742 = vunpack.c.h.b16 %v3407
        %v3743 = vunpack.c.l.b16 %v3408
        %v3744 = vunpack.c.h.b16 %v3408
        %v3745 = vunpack.c.l.b16 %v3409
        %v3746 = vunpack.c.h.b16 %v3409
        %v3747 = vunpack.c.l.b16 %v3410
        %v3748 = vunpack.c.h.b16 %v3410
        %v3749 = vunpack.c.l.b16 %v3411
        %v3750 = vunpack.c.h.b16 %v3411
        %v3751 = vunpack.c.l.b16 %v3412
        %v3752 = vunpack.c.h.b16 %v3412
        %v3753 = vunpack.c.l.b16 %v3413
        %v3754 = vunpack.c.h.b16 %v3413
        %v3755 = vunpack.c.l.b16 %v3414
        %v3756 = vunpack.c.h.b16 %v3414
        %v3757 = vunpack.c.l.b16 %v3415
        %v3758 = vunpack.c.h.b16 %v3415
        %v3759 = vunpack.c.l.b16 %v3416
        %v3760 = vunpack.c.h.b16 %v3416
        %v3761 = vunpack.c.l.b16 %v3417
        %v3762 = vunpack.c.h.b16 %v3417
        %v3763 = vunpack.c.l.b16 %v3418
        %v3764 = vunpack.c.h.b16 %v3418
        %v3765 = vunpack.c.l.b16 %v3419
        %v3766 = vunpack.c.h.b16 %v3419
        %v3767 = vunpack.c.l.b16 %v3420
        %v3768 = vunpack.c.h.b16 %v3420
        %v3769 = vunpack.c.l.b16 %v3421
        %v3770 = vunpack.c.h.b16 %v3421
        %v3771 = vunpack.c.l.b16 %v3422
        %v3772 = vunpack.c.h.b16 %v3422
        %v3773 = vunpack.c.l.b16 %v3423
        %v3774 = vunpack.c.h.b16 %v3423
        %v3775 = vunpack.c.l.b16 %v3424
        %v3776 = vunpack.c.h.b16 %v3424
        %v3777 = vunpack.c.l.b16 %v3425
        %v3778 = vunpack.c.h.b16 %v3425
        %v3779 = vunpack.c.l.b16 %v3426
        %v3780 = vunpack.c.h.b16 %v3426
        %v3781 = vunpack.c.l.b16 %v3427
        %v3782 = vunpack.c.h.b16 %v3427
        %v3783 = vunpack.c.l.b16 %v3428
        %v3784 = vunpack.c.h.b16 %v3428
        %v3785 = vunpack.c.l.b16 %v3429
        %v3786 = vunpack.c.h.b16 %v3429
        %v3787 = vunpack.c.l.b16 %v3430
        %v3788 = vunpack.c.h.b16 %v3430
        %v3789 = vunpack.c.l.b16 %v3431
        %v3790 = vunpack.c.h.b16 %v3431
        %v3791 = vunpack.c.l.b16 %v3432
        %v3792 = vunpack.c.h.b16 %v3432
        %v3793 = vunpack.c.l.b16 %v3433
        %v3794 = vunpack.c.h.b16 %v3433
        %v3795 = vunpack.c.l.b16 %v3434
        %v3796 = vunpack.c.h.b16 %v3434
        %v3797 = vunpack.c.l.b16 %v3435
        %v3798 = vunpack.c.h.b16 %v3435
        %v3799 = vunpack.c.l.b16 %v3436
        %v3800 = vunpack.c.h.b16 %v3436
        %v3801 = vunpack.c.l.b16 %v3437
        %v3802 = vunpack.c.h.b16 %v3437
        %v3803 = vunpack.c.l.b16 %v3438
        %v3804 = vunpack.c.h.b16 %v3438
        %v3805 = vunpack.c.l.b16 %v3439
        %v3806 = vunpack.c.h.b16 %v3439
        %v3807 = vunpack.c.l.b16 %v3440
        %v3808 = vunpack.c.h.b16 %v3440
        %v3809 = vunpack.c.l.b16 %v3441
        %v3810 = vunpack.c.h.b16 %v3441
        %v3811 = vunpack.c.l.b16 %v3442
        %v3812 = vunpack.c.h.b16 %v3442
        %v3813 = vunpack.c.l.b16 %v3443
        %v3814 = vunpack.c.h.b16 %v3443
        %v3815 = vunpack.c.l.b16 %v3444
        %v3816 = vunpack.c.h.b16 %v3444
        %v3817 = vunpack.c.l.b16 %v3445
        %v3818 = vunpack.c.h.b16 %v3445
        %v3819 = vunpack.c.l.b16 %v3446
        %v3820 = vunpack.c.h.b16 %v3446
        %v3821 = vunpack.c.l.b16 %v3447
        %v3822 = vunpack.c.h.b16 %v3447
        %v3823 = vunpack.c.l.b16 %v3448
        %v3824 = vunpack.c.h.b16 %v3448
        %v3825 = vunpack.c.l.b16 %v3449
        %v3826 = vunpack.c.h.b16 %v3449
        %v3827 = vunpack.c.l.b16 %v3450
        %v3828 = vunpack.c.h.b16 %v3450
        %v3829 = vunpack.c.l.b16 %v3451
        %v3830 = vunpack.c.h.b16 %v3451
        %v3831 = vunpack.c.l.b16 %v3452
        %v3832 = vunpack.c.h.b16 %v3452
        %v3833 = vunpack.c.l.b16 %v3453
        %v3834 = vunpack.c.h.b16 %v3453
        %v3835 = vunpack.c.l.b16 %v3454
        %v3836 = vunpack.c.h.b16 %v3454
        %v3837 = vunpack.c.l.b16 %v3455
        %v3838 = vunpack.c.h.b16 %v3455
        %v3839 = vunpack.c.l.b16 %v3456
        %v3840 = vunpack.c.h.b16 %v3456
        %v3841 = vunpack.c.l.b16 %v3457
        %v3842 = vunpack.c.h.b16 %v3457
        %v3843 = vunpack.c.l.b16 %v3458
        %v3844 = vunpack.c.h.b16 %v3458
        %v3845 = vunpack.c.l.b16 %v3459
        %v3846 = vunpack.c.h.b16 %v3459
        %v3847 = vunpack.c.l.b16 %v3460
        %v3848 = vunpack.c.h.b16 %v3460
        %v3849 = vunpack.c.l.b16 %v3461
        %v3850 = vunpack.c.h.b16 %v3461
        %v3851 = vunpack.c.l.b16 %v3462
        %v3852 = vunpack.c.h.b16 %v3462
        %v3853 = vunpack.c.l.b16 %v3463
        %v3854 = vunpack.c.h.b16 %v3463
        %v3855 = vunpack.c.l.b16 %v3464
        %v3856 = vunpack.c.h.b16 %v3464
        %v3857 = vunpack.c.l.b16 %v3465
        %v3858 = vunpack.c.h.b16 %v3465
        %v3859 = vunpack.c.l.b16 %v3466
        %v3860 = vunpack.c.h.b16 %v3466
        %v3861 = vunpack.c.l.b16 %v3467
        %v3862 = vunpack.c.h.b16 %v3467
        %v3863 = vunpack.c.l.b16 %v3468
        %v3864 = vunpack.c.h.b16 %v3468
        %v3865 = vpack.c.b16 %v3611, %v3609
        %v3866 = vpack.c.b16 %v3612, %v3610
        %v3867 = vpack.c.b16 %v3615, %v3613
        %v3868 = vpack.c.b16 %v3616, %v3614
        %v3869 = vpack.c.b16 %v3619, %v3617
        %v3870 = vpack.c.b16 %v3620, %v3618
        %v3871 = vpack.c.b16 %v3623, %v3621
        %v3872 = vpack.c.b16 %v3624, %v3622
        %v3873 = vpack.c.b16 %v3627, %v3625
        %v3874 = vpack.c.b16 %v3628, %v3626
        %v3875 = vpack.c.b16 %v3631, %v3629
        %v3876 = vpack.c.b16 %v3632, %v3630
        %v3877 = vpack.c.b16 %v3635, %v3633
        %v3878 = vpack.c.b16 %v3636, %v3634
        %v3879 = vpack.c.b16 %v3639, %v3637
        %v3880 = vpack.c.b16 %v3640, %v3638
        %v3881 = vpack.c.b16 %v3643, %v3641
        %v3882 = vpack.c.b16 %v3644, %v3642
        %v3883 = vpack.c.b16 %v3647, %v3645
        %v3884 = vpack.c.b16 %v3648, %v3646
        %v3885 = vpack.c.b16 %v3651, %v3649
        %v3886 = vpack.c.b16 %v3652, %v3650
        %v3887 = vpack.c.b16 %v3655, %v3653
        %v3888 = vpack.c.b16 %v3656, %v3654
        %v3889 = vpack.c.b16 %v3659, %v3657
        %v3890 = vpack.c.b16 %v3660, %v3658
        %v3891 = vpack.c.b16 %v3663, %v3661
        %v3892 = vpack.c.b16 %v3664, %v3662
        %v3893 = vpack.c.b16 %v3667, %v3665
        %v3894 = vpack.c.b16 %v3668, %v3666
        %v3895 = vpack.c.b16 %v3671, %v3669
        %v3896 = vpack.c.b16 %v3672, %v3670
        %v3897 = vpack.c.b16 %v3675, %v3673
        %v3898 = vpack.c.b16 %v3676, %v3674
        %v3899 = vpack.c.b16 %v3679, %v3677
        %v3900 = vpack.c.b16 %v3680, %v3678
        %v3901 = vpack.c.b16 %v3683, %v3681
        %v3902 = vpack.c.b16 %v3684, %v3682
        %v3903 = vpack.c.b16 %v3687, %v3685
        %v3904 = vpack.c.b16 %v3688, %v3686
        %v3905 = vpack.c.b16 %v3691, %v3689
        %v3906 = vpack.c.b16 %v3692, %v3690
        %v3907 = vpack.c.b16 %v3695, %v3693
        %v3908 = vpack.c.b16 %v3696, %v3694
        %v3909 = vpack.c.b16 %v3699, %v3697
        %v3910 = vpack.c.b16 %v3700, %v3698
        %v3911 = vpack.c.b16 %v3703, %v3701
        %v3912 = vpack.c.b16 %v3704, %v3702
        %v3913 = vpack.c.b16 %v3707, %v3705
        %v3914 = vpack.c.b16 %v3708, %v3706
        %v3915 = vpack.c.b16 %v3711, %v3709
        %v3916 = vpack.c.b16 %v3712, %v3710
        %v3917 = vpack.c.b16 %v3715, %v3713
        %v3918 = vpack.c.b16 %v3716, %v3714
        %v3919 = vpack.c.b16 %v3719, %v3717
        %v3920 = vpack.c.b16 %v3720, %v3718
        %v3921 = vpack.c.b16 %v3723, %v3721
        %v3922 = vpack.c.b16 %v3724, %v3722
        %v3923 = vpack.c.b16 %v3727, %v3725
        %v3924 = vpack.c.b16 %v3728, %v3726
        %v3925 = vpack.c.b16 %v3731, %v3729
        %v3926 = vpack.c.b16 %v3732, %v3730
        %v3927 = vpack.c.b16 %v3735, %v3733
        %v3928 = vpack.c.b16 %v3736, %v3734
        %v3929 = vpack.c.b16 %v3739, %v3737
        %v3930 = vpack.c.b16 %v3740, %v3738
        %v3931 = vpack.c.b16 %v3743, %v3741
        %v3932 = vpack.c.b16 %v3744, %v3742
        %v3933 = vpack.c.b16 %v3747, %v3745
        %v3934 = vpack.c.b16 %v3748, %v3746
        %v3935 = vpack.c.b16 %v3751, %v3749
        %v3936 = vpack.c.b16 %v3752, %v3750
        %v3937 = vpack.c.b16 %v3755, %v3753
        %v3938 = vpack.c.b16 %v3756, %v3754
        %v3939 = vpack.c.b16 %v3759, %v3757
        %v3940 = vpack.c.b16 %v3760, %v3758
        %v3941 = vpack.c.b16 %v3763, %v3761
        %v3942 = vpack.c.b16 %v3764, %v3762
        %v3943 = vpack.c.b16 %v3767, %v3765
        %v3944 = vpack.c.b16 %v3768, %v3766
        %v3945 = vpack.c.b16 %v3771, %v3769
        %v3946 = vpack.c.b16 %v3772, %v3770
        %v3947 = vpack.c.b16 %v3775, %v3773
        %v3948 = vpack.c.b16 %v3776, %v3774
        %v3949 = vpack.c.b16 %v3779, %v3777
        %v3950 = vpack.c.b16 %v3780, %v3778
        %v3951 = vpack.c.b16 %v3783, %v3781
        %v3952 = vpack.c.b16 %v3784, %v3782
        %v3953 = vpack.c.b16 %v3787, %v3785
        %v3954 = vpack.c.b16 %v3788, %v3786
        %v3955 = vpack.c.b16 %v3791, %v3789
        %v3956 = vpack.c.b16 %v3792, %v3790
        %v3957 = vpack.c.b16 %v3795, %v3793
        %v3958 = vpack.c.b16 %v3796, %v3794
        %v3959 = vpack.c.b16 %v3799, %v3797
        %v3960 = vpack.c.b16 %v3800, %v3798
        %v3961 = vpack.c.b16 %v3803, %v3801
        %v3962 = vpack.c.b16 %v3804, %v3802
        %v3963 = vpack.c.b16 %v3807, %v3805
        %v3964 = vpack.c.b16 %v3808, %v3806
        %v3965 = vpack.c.b16 %v3811, %v3809
        %v3966 = vpack.c.b16 %v3812, %v3810
        %v3967 = vpack.c.b16 %v3815, %v3813
        %v3968 = vpack.c.b16 %v3816, %v3814
        %v3969 = vpack.c.b16 %v3819, %v3817
        %v3970 = vpack.c.b16 %v3820, %v3818
        %v3971 = vpack.c.b16 %v3823, %v3821
        %v3972 = vpack.c.b16 %v3824, %v3822
        %v3973 = vpack.c.b16 %v3827, %v3825
        %v3974 = vpack.c.b16 %v3828, %v3826
        %v3975 = vpack.c.b16 %v3831, %v3829
        %v3976 = vpack.c.b16 %v3832, %v3830
        %v3977 = vpack.c.b16 %v3835, %v3833
        %v3978 = vpack.c.b16 %v3836, %v3834
        %v3979 = vpack.c.b16 %v3839, %v3837
        %v3980 = vpack.c.b16 %v3840, %v3838
        %v3981 = vpack.c.b16 %v3843, %v3841
        %v3982 = vpack.c.b16 %v3844, %v3842
        %v3983 = vpack.c.b16 %v3847, %v3845
        %v3984 = vpack.c.b16 %v3848, %v3846
        %v3985 = vpack.c.b16 %v3851, %v3849
        %v3986 = vpack.c.b16 %v3852, %v3850
        %v3987 = vpack.c.b16 %v3855, %v3853
        %v3988 = vpack.c.b16 %v3856, %v3854
        %v3989 = vpack.c.b16 %v3859, %v3857
        %v3990 = vpack.c.b16 %v3860, %v3858
        %v3991 = vpack.c.b16 %v3863, %v3861
        %v3992 = vpack.c.b16 %v3864, %v3862
        %4121 = vmatprep.subr.bf16.mxu0 %v3880
        %4122 = vmatpush1.bf16.msra.mxu0 %v3879
        %4123 = vmatprep.subr.bf16.mxu0 %v3878
        %4124 = vmatpush1.bf16.msra.mxu0 %v3877
        %4125 = vmatprep.subr.bf16.mxu0 %v3876
        %4126 = vmatpush1.bf16.msra.mxu0 %v3875
        %4127 = vmatprep.subr.bf16.mxu0 %v3874
        %4128 = vmatpush1.bf16.msra.mxu0 %v3873
        %4129 = vmatprep.subr.bf16.mxu0 %v3872
        %4130 = vmatpush1.bf16.msra.mxu0 %v3871
        %4131 = vmatprep.subr.bf16.mxu0 %v3870
        %4132 = vmatpush1.bf16.msra.mxu0 %v3869
        %4133 = vmatprep.subr.bf16.mxu0 %v3868
        %4134 = vmatpush1.bf16.msra.mxu0 %v3867
        %4135 = vmatprep.subr.bf16.mxu0 %v3866
        %4136 = vmatpush1.bf16.msra.mxu0 %v3865
        %4137 = vmatprep.subr.bf16.mxu0 %v3896
        %4138 = vmatpush2.bf16.msra.mxu0 %v3895
        %4139 = vmatprep.subr.bf16.mxu0 %v3894
        %4140 = vmatpush2.bf16.msra.mxu0 %v3893
        %4141 = vmatprep.subr.bf16.mxu0 %v3892
        %4142 = vmatpush2.bf16.msra.mxu0 %v3891
        %4143 = vmatprep.subr.bf16.mxu0 %v3890
        %4144 = vmatpush2.bf16.msra.mxu0 %v3889
        %4145 = vmatprep.subr.bf16.mxu0 %v3888
        %4146 = vmatpush2.bf16.msra.mxu0 %v3887
        %4147 = vmatprep.subr.bf16.mxu0 %v3886
        %4148 = vmatpush2.bf16.msra.mxu0 %v3885
        %4149 = vmatprep.subr.bf16.mxu0 %v3884
        %4150 = vmatpush2.bf16.msra.mxu0 %v3883
        %4151 = vmatprep.subr.bf16.mxu0 %v3882
        %4152 = vmatpush2.bf16.msra.mxu0 %v3881
        %4153 = vmatprep.mubr.bf16.mxu0 %v3334
        %4154 = vmatmul.mubr.bf16.gmra.mxu0 %v3333
        %v4155 = vpop.f32.mrf.mxu0
        %v4156 = vadd.f32 %v3474, %v4155
        %v4157 = vpop.f32.mrf.mxu0
        %v4158 = vadd.f32 %v3478, %v4157
        %v4159 = vpop.f32.mrf.mxu0
        %v4160 = vadd.f32 %v3474, %v4159
        %v4161 = vpop.f32.mrf.mxu0
        %v4162 = vadd.f32 %v3478, %v4161
        %4163 = vdwg.mxu0
        %4164 = vmatprep.subr.bf16.mxu0 %v3912
        %4165 = vmatpush1.bf16.msra.mxu0 %v3911
        %4166 = vmatprep.subr.bf16.mxu0 %v3910
        %4167 = vmatpush1.bf16.msra.mxu0 %v3909
        %4168 = vmatprep.subr.bf16.mxu0 %v3908
        %4169 = vmatpush1.bf16.msra.mxu0 %v3907
        %4170 = vmatprep.subr.bf16.mxu0 %v3906
        %4171 = vmatpush1.bf16.msra.mxu0 %v3905
        %4172 = vmatprep.subr.bf16.mxu0 %v3904
        %4173 = vmatpush1.bf16.msra.mxu0 %v3903
        %4174 = vmatprep.subr.bf16.mxu0 %v3902
        %4175 = vmatpush1.bf16.msra.mxu0 %v3901
        %4176 = vmatprep.subr.bf16.mxu0 %v3900
        %4177 = vmatpush1.bf16.msra.mxu0 %v3899
        %4178 = vmatprep.subr.bf16.mxu0 %v3898
        %4179 = vmatpush1.bf16.msra.mxu0 %v3897
        %4180 = vmatprep.subr.bf16.mxu0 %v3928
        %4181 = vmatpush2.bf16.msra.mxu0 %v3927
        %4182 = vmatprep.subr.bf16.mxu0 %v3926
        %4183 = vmatpush2.bf16.msra.mxu0 %v3925
        %4184 = vmatprep.subr.bf16.mxu0 %v3924
        %4185 = vmatpush2.bf16.msra.mxu0 %v3923
        %4186 = vmatprep.subr.bf16.mxu0 %v3922
        %4187 = vmatpush2.bf16.msra.mxu0 %v3921
        %4188 = vmatprep.subr.bf16.mxu0 %v3920
        %4189 = vmatpush2.bf16.msra.mxu0 %v3919
        %4190 = vmatprep.subr.bf16.mxu0 %v3918
        %4191 = vmatpush2.bf16.msra.mxu0 %v3917
        %4192 = vmatprep.subr.bf16.mxu0 %v3916
        %4193 = vmatpush2.bf16.msra.mxu0 %v3915
        %4194 = vmatprep.subr.bf16.mxu0 %v3914
        %4195 = vmatpush2.bf16.msra.mxu0 %v3913
        %4196 = vmatprep.mubr.bf16.mxu0 %v3336
        %4197 = vmatmul.mubr.bf16.gmra.mxu0 %v3335
        %v4198 = vpop.f32.mrf.mxu0
        %v4199 = vadd.f32 %v4156, %v4198
        %v4200 = vpop.f32.mrf.mxu0
        %v4201 = vadd.f32 %v4158, %v4200
        %v4202 = vpop.f32.mrf.mxu0
        %v4203 = vadd.f32 %v4160, %v4202
        %v4204 = vpop.f32.mrf.mxu0
        %v4205 = vadd.f32 %v4162, %v4204
        %4206 = vdwg.mxu0
        %4207 = vmatprep.subr.bf16.mxu0 %v3944
        %4208 = vmatpush1.bf16.msra.mxu0 %v3943
        %4209 = vmatprep.subr.bf16.mxu0 %v3942
        %4210 = vmatpush1.bf16.msra.mxu0 %v3941
        %4211 = vmatprep.subr.bf16.mxu0 %v3940
        %4212 = vmatpush1.bf16.msra.mxu0 %v3939
        %4213 = vmatprep.subr.bf16.mxu0 %v3938
        %4214 = vmatpush1.bf16.msra.mxu0 %v3937
        %4215 = vmatprep.subr.bf16.mxu0 %v3936
        %4216 = vmatpush1.bf16.msra.mxu0 %v3935
        %4217 = vmatprep.subr.bf16.mxu0 %v3934
        %4218 = vmatpush1.bf16.msra.mxu0 %v3933
        %4219 = vmatprep.subr.bf16.mxu0 %v3932
        %4220 = vmatpush1.bf16.msra.mxu0 %v3931
        %4221 = vmatprep.subr.bf16.mxu0 %v3930
        %4222 = vmatpush1.bf16.msra.mxu0 %v3929
        %4223 = vmatprep.subr.bf16.mxu0 %v3960
        %4224 = vmatpush2.bf16.msra.mxu0 %v3959
        %4225 = vmatprep.subr.bf16.mxu0 %v3958
        %4226 = vmatpush2.bf16.msra.mxu0 %v3957
        %4227 = vmatprep.subr.bf16.mxu0 %v3956
        %4228 = vmatpush2.bf16.msra.mxu0 %v3955
        %4229 = vmatprep.subr.bf16.mxu0 %v3954
        %4230 = vmatpush2.bf16.msra.mxu0 %v3953
        %4231 = vmatprep.subr.bf16.mxu0 %v3952
        %4232 = vmatpush2.bf16.msra.mxu0 %v3951
        %4233 = vmatprep.subr.bf16.mxu0 %v3950
        %4234 = vmatpush2.bf16.msra.mxu0 %v3949
        %4235 = vmatprep.subr.bf16.mxu0 %v3948
        %4236 = vmatpush2.bf16.msra.mxu0 %v3947
        %4237 = vmatprep.subr.bf16.mxu0 %v3946
        %4238 = vmatpush2.bf16.msra.mxu0 %v3945
        %4239 = vmatprep.mubr.bf16.mxu0 %v3338
        %4240 = vmatmul.mubr.bf16.gmra.mxu0 %v3337
        %v4241 = vpop.f32.mrf.mxu0
        %v4242 = vadd.f32 %v4199, %v4241
        %v4243 = vpop.f32.mrf.mxu0
        %v4244 = vadd.f32 %v4201, %v4243
        %v4245 = vpop.f32.mrf.mxu0
        %v4246 = vadd.f32 %v4203, %v4245
        %v4247 = vpop.f32.mrf.mxu0
        %v4248 = vadd.f32 %v4205, %v4247
        %4249 = vdwg.mxu0
        %4250 = vmatprep.subr.bf16.mxu0 %v3976
        %4251 = vmatpush1.bf16.msra.mxu0 %v3975
        %4252 = vmatprep.subr.bf16.mxu0 %v3974
        %4253 = vmatpush1.bf16.msra.mxu0 %v3973
        %4254 = vmatprep.subr.bf16.mxu0 %v3972
        %4255 = vmatpush1.bf16.msra.mxu0 %v3971
        %4256 = vmatprep.subr.bf16.mxu0 %v3970
        %4257 = vmatpush1.bf16.msra.mxu0 %v3969
        %4258 = vmatprep.subr.bf16.mxu0 %v3968
        %4259 = vmatpush1.bf16.msra.mxu0 %v3967
        %4260 = vmatprep.subr.bf16.mxu0 %v3966
        %4261 = vmatpush1.bf16.msra.mxu0 %v3965
        %4262 = vmatprep.subr.bf16.mxu0 %v3964
        %4263 = vmatpush1.bf16.msra.mxu0 %v3963
        %4264 = vmatprep.subr.bf16.mxu0 %v3962
        %4265 = vmatpush1.bf16.msra.mxu0 %v3961
        %4266 = vmatprep.subr.bf16.mxu0 %v3992
        %4267 = vmatpush2.bf16.msra.mxu0 %v3991
        %4268 = vmatprep.subr.bf16.mxu0 %v3990
        %4269 = vmatpush2.bf16.msra.mxu0 %v3989
        %4270 = vmatprep.subr.bf16.mxu0 %v3988
        %4271 = vmatpush2.bf16.msra.mxu0 %v3987
        %4272 = vmatprep.subr.bf16.mxu0 %v3986
        %4273 = vmatpush2.bf16.msra.mxu0 %v3985
        %4274 = vmatprep.subr.bf16.mxu0 %v3984
        %4275 = vmatpush2.bf16.msra.mxu0 %v3983
        %4276 = vmatprep.subr.bf16.mxu0 %v3982
        %4277 = vmatpush2.bf16.msra.mxu0 %v3981
        %4278 = vmatprep.subr.bf16.mxu0 %v3980
        %4279 = vmatpush2.bf16.msra.mxu0 %v3979
        %4280 = vmatprep.subr.bf16.mxu0 %v3978
        %4281 = vmatpush2.bf16.msra.mxu0 %v3977
        %4282 = vmatprep.mubr.bf16.mxu0 %v3340
        %4283 = vmatmul.mubr.bf16.gmra.mxu0 %v3339
        %v4284 = vpop.f32.mrf.mxu0
        %v4285 = vadd.f32 %v4242, %v4284
        %v4286 = vpop.f32.mrf.mxu0
        %v4287 = vadd.f32 %v4244, %v4286
        %v4288 = vpop.f32.mrf.mxu0
        %v4289 = vadd.f32 %v4246, %v4288
        %v4290 = vpop.f32.mrf.mxu0
        %v4291 = vadd.f32 %v4248, %v4290
        %4292 = vdwg.mxu0
        %v4293 = vadd.f32 %v2265, %v4285
        %v4294 = vadd.f32 %v2266, %v4287
        %v4295 = vadd.f32 %v2267, %v4289
        %v4296 = vadd.f32 %v2268, %v4291
        %4297 = vst [vmem:[#allocation2] sm:$0xff] %v4293
        %4298 = vst [vmem:[#allocation2 + $0x8] sm:$0xff] %v4294
        %4299 = vst [vmem:[#allocation2 + $0x10] sm:$0xff] %v4295
        %4300 = vst [vmem:[#allocation2 + $0x18] sm:$0xff] %v4296
        %p4301 = scmp.eq.s32.totalorder %s36, 1
        // Predicated region
        $region105: #{pretrained_backbone_forward.2} parent=83 // pred_check
          %p4302 = pneg %p4301
        $region106: #{pretrained_backbone_forward.2} parent=83 // pred_check_branch
          %4304 = sbr.rel (%p4302) target = $region108
        $region107: #{pretrained_backbone_forward.2} parent=83 // pred_region
          %v4305 = vld [vmem:[%s14] sm:$0x3]
          %v4306 = vld [vmem:[%s15] sm:$0x3]
          %v4307 = vadd.f32 %v4293, %v4294
          %4308 = vadd.xlane.f32.xlu0 %v4307
          %v4309 = vpop.xlane.xlu0 %4308
          %v4310 = vadd.f32 %v4295, %v4296
          %4311 = vadd.xlane.f32.xlu0 %v4310
          %v4312 = vpop.xlane.xlu0 %4311
          %v4313 = vmul.f32 %v4309, %v805
          %v4314 = vmul.f32 %v4312, %v805
          %v4315 = vsub.f32 %v4293, %v4313
          %v4316 = vsub.f32 %v4294, %v4313
          %v4317 = vsub.f32 %v4295, %v4314
          %v4318 = vsub.f32 %v4296, %v4314
          %v4319 = vmul.f32 %v4315, %v4315
          %v4320 = vmul.f32 %v4316, %v4316
          %v4321 = vmul.f32 %v4317, %v4317
          %v4322 = vmul.f32 %v4318, %v4318
          %v4323 = vadd.f32 %v4319, %v4320
          %4324 = vadd.xlane.f32.xlu0 %v4323
          %v4325 = vpop.xlane.xlu0 %4324
          %v4326 = vadd.f32 %v4321, %v4322
          %4327 = vadd.xlane.f32.xlu0 %v4326
          %v4328 = vpop.xlane.xlu0 %4327
          %v4329 = vmul.f32 %v4325, %v805
          %v4330 = vmul.f32 %v4328, %v805
          %v4331 = vadd.f32 %v4329, 1e-05
          %v4332 = vadd.f32 %v4330, 1e-05
          %v4333 = vrsqrt.pop %v4331
          %v4334 = vrsqrt.pop %v4332
          %v4335 = vmul.f32 %v4315, %v4333
          %v4336 = vmul.f32 %v4316, %v4333
          %v4337 = vmul.f32 %v4317, %v4334
          %v4338 = vmul.f32 %v4318, %v4334
          %v4340 = vlaneseq
          %v4341 = vshrl.u32 %v4340, 7
          %v4342 = vsub.s32 0, %v4341
          %v4343 = vrot.slane %v4305, %v4342
          %v4344 = vlaneseq
          %v4345 = vshrl.u32 %v4344, 7
          %v4346 = vsub.s32 1, %v4345
          %v4347 = vrot.slane %v4305, %v4346
          %v4350 = vmul.f32 %v4335, %v4343
          %v4351 = vmul.f32 %v4336, %v4347
          %v4352 = vmul.f32 %v4337, %v4343
          %v4353 = vmul.f32 %v4338, %v4347
          %v4355 = vlaneseq
          %v4356 = vshrl.u32 %v4355, 7
          %v4357 = vsub.s32 0, %v4356
          %v4358 = vrot.slane %v4306, %v4357
          %v4359 = vlaneseq
          %v4360 = vshrl.u32 %v4359, 7
          %v4361 = vsub.s32 1, %v4360
          %v4362 = vrot.slane %v4306, %v4361
          %v4365 = vadd.f32 %v4350, %v4358
          %v4366 = vadd.f32 %v4351, %v4362
          %v4367 = vadd.f32 %v4352, %v4358
          %v4368 = vadd.f32 %v4353, %v4362
          %4369 = vst [vmem:[%s16] sm:$0xff] %v4365
          %4370 = vst [vmem:[%s16 + $0x8] sm:$0xff] %v4366
          %4371 = vst [vmem:[%s16 + $0x10] sm:$0xff] %v4367
          %4372 = vst [vmem:[%s16 + $0x18] sm:$0xff] %v4368
        $region108: #{pretrained_backbone_forward.2} parent=83 // pred_fallthru
          _
        // Predicated region
        $region109: #{pretrained_backbone_forward.2} parent=83 // pred_check
          %p4373 = pneg %p445
        $region110: #{pretrained_backbone_forward.2} parent=83 // pred_check_branch
          %4375 = sbr.rel (%p4373) target = $region112
        $region111: #{pretrained_backbone_forward.2} parent=83 // pred_region
          _
        $region112: #{pretrained_backbone_forward.2} parent=83 // pred_fallthru
          _
        // Predicated region
        $region113: #{pretrained_backbone_forward.2} parent=83 // pred_check
          %p4376 = pneg %p445
        $region114: #{pretrained_backbone_forward.2} parent=83 // pred_check_branch
          %4378 = sbr.rel (%p4376) target = $region116
        $region115: #{pretrained_backbone_forward.2} parent=83 // pred_region
          _
        $region116: #{pretrained_backbone_forward.2} parent=83 // pred_fallthru
          _
      $region84: #{pretrained_backbone_forward.2} parent=5 // pred_fallthru
        _
      %p4379 = scmp.le.s32.totalorder 2, %s31
      // Predicated region
      $region117: #{pretrained_backbone_forward.2} parent=5 // pred_check
        %p4380 = pneg %p4379
      $region118: #{pretrained_backbone_forward.2} parent=5 // pred_check_branch
        %4382 = sbr.rel (%p4380) target = $region120
      $region119: #{pretrained_backbone_forward.2} parent=5 // pred_region
        %s4383 = ssub.s32 %s31, 2
      $region120: #{pretrained_backbone_forward.2} parent=5 // pred_fallthru
        _
    $region6: #{pretrained_backbone_forward.2} parent=1 // loop_footer
      %s35 = sadd.s32 1, %s31
    $region7: #{pretrained_backbone_forward.2} parent=1 // loop_footer_branch
      %30 = sbr.rel target = $region3
    $region8: #{pretrained_backbone_forward.2} parent=1 // loop_exit
      _
    %4384 = vsyncpa [#allocation4], 1
    %s4385 = scalar_lea.sflag [#allocation4], 1
    %4386 = vsyncpa %s4385, 1
    %4387 = vsyncpa [#allocation6], 1
    %s4388 = scalar_lea.sflag [#allocation6], 1
    %4389 = vsyncpa %s4388, 1
    %4390 = vsyncpa [#allocation9], 1
    %s4391 = scalar_lea.sflag [#allocation9], 1
    %4392 = vsyncpa %s4391, 1

</llo_original>
